<compile_context>
chip_gen: v7x
topology: tpu7x:2x2x1
jax: 0.10.0
libtpu: 0.0.40
codegen_flags: <defaults>
</compile_context>

<pallas_src>
import functools
import math

import jax
import jax.numpy as jnp
from jax.experimental import pallas as pl
from jax.experimental.pallas import tpu as pltpu


def e2e_kernel(x_ref, w_ref, o_ref, *, d, o_ch):
    # x_ref: (2K, TN*d)   rows [0:K)  : xr[c*d+k, n*d+i] = x[nb*TN+n, c, i, k]
    #                     rows [K:2K) : xc[c*d+k, n*d+j] = x[nb*TN+n, c, k, j]
    # w_ref: (2O, 2K)     block-diagonal [[W1, 0], [0, W2]], Wm[o, c*d+k]
    # o_ref: (O, TN, d*d) out[o, n, i*d + j]
    tn = o_ref.shape[1]

    # One fused MXU matmul per grid step (f32 accumulation):
    #   res[:O][o, n*d+i] = sum_ck W1[o,ck] * xr[ck, n*d+i]   (row filter)
    #   res[O:][o, n*d+j] = sum_ck W2[o,ck] * xc[ck, n*d+j]   (col filter)
    res = jnp.dot(w_ref[...], x_ref[...], preferred_element_type=jnp.float32)

    # Vectorized epilogue: one trailing-dim reshape, one whole-block broadcast add,
    # one dense full-block store (no per-element slices, no masked stores).
    res3 = res.reshape(2 * o_ch, tn, d)
    row = res3[:o_ch]                                   # (O, TN, d)  row[o, n, i]
    col = res3[o_ch:]                                   # (O, TN, d)  col[o, n, j]
    out = row[:, :, :, None] + col[:, :, None, :]       # (O, TN, d, d)
    o_ref[...] = out.reshape(o_ch, tn, d * d).astype(o_ref.dtype)


def _pick_batch_tile(N, d, K, O, itemsize):
    """Choose the batch tile TN and estimate per-step VMEM usage (bytes)."""
    # Smallest TN with (TN*d) % 128 == 0 (lane tile of the matmul operand) and
    # TN % 8 == 0 (sublane tile of the output block's second-minor dim).
    unit = math.lcm(math.lcm(d, 128) // d, 8)

    # Cap 1: ~512-1024 lanes per step (tile-size sweep sweet spot).
    cap_lanes = max(1, 1024 // (unit * d))
    # Cap 2: keep >= 4 grid steps when the batch allows it (megacore + pipelining).
    cap_grid = max(1, pl.cdiv(N, unit) // 4)
    # Cap 3: per-step VMEM working set within a budget that fits every generation
    # (v7x has only 64 MiB physical VMEM; v5e's default scoped limit is 16 MiB).
    budget = 24 << 20
    fixed = 2 * (2 * O) * (2 * K) * itemsize                 # weights (double-buffered)
    per_mult = (2 * K) * (unit * d) * itemsize * 2           # fused x block, 2 buffers
    per_mult += O * unit * d * d * itemsize * 2              # output block, 2 buffers
    per_mult += 3 * O * unit * d * d * 4                     # f32 epilogue temporaries
    cap_vmem = max(1, (budget - fixed) // per_mult)

    mult = max(1, min(cap_lanes, cap_grid, cap_vmem))
    tn = unit * mult
    est_bytes = fixed + per_mult * mult
    return tn, est_bytes


def e2e_block(x, w1, w2):
    """BrainNetCNN E2EBlock forward.

    x : (N, C, d, d);  w1: (O, C, 1, d);  w2: (O, C, d, 1)  ->  (N, O, d, d)
    """
    N, C, d, d2 = x.shape
    assert d == d2, (d, d2)
    O = w1.shape[0]
    K = C * d
    itemsize = jnp.dtype(x.dtype).itemsize

    # One-time XLA-side relayouts (amortized over the whole grid):
    #   xr[c*d+k, n*d+i] = x[n, c, i, k]   (row-filter operand)
    #   xc[c*d+k, n*d+j] = x[n, c, k, j]   (col-filter operand)
    xr = jnp.transpose(x, (1, 3, 0, 2)).reshape(K, N * d)
    xc = jnp.transpose(x, (1, 2, 0, 3)).reshape(K, N * d)
    xcat = jnp.concatenate([xr, xc], axis=0)                  # (2K, N*d)

    # Block-diagonal weight so a single dot produces [row; col] stacked on sublanes.
    w1m = w1.reshape(O, K).astype(x.dtype)
    w2m = w2.reshape(O, K).astype(x.dtype)
    zer = jnp.zeros((O, K), x.dtype)
    wcat = jnp.concatenate(
        [jnp.concatenate([w1m, zer], axis=1),
         jnp.concatenate([zer, w2m], axis=1)], axis=0)        # (2O, 2K)

    tn, vmem_est = _pick_batch_tile(N, d, K, O, itemsize)
    n_pad = pl.cdiv(N, tn) * tn
    if n_pad != N:                                            # zero-pad batch; sliced off below
        xcat = jnp.pad(xcat, ((0, 0), (0, (n_pad - N) * d)))
    grid = (n_pad // tn,)

    vmem_limit = int(min(64 << 20, max(32 << 20, 2 * vmem_est)))
    kernel = functools.partial(e2e_kernel, d=d, o_ch=O)

    out_om = pl.pallas_call(
        kernel,
        out_shape=jax.ShapeDtypeStruct((O, n_pad, d * d), x.dtype),
        grid_spec=pl.GridSpec(
            grid=grid,
            in_specs=[
                pl.BlockSpec((2 * K, tn * d), lambda n: (0, n)),
                pl.BlockSpec((2 * O, 2 * K), lambda n: (0, 0)),   # VMEM-resident weights
            ],
            out_specs=pl.BlockSpec((O, tn, d * d), lambda n: (0, n, 0)),
        ),
        compiler_params=pltpu.CompilerParams(
            dimension_semantics=("parallel",),
            vmem_limit_bytes=vmem_limit),
        cost_estimate=pl.CostEstimate(
            flops=8 * O * K * n_pad * d + O * n_pad * d * d,
            transcendentals=0,
            bytes_accessed=itemsize * (2 * K * n_pad * d + O * n_pad * d * d + 4 * O * K)),
    )(xcat, wcat)

    # Wrapper-side permutation back to the PyTorch layout (one amortized XLA pass).
    return jnp.transpose(out_om[:, :N], (1, 0, 2)).reshape(N, O, d, d)


def e2e_block_ref(x, w1, w2):
    """Pure-JAX reference with identical semantics."""
    O, C, _, d = w1.shape
    w1s = w1.reshape(O, C, d)
    w2s = w2.reshape(O, C, d)
    row = jnp.einsum('ncik,ock->noi', x, w1s)   # (N, O, d)
    col = jnp.einsum('nckj,ock->noj', x, w2s)   # (N, O, d)
    return row[:, :, :, None] + col[:, :, None, :]


if __name__ == "__main__":
    N, C, O, d = 2, 4, 8, 16

    key = jax.random.PRNGKey(0)
    kx, k1, k2 = jax.random.split(key, 3)
    x = jax.random.normal(kx, (N, C, d, d), dtype=jnp.float32)
    # Conv2d weight shapes from __init__: conv1 (O, C, 1, d), conv2 (O, C, d, 1)
    w1 = jax.random.normal(k1, (O, C, 1, d), dtype=jnp.float32) * 0.1
    w2 = jax.random.normal(k2, (O, C, d, 1), dtype=jnp.float32) * 0.1

    out = jax.block_until_ready(e2e_block(x, w1, w2))
    ref = e2e_block_ref(x, w1, w2)

    assert out.shape == (N, O, d, d), out.shape
    err = jnp.max(jnp.abs(out - ref))
    assert jnp.allclose(out, ref, atol=1e-4, rtol=1e-4), f"max abs err = {err}"

    print("KERNEL_OK")
</pallas_src>

<mosaic_0001>
module attributes {stable_mosaic.version = 11 : i64} {
  func.func @e2e_kernel(%arg0: i32, %arg1: memref<128x128xf32, #tpu.memory_space<vmem>>, %arg2: memref<16x128xf32, #tpu.memory_space<vmem>>, %arg3: memref<8x8x256xf32, #tpu.memory_space<vmem>>) attributes {dimension_semantics = [#tpu.dimension_semantics<parallel>], iteration_bounds = array<i64: 1>, scalar_prefetch = 0 : i64, scratch_operands = 0 : i64, tpu.core_type = #tpu.core_type<tc>, window_params = [{transform_indices = @transform_0, window_bounds = array<i64: 128, 128>}, {pipeline_mode = #tpu.pipeline_mode<synchronous>, transform_indices = @transform_1, window_bounds = array<i64: 16, 128>}, {transform_indices = @transform_2, window_bounds = array<i64: 8, 8, 256>}]} {
    %c0 = arith.constant 0 : index
    %c0_0 = arith.constant 0 : index
    %0 = vector.load %arg2[%c0, %c0_0] : memref<16x128xf32, #tpu.memory_space<vmem>>, vector<16x128xf32>
    %c0_1 = arith.constant 0 : index
    %c0_2 = arith.constant 0 : index
    %1 = vector.load %arg1[%c0_1, %c0_2] : memref<128x128xf32, #tpu.memory_space<vmem>>, vector<128x128xf32>
    %cst = arith.constant dense<0.000000e+00> : vector<16x128xf32>
    %2 = tpu.matmul %0, %1, %cst {dimension_numbers = #tpu.dot_dimension_numbers<[1], [0], [0], [1], [0, 0, 1, 1], [], []>} : vector<16x128xf32>, vector<128x128xf32>, vector<16x128xf32> -> vector<16x128xf32>
    %3 = vector.shape_cast %2 : vector<16x128xf32> to vector<16x8x16xf32>
    %4 = vector.extract_strided_slice %3 {offsets = [0, 0, 0], sizes = [8, 8, 16], strides = [1, 1, 1]} : vector<16x8x16xf32> to vector<8x8x16xf32>
    %5 = vector.extract_strided_slice %3 {offsets = [8, 0, 0], sizes = [8, 8, 16], strides = [1, 1, 1]} : vector<16x8x16xf32> to vector<8x8x16xf32>
    %6 = vector.shape_cast %4 : vector<8x8x16xf32> to vector<8x8x16x1xf32>
    %7 = vector.shape_cast %5 : vector<8x8x16xf32> to vector<8x8x1x16xf32>
    %8 = vector.broadcast %6 : vector<8x8x16x1xf32> to vector<8x8x16x16xf32>
    %9 = vector.broadcast %7 : vector<8x8x1x16xf32> to vector<8x8x16x16xf32>
    %10 = arith.addf %8, %9 : vector<8x8x16x16xf32>
    %11 = vector.shape_cast %10 : vector<8x8x16x16xf32> to vector<8x8x256xf32>
    %c0_3 = arith.constant 0 : index
    %c0_4 = arith.constant 0 : index
    %c0_5 = arith.constant 0 : index
    %12 = vector.load %arg3[%c0_3, %c0_4, %c0_5] : memref<8x8x256xf32, #tpu.memory_space<vmem>>, vector<8x8x256xf32>
    tpu.vector_store %arg3[%c0_3, %c0_4, %c0_5], %11 {strides = array<i32>} : memref<8x8x256xf32, #tpu.memory_space<vmem>>, vector<8x8x256xf32>,
    return
  }
  func.func @transform_0(%arg0: i32) -> (i32, i32) {
    %c0_i32 = arith.constant 0 : i32
    %c0_i32_0 = arith.constant 0 : i32
    return %c0_i32, %arg0 : i32, i32
  }
  func.func @transform_1(%arg0: i32) -> (i32, i32) {
    %c0_i32 = arith.constant 0 : i32
    %c0_i32_0 = arith.constant 0 : i32
    %c0_i32_1 = arith.constant 0 : i32
    return %c0_i32, %c0_i32_0 : i32, i32
  }
  func.func @transform_2(%arg0: i32) -> (i32, i32, i32) {
    %c0_i32 = arith.constant 0 : i32
    %c0_i32_0 = arith.constant 0 : i32
    %c0_i32_1 = arith.constant 0 : i32
    return %c0_i32, %arg0, %c0_i32_0 : i32, i32, i32
  }
}

</mosaic_0001>

<llo_original>
// kernel: tpu_custom_call.1
$region0: #{tpu_custom_call.1}
  #allocation0 [shape = 'u32[]', space=smem, size = 0x4, offset = 0x4, fixed_abs, tag = 'smem constant byte address 0x4 - core index']
  #allocation1 [shape = 'u32[144,128]{1,0:T(1,128)}', space=vmem, size = 0x12000, scoped, tag = 'internal scratch']
  %s0 = inlined_call_operand.hbm [shape: f32[128,128], index: 0, kind: input, shape index: {}]
  %s1 = inlined_call_operand.hbm [shape: f32[16,128], index: 1, kind: input, shape index: {}]
  %s2 = inlined_call_operand.hbm [shape: f32[8,8,256], index: 2, kind: output, shape index: {}]
  %s3 = sld [smem:[#allocation0]]
  $region26: #{tpu_custom_call.1} parent=0
    _
  %s5 = ssub.s32 1, %s3
  %s6 = scalar_select 0, %s5, %s3
  $region1: #{tpu_custom_call.1} parent=0
    #allocation2 [shape = 'u8[65536]{0}', space=vmem, size = 0x10000, scoped, tag = 'input window, operand 0, single buffered']
    #allocation3 [shape = 's32[1]{0}', space=sflag, size = 0x4, scoped, tag = 'scoped memory for tpu_custom_call.1']
    #allocation4 [shape = 's32[1]{0}', space=sflag, size = 0x4, scoped, tag = 'scoped memory for tpu_custom_call.1']
    #allocation5 [shape = 'u8[8192]{0}', space=vmem, size = 0x2000, scoped, tag = 'input window, operand 1, single buffered']
    #allocation6 [shape = 's32[1]{0}', space=sflag, size = 0x4, scoped, tag = 'scoped memory for tpu_custom_call.1']
    #allocation7 [shape = 'u8[65536]{0}', space=vmem, size = 0x10000, scoped, tag = 'output window, operand 0, single buffered']
    %7 = vsyncpa [#allocation3], 0
    %8 = vsyncpa [#allocation6], 0
    %9 = vsyncpa [#allocation4], 0
    // Predicated region
    $region2: #{tpu_custom_call.1} parent=1 // pred_check
      _
    $region3: #{tpu_custom_call.1} parent=1 // pred_check_branch
      %11 = sbr.rel (0) target = $region5
    $region4: #{tpu_custom_call.1} parent=1 // pred_region
      %s13 = ssub.s32 2048, 2048
      %14 = vsyncadd [#allocation3], %s13
      %s15 = sshll.u32 [#allocation2], 4
      %s16 = int_to_ptr.vmem [resolvable:$true] %s15
      %21 = dma.hbm_to_vmem [thread:$0]  %s0, 2048, %s16, [#allocation3], 128, 128, 8
    $region5: #{tpu_custom_call.1} parent=1 // pred_fallthru
      _
    // Predicated region
    $region6: #{tpu_custom_call.1} parent=1 // pred_check
      _
    $region7: #{tpu_custom_call.1} parent=1 // pred_check_branch
      %23 = sbr.rel (0) target = $region9
    $region8: #{tpu_custom_call.1} parent=1 // pred_region
      %s25 = ssub.s32 256, 256
      %26 = vsyncadd [#allocation6], %s25
      %s27 = sshll.u32 [#allocation5], 4
      %s28 = int_to_ptr.vmem [resolvable:$true] %s27
      %33 = dma.hbm_to_vmem [thread:$0]  %s1, 256, %s28, [#allocation6], 128, 128, 8
    $region9: #{tpu_custom_call.1} parent=1 // pred_fallthru
      _
    // Predicated region
    $region10: #{tpu_custom_call.1} parent=1 // pred_check
      _
    $region11: #{tpu_custom_call.1} parent=1 // pred_check_branch
      %35 = sbr.rel (0) target = $region13
    $region12: #{tpu_custom_call.1} parent=1 // pred_region
      %36 = dma.done [#allocation3], 2048
    $region13: #{tpu_custom_call.1} parent=1 // pred_fallthru
      _
    // Predicated region
    $region14: #{tpu_custom_call.1} parent=1 // pred_check
      _
    $region15: #{tpu_custom_call.1} parent=1 // pred_check_branch
      %38 = sbr.rel (0) target = $region17
    $region16: #{tpu_custom_call.1} parent=1 // pred_region
      %39 = dma.done [#allocation6], 256
    $region17: #{tpu_custom_call.1} parent=1 // pred_fallthru
      _
    %v40 = vld [vmem:[#allocation5] sm:$0xff]
    %v41 = vld [vmem:[#allocation5 + $0x8] sm:$0xff]
    %v42 = vld [vmem:[#allocation2] sm:$0xff]
    %v43 = vld [vmem:[#allocation2 + $0x8] sm:$0xff]
    %v44 = vld [vmem:[#allocation2 + $0x10] sm:$0xff]
    %v45 = vld [vmem:[#allocation2 + $0x18] sm:$0xff]
    %v46 = vld [vmem:[#allocation2 + $0x20] sm:$0xff]
    %v47 = vld [vmem:[#allocation2 + $0x28] sm:$0xff]
    %v48 = vld [vmem:[#allocation2 + $0x30] sm:$0xff]
    %v49 = vld [vmem:[#allocation2 + $0x38] sm:$0xff]
    %v50 = vld [vmem:[#allocation2 + $0x40] sm:$0xff]
    %v51 = vld [vmem:[#allocation2 + $0x48] sm:$0xff]
    %v52 = vld [vmem:[#allocation2 + $0x50] sm:$0xff]
    %v53 = vld [vmem:[#allocation2 + $0x58] sm:$0xff]
    %v54 = vld [vmem:[#allocation2 + $0x60] sm:$0xff]
    %v55 = vld [vmem:[#allocation2 + $0x68] sm:$0xff]
    %v56 = vld [vmem:[#allocation2 + $0x70] sm:$0xff]
    %v57 = vld [vmem:[#allocation2 + $0x78] sm:$0xff]
    %58 = vmatprep.subr.mxu0 0.0
    %59 = vmatpush1.msra.mxu0 %v42
    %60 = vmatprep.subr.mxu0 0.0
    %61 = vmatpush1.msra.mxu0 %v43
    %62 = vmatprep.subr.mxu0 0.0
    %63 = vmatpush1.msra.mxu0 %v44
    %64 = vmatprep.subr.mxu0 0.0
    %65 = vmatpush1.msra.mxu0 %v45
    %66 = vmatprep.subr.mxu0 0.0
    %67 = vmatpush1.msra.mxu0 %v46
    %68 = vmatprep.subr.mxu0 0.0
    %69 = vmatpush1.msra.mxu0 %v47
    %70 = vmatprep.subr.mxu0 0.0
    %71 = vmatpush1.msra.mxu0 %v48
    %72 = vmatprep.subr.mxu0 0.0
    %73 = vmatpush1.msra.mxu0 %v49
    %74 = vmatprep.subr.mxu0 0.0
    %75 = vmatpush1.msra.mxu0 %v50
    %76 = vmatprep.subr.mxu0 0.0
    %77 = vmatpush1.msra.mxu0 %v51
    %78 = vmatprep.subr.mxu0 0.0
    %79 = vmatpush1.msra.mxu0 %v52
    %80 = vmatprep.subr.mxu0 0.0
    %81 = vmatpush1.msra.mxu0 %v53
    %82 = vmatprep.subr.mxu0 0.0
    %83 = vmatpush1.msra.mxu0 %v54
    %84 = vmatprep.subr.mxu0 0.0
    %85 = vmatpush1.msra.mxu0 %v55
    %86 = vmatprep.subr.mxu0 0.0
    %87 = vmatpush1.msra.mxu0 %v56
    %88 = vmatprep.subr.mxu0 0.0
    %89 = vmatpush1.msra.mxu0 %v57
    %90 = vmatprep.subr.mxu0 0.0
    %91 = vmatpush1.msra.mxu0 0.0
    %92 = vmatprep.subr.mxu0 0.0
    %93 = vmatpush1.msra.mxu0 0.0
    %94 = vmatprep.subr.mxu0 0.0
    %95 = vmatpush1.msra.mxu0 0.0
    %96 = vmatprep.subr.mxu0 0.0
    %97 = vmatpush1.msra.mxu0 0.0
    %98 = vmatprep.subr.mxu0 0.0
    %99 = vmatpush1.msra.mxu0 0.0
    %100 = vmatprep.subr.mxu0 0.0
    %101 = vmatpush1.msra.mxu0 0.0
    %102 = vmatprep.subr.mxu0 0.0
    %103 = vmatpush1.msra.mxu0 0.0
    %104 = vmatprep.subr.mxu0 0.0
    %105 = vmatpush1.msra.mxu0 0.0
    %106 = vmatprep.subr.mxu0 0.0
    %107 = vmatpush1.msra.mxu0 0.0
    %108 = vmatprep.subr.mxu0 0.0
    %109 = vmatpush1.msra.mxu0 0.0
    %110 = vmatprep.subr.mxu0 0.0
    %111 = vmatpush1.msra.mxu0 0.0
    %112 = vmatprep.subr.mxu0 0.0
    %113 = vmatpush1.msra.mxu0 0.0
    %114 = vmatprep.subr.mxu0 0.0
    %115 = vmatpush1.msra.mxu0 0.0
    %116 = vmatprep.subr.mxu0 0.0
    %117 = vmatpush1.msra.mxu0 0.0
    %118 = vmatprep.subr.mxu0 0.0
    %119 = vmatpush1.msra.mxu0 0.0
    %120 = vmatprep.subr.mxu0 0.0
    %121 = vmatpush1.msra.mxu0 0.0
    %122 = vmatprep.mubr.f32.mxu0 0.0
    %123 = vmatmul.mubr.f32.gmra.mrb[0].mxu0 %v40
    %v124 = vpop.f32.mrb[0].mxu0
    %v125 = vadd.f32 0.0, %v124
    %v126 = vpop.f32.mrb[0].mxu0
    %127 = vmatprep.mubr.f32.mxu0 0.0
    %128 = vmatmul.mubr.f32.gmra.mrb[0].mxu0 %v41
    %v129 = vpop.f32.mrb[0].mxu0
    %v130 = vadd.f32 0.0, %v129
    %v131 = vpop.f32.mrb[0].mxu0
    %132 = vdwg.mxu0
    %135 = vrot.lane.b32.xlu0 %v125, 112
    %v136 = vpop.permute.xlu0 %135
    %137 = vrot.lane.b32.xlu0 %v130, 112
    %v138 = vpop.permute.xlu0 %137
    %141 = vrot.lane.b32.xlu0 %v125, 96
    %v142 = vpop.permute.xlu0 %141
    %143 = vrot.lane.b32.xlu0 %v130, 96
    %v144 = vpop.permute.xlu0 %143
    %147 = vrot.lane.b32.xlu0 %v125, 80
    %v148 = vpop.permute.xlu0 %147
    %149 = vrot.lane.b32.xlu0 %v130, 80
    %v150 = vpop.permute.xlu0 %149
    %153 = vrot.lane.b32.xlu0 %v125, 64
    %v154 = vpop.permute.xlu0 %153
    %155 = vrot.lane.b32.xlu0 %v130, 64
    %v156 = vpop.permute.xlu0 %155
    %159 = vrot.lane.b32.xlu0 %v125, 48
    %v160 = vpop.permute.xlu0 %159
    %161 = vrot.lane.b32.xlu0 %v130, 48
    %v162 = vpop.permute.xlu0 %161
    %165 = vrot.lane.b32.xlu0 %v125, 32
    %v166 = vpop.permute.xlu0 %165
    %167 = vrot.lane.b32.xlu0 %v130, 32
    %v168 = vpop.permute.xlu0 %167
    %171 = vrot.lane.b32.xlu0 %v125, 16
    %v172 = vpop.permute.xlu0 %171
    %173 = vrot.lane.b32.xlu0 %v130, 16
    %v174 = vpop.permute.xlu0 %173
    %v177 = vcombine.low %v125, %v142
    %v178 = vcombine.high %v125, %v142
    %v180 = vunpack.c.l.s4 1983009808
    %v181 = vunpack.c.0.s8 %v180
    %v182 = vlaneseq
    %v183 = vshrl.u32 %v182, 7
    %v184 = vsub.s32 %v181, %v183
    %v185 = vrot.slane %v177, %v184
    %v187 = vunpack.c.l.s4 1983009808
    %v188 = vunpack.c.0.s8 %v187
    %v189 = vlaneseq
    %v190 = vshrl.u32 %v189, 7
    %v191 = vsub.s32 %v188, %v190
    %v192 = vrot.slane %v178, %v191
    %v193 = vcombine.low %v136, %v148
    %v194 = vcombine.high %v136, %v148
    %v196 = vunpack.c.l.s4 1983009808
    %v197 = vunpack.c.0.s8 %v196
    %v198 = vlaneseq
    %v199 = vshrl.u32 %v198, 7
    %v200 = vsub.s32 %v197, %v199
    %v201 = vrot.slane %v193, %v200
    %v203 = vunpack.c.l.s4 1983009808
    %v204 = vunpack.c.0.s8 %v203
    %v205 = vlaneseq
    %v206 = vshrl.u32 %v205, 7
    %v207 = vsub.s32 %v204, %v206
    %v208 = vrot.slane %v194, %v207
    %v209 = vcombine.low %v154, %v166
    %v210 = vcombine.high %v154, %v166
    %v212 = vunpack.c.l.s4 1983009808
    %v213 = vunpack.c.0.s8 %v212
    %v214 = vlaneseq
    %v215 = vshrl.u32 %v214, 7
    %v216 = vsub.s32 %v213, %v215
    %v217 = vrot.slane %v209, %v216
    %v219 = vunpack.c.l.s4 1983009808
    %v220 = vunpack.c.0.s8 %v219
    %v221 = vlaneseq
    %v222 = vshrl.u32 %v221, 7
    %v223 = vsub.s32 %v220, %v222
    %v224 = vrot.slane %v210, %v223
    %v225 = vcombine.low %v160, %v172
    %v226 = vcombine.high %v160, %v172
    %v228 = vunpack.c.l.s4 1983009808
    %v229 = vunpack.c.0.s8 %v228
    %v230 = vlaneseq
    %v231 = vshrl.u32 %v230, 7
    %v232 = vsub.s32 %v229, %v231
    %v233 = vrot.slane %v225, %v232
    %v235 = vunpack.c.l.s4 1983009808
    %v236 = vunpack.c.0.s8 %v235
    %v237 = vlaneseq
    %v238 = vshrl.u32 %v237, 7
    %v239 = vsub.s32 %v236, %v238
    %v240 = vrot.slane %v226, %v239
    %v241 = vcombine.low %v185, %v201
    %v242 = vcombine.high %v185, %v201
    %v244 = vunpack.c.l.s4 1934713408
    %v245 = vunpack.c.0.s8 %v244
    %v246 = vlaneseq
    %v247 = vshrl.u32 %v246, 7
    %v248 = vsub.s32 %v245, %v247
    %v249 = vrot.slane %v241, %v248
    %v251 = vunpack.c.l.s4 1934713408
    %v252 = vunpack.c.0.s8 %v251
    %v253 = vlaneseq
    %v254 = vshrl.u32 %v253, 7
    %v255 = vsub.s32 %v252, %v254
    %v256 = vrot.slane %v242, %v255
    %v257 = vcombine.low %v192, %v208
    %v258 = vcombine.high %v192, %v208
    %v260 = vunpack.c.l.s4 1934713408
    %v261 = vunpack.c.0.s8 %v260
    %v262 = vlaneseq
    %v263 = vshrl.u32 %v262, 7
    %v264 = vsub.s32 %v261, %v263
    %v265 = vrot.slane %v257, %v264
    %v267 = vunpack.c.l.s4 1934713408
    %v268 = vunpack.c.0.s8 %v267
    %v269 = vlaneseq
    %v270 = vshrl.u32 %v269, 7
    %v271 = vsub.s32 %v268, %v270
    %v272 = vrot.slane %v258, %v271
    %v273 = vcombine.low %v217, %v233
    %v274 = vcombine.high %v217, %v233
    %v276 = vunpack.c.l.s4 1934713408
    %v277 = vunpack.c.0.s8 %v276
    %v278 = vlaneseq
    %v279 = vshrl.u32 %v278, 7
    %v280 = vsub.s32 %v277, %v279
    %v281 = vrot.slane %v273, %v280
    %v283 = vunpack.c.l.s4 1934713408
    %v284 = vunpack.c.0.s8 %v283
    %v285 = vlaneseq
    %v286 = vshrl.u32 %v285, 7
    %v287 = vsub.s32 %v284, %v286
    %v288 = vrot.slane %v274, %v287
    %v289 = vcombine.low %v224, %v240
    %v290 = vcombine.high %v224, %v240
    %v292 = vunpack.c.l.s4 1934713408
    %v293 = vunpack.c.0.s8 %v292
    %v294 = vlaneseq
    %v295 = vshrl.u32 %v294, 7
    %v296 = vsub.s32 %v293, %v295
    %v297 = vrot.slane %v289, %v296
    %v299 = vunpack.c.l.s4 1934713408
    %v300 = vunpack.c.0.s8 %v299
    %v301 = vlaneseq
    %v302 = vshrl.u32 %v301, 7
    %v303 = vsub.s32 %v300, %v302
    %v304 = vrot.slane %v290, %v303
    %v305 = vcombine.low %v249, %v281
    %v306 = vcombine.high %v249, %v281
    %v307 = vcombine.low %v256, %v288
    %v308 = vcombine.high %v256, %v288
    %v309 = vcombine.low %v265, %v297
    %v310 = vcombine.high %v265, %v297
    %v311 = vcombine.low %v272, %v304
    %v312 = vcombine.high %v272, %v304
    %v313 = vcombine.low %v130, %v144
    %v314 = vcombine.high %v130, %v144
    %v316 = vunpack.c.l.s4 1983009808
    %v317 = vunpack.c.0.s8 %v316
    %v318 = vlaneseq
    %v319 = vshrl.u32 %v318, 7
    %v320 = vsub.s32 %v317, %v319
    %v321 = vrot.slane %v313, %v320
    %v323 = vunpack.c.l.s4 1983009808
    %v324 = vunpack.c.0.s8 %v323
    %v325 = vlaneseq
    %v326 = vshrl.u32 %v325, 7
    %v327 = vsub.s32 %v324, %v326
    %v328 = vrot.slane %v314, %v327
    %v329 = vcombine.low %v138, %v150
    %v330 = vcombine.high %v138, %v150
    %v332 = vunpack.c.l.s4 1983009808
    %v333 = vunpack.c.0.s8 %v332
    %v334 = vlaneseq
    %v335 = vshrl.u32 %v334, 7
    %v336 = vsub.s32 %v333, %v335
    %v337 = vrot.slane %v329, %v336
    %v339 = vunpack.c.l.s4 1983009808
    %v340 = vunpack.c.0.s8 %v339
    %v341 = vlaneseq
    %v342 = vshrl.u32 %v341, 7
    %v343 = vsub.s32 %v340, %v342
    %v344 = vrot.slane %v330, %v343
    %v345 = vcombine.low %v156, %v168
    %v346 = vcombine.high %v156, %v168
    %v348 = vunpack.c.l.s4 1983009808
    %v349 = vunpack.c.0.s8 %v348
    %v350 = vlaneseq
    %v351 = vshrl.u32 %v350, 7
    %v352 = vsub.s32 %v349, %v351
    %v353 = vrot.slane %v345, %v352
    %v355 = vunpack.c.l.s4 1983009808
    %v356 = vunpack.c.0.s8 %v355
    %v357 = vlaneseq
    %v358 = vshrl.u32 %v357, 7
    %v359 = vsub.s32 %v356, %v358
    %v360 = vrot.slane %v346, %v359
    %v361 = vcombine.low %v162, %v174
    %v362 = vcombine.high %v162, %v174
    %v364 = vunpack.c.l.s4 1983009808
    %v365 = vunpack.c.0.s8 %v364
    %v366 = vlaneseq
    %v367 = vshrl.u32 %v366, 7
    %v368 = vsub.s32 %v365, %v367
    %v369 = vrot.slane %v361, %v368
    %v371 = vunpack.c.l.s4 1983009808
    %v372 = vunpack.c.0.s8 %v371
    %v373 = vlaneseq
    %v374 = vshrl.u32 %v373, 7
    %v375 = vsub.s32 %v372, %v374
    %v376 = vrot.slane %v362, %v375
    %v377 = vcombine.low %v321, %v337
    %v378 = vcombine.high %v321, %v337
    %v380 = vunpack.c.l.s4 1934713408
    %v381 = vunpack.c.0.s8 %v380
    %v382 = vlaneseq
    %v383 = vshrl.u32 %v382, 7
    %v384 = vsub.s32 %v381, %v383
    %v385 = vrot.slane %v377, %v384
    %v387 = vunpack.c.l.s4 1934713408
    %v388 = vunpack.c.0.s8 %v387
    %v389 = vlaneseq
    %v390 = vshrl.u32 %v389, 7
    %v391 = vsub.s32 %v388, %v390
    %v392 = vrot.slane %v378, %v391
    %v393 = vcombine.low %v328, %v344
    %v394 = vcombine.high %v328, %v344
    %v396 = vunpack.c.l.s4 1934713408
    %v397 = vunpack.c.0.s8 %v396
    %v398 = vlaneseq
    %v399 = vshrl.u32 %v398, 7
    %v400 = vsub.s32 %v397, %v399
    %v401 = vrot.slane %v393, %v400
    %v403 = vunpack.c.l.s4 1934713408
    %v404 = vunpack.c.0.s8 %v403
    %v405 = vlaneseq
    %v406 = vshrl.u32 %v405, 7
    %v407 = vsub.s32 %v404, %v406
    %v408 = vrot.slane %v394, %v407
    %v409 = vcombine.low %v353, %v369
    %v410 = vcombine.high %v353, %v369
    %v412 = vunpack.c.l.s4 1934713408
    %v413 = vunpack.c.0.s8 %v412
    %v414 = vlaneseq
    %v415 = vshrl.u32 %v414, 7
    %v416 = vsub.s32 %v413, %v415
    %v417 = vrot.slane %v409, %v416
    %v419 = vunpack.c.l.s4 1934713408
    %v420 = vunpack.c.0.s8 %v419
    %v421 = vlaneseq
    %v422 = vshrl.u32 %v421, 7
    %v423 = vsub.s32 %v420, %v422
    %v424 = vrot.slane %v410, %v423
    %v425 = vcombine.low %v360, %v376
    %v426 = vcombine.high %v360, %v376
    %v428 = vunpack.c.l.s4 1934713408
    %v429 = vunpack.c.0.s8 %v428
    %v430 = vlaneseq
    %v431 = vshrl.u32 %v430, 7
    %v432 = vsub.s32 %v429, %v431
    %v433 = vrot.slane %v425, %v432
    %v435 = vunpack.c.l.s4 1934713408
    %v436 = vunpack.c.0.s8 %v435
    %v437 = vlaneseq
    %v438 = vshrl.u32 %v437, 7
    %v439 = vsub.s32 %v436, %v438
    %v440 = vrot.slane %v426, %v439
    %v441 = vcombine.low %v385, %v417
    %v442 = vcombine.high %v385, %v417
    %v443 = vcombine.low %v392, %v424
    %v444 = vcombine.high %v392, %v424
    %v445 = vcombine.low %v401, %v433
    %v446 = vcombine.high %v401, %v433
    %v447 = vcombine.low %v408, %v440
    %v448 = vcombine.high %v408, %v440
    %v449 = vlaneseq
    %v450 = vshrl.u32 %v449, 7
    %v451 = vsub.s32 0, %v450
    %v452 = vrot.slane %v305, %v451
    %454 = vbcast.lane.b32.xlu0 %v452, 256
    %v455 = vpop.permute.xlu0 %454
    %s457 = sor.u32 256, 8
    %458 = vbcast.lane.b32.xlu0 %v452, %s457
    %v459 = vpop.permute.xlu0 %458
    %v460 = vlaneseq
    %v461 = vshrl.u32 %v460, 7
    %v462 = vsub.s32 1, %v461
    %v463 = vrot.slane %v305, %v462
    %465 = vbcast.lane.b32.xlu0 %v463, 256
    %v466 = vpop.permute.xlu0 %465
    %s468 = sor.u32 256, 8
    %469 = vbcast.lane.b32.xlu0 %v463, %s468
    %v470 = vpop.permute.xlu0 %469
    %v471 = vlaneseq
    %v472 = vshrl.u32 %v471, 7
    %v473 = vsub.s32 2, %v472
    %v474 = vrot.slane %v305, %v473
    %476 = vbcast.lane.b32.xlu0 %v474, 256
    %v477 = vpop.permute.xlu0 %476
    %s479 = sor.u32 256, 8
    %480 = vbcast.lane.b32.xlu0 %v474, %s479
    %v481 = vpop.permute.xlu0 %480
    %v482 = vlaneseq
    %v483 = vshrl.u32 %v482, 7
    %v484 = vsub.s32 3, %v483
    %v485 = vrot.slane %v305, %v484
    %487 = vbcast.lane.b32.xlu0 %v485, 256
    %v488 = vpop.permute.xlu0 %487
    %s490 = sor.u32 256, 8
    %491 = vbcast.lane.b32.xlu0 %v485, %s490
    %v492 = vpop.permute.xlu0 %491
    %v493 = vlaneseq
    %v494 = vshrl.u32 %v493, 7
    %v495 = vsub.s32 4, %v494
    %v496 = vrot.slane %v305, %v495
    %498 = vbcast.lane.b32.xlu0 %v496, 256
    %v499 = vpop.permute.xlu0 %498
    %s501 = sor.u32 256, 8
    %502 = vbcast.lane.b32.xlu0 %v496, %s501
    %v503 = vpop.permute.xlu0 %502
    %v504 = vlaneseq
    %v505 = vshrl.u32 %v504, 7
    %v506 = vsub.s32 5, %v505
    %v507 = vrot.slane %v305, %v506
    %509 = vbcast.lane.b32.xlu0 %v507, 256
    %v510 = vpop.permute.xlu0 %509
    %s512 = sor.u32 256, 8
    %513 = vbcast.lane.b32.xlu0 %v507, %s512
    %v514 = vpop.permute.xlu0 %513
    %v515 = vlaneseq
    %v516 = vshrl.u32 %v515, 7
    %v517 = vsub.s32 6, %v516
    %v518 = vrot.slane %v305, %v517
    %520 = vbcast.lane.b32.xlu0 %v518, 256
    %v521 = vpop.permute.xlu0 %520
    %s523 = sor.u32 256, 8
    %524 = vbcast.lane.b32.xlu0 %v518, %s523
    %v525 = vpop.permute.xlu0 %524
    %v526 = vlaneseq
    %v527 = vshrl.u32 %v526, 7
    %v528 = vsub.s32 7, %v527
    %v529 = vrot.slane %v305, %v528
    %531 = vbcast.lane.b32.xlu0 %v529, 256
    %v532 = vpop.permute.xlu0 %531
    %s534 = sor.u32 256, 8
    %535 = vbcast.lane.b32.xlu0 %v529, %s534
    %v536 = vpop.permute.xlu0 %535
    %v537 = vlaneseq
    %v538 = vshrl.u32 %v537, 7
    %v539 = vsub.s32 0, %v538
    %v540 = vrot.slane %v306, %v539
    %542 = vbcast.lane.b32.xlu0 %v540, 256
    %v543 = vpop.permute.xlu0 %542
    %s545 = sor.u32 256, 8
    %546 = vbcast.lane.b32.xlu0 %v540, %s545
    %v547 = vpop.permute.xlu0 %546
    %v548 = vlaneseq
    %v549 = vshrl.u32 %v548, 7
    %v550 = vsub.s32 1, %v549
    %v551 = vrot.slane %v306, %v550
    %553 = vbcast.lane.b32.xlu0 %v551, 256
    %v554 = vpop.permute.xlu0 %553
    %s556 = sor.u32 256, 8
    %557 = vbcast.lane.b32.xlu0 %v551, %s556
    %v558 = vpop.permute.xlu0 %557
    %v559 = vlaneseq
    %v560 = vshrl.u32 %v559, 7
    %v561 = vsub.s32 2, %v560
    %v562 = vrot.slane %v306, %v561
    %564 = vbcast.lane.b32.xlu0 %v562, 256
    %v565 = vpop.permute.xlu0 %564
    %s567 = sor.u32 256, 8
    %568 = vbcast.lane.b32.xlu0 %v562, %s567
    %v569 = vpop.permute.xlu0 %568
    %v570 = vlaneseq
    %v571 = vshrl.u32 %v570, 7
    %v572 = vsub.s32 3, %v571
    %v573 = vrot.slane %v306, %v572
    %575 = vbcast.lane.b32.xlu0 %v573, 256
    %v576 = vpop.permute.xlu0 %575
    %s578 = sor.u32 256, 8
    %579 = vbcast.lane.b32.xlu0 %v573, %s578
    %v580 = vpop.permute.xlu0 %579
    %v581 = vlaneseq
    %v582 = vshrl.u32 %v581, 7
    %v583 = vsub.s32 4, %v582
    %v584 = vrot.slane %v306, %v583
    %586 = vbcast.lane.b32.xlu0 %v584, 256
    %v587 = vpop.permute.xlu0 %586
    %s589 = sor.u32 256, 8
    %590 = vbcast.lane.b32.xlu0 %v584, %s589
    %v591 = vpop.permute.xlu0 %590
    %v592 = vlaneseq
    %v593 = vshrl.u32 %v592, 7
    %v594 = vsub.s32 5, %v593
    %v595 = vrot.slane %v306, %v594
    %597 = vbcast.lane.b32.xlu0 %v595, 256
    %v598 = vpop.permute.xlu0 %597
    %s600 = sor.u32 256, 8
    %601 = vbcast.lane.b32.xlu0 %v595, %s600
    %v602 = vpop.permute.xlu0 %601
    %v603 = vlaneseq
    %v604 = vshrl.u32 %v603, 7
    %v605 = vsub.s32 6, %v604
    %v606 = vrot.slane %v306, %v605
    %608 = vbcast.lane.b32.xlu0 %v606, 256
    %v609 = vpop.permute.xlu0 %608
    %s611 = sor.u32 256, 8
    %612 = vbcast.lane.b32.xlu0 %v606, %s611
    %v613 = vpop.permute.xlu0 %612
    %v614 = vlaneseq
    %v615 = vshrl.u32 %v614, 7
    %v616 = vsub.s32 7, %v615
    %v617 = vrot.slane %v306, %v616
    %619 = vbcast.lane.b32.xlu0 %v617, 256
    %v620 = vpop.permute.xlu0 %619
    %s622 = sor.u32 256, 8
    %623 = vbcast.lane.b32.xlu0 %v617, %s622
    %v624 = vpop.permute.xlu0 %623
    %v625 = vlaneseq
    %v626 = vshrl.u32 %v625, 7
    %v627 = vsub.s32 0, %v626
    %v628 = vrot.slane %v307, %v627
    %630 = vbcast.lane.b32.xlu0 %v628, 256
    %v631 = vpop.permute.xlu0 %630
    %s633 = sor.u32 256, 8
    %634 = vbcast.lane.b32.xlu0 %v628, %s633
    %v635 = vpop.permute.xlu0 %634
    %v636 = vlaneseq
    %v637 = vshrl.u32 %v636, 7
    %v638 = vsub.s32 1, %v637
    %v639 = vrot.slane %v307, %v638
    %641 = vbcast.lane.b32.xlu0 %v639, 256
    %v642 = vpop.permute.xlu0 %641
    %s644 = sor.u32 256, 8
    %645 = vbcast.lane.b32.xlu0 %v639, %s644
    %v646 = vpop.permute.xlu0 %645
    %v647 = vlaneseq
    %v648 = vshrl.u32 %v647, 7
    %v649 = vsub.s32 2, %v648
    %v650 = vrot.slane %v307, %v649
    %652 = vbcast.lane.b32.xlu0 %v650, 256
    %v653 = vpop.permute.xlu0 %652
    %s655 = sor.u32 256, 8
    %656 = vbcast.lane.b32.xlu0 %v650, %s655
    %v657 = vpop.permute.xlu0 %656
    %v658 = vlaneseq
    %v659 = vshrl.u32 %v658, 7
    %v660 = vsub.s32 3, %v659
    %v661 = vrot.slane %v307, %v660
    %663 = vbcast.lane.b32.xlu0 %v661, 256
    %v664 = vpop.permute.xlu0 %663
    %s666 = sor.u32 256, 8
    %667 = vbcast.lane.b32.xlu0 %v661, %s666
    %v668 = vpop.permute.xlu0 %667
    %v669 = vlaneseq
    %v670 = vshrl.u32 %v669, 7
    %v671 = vsub.s32 4, %v670
    %v672 = vrot.slane %v307, %v671
    %674 = vbcast.lane.b32.xlu0 %v672, 256
    %v675 = vpop.permute.xlu0 %674
    %s677 = sor.u32 256, 8
    %678 = vbcast.lane.b32.xlu0 %v672, %s677
    %v679 = vpop.permute.xlu0 %678
    %v680 = vlaneseq
    %v681 = vshrl.u32 %v680, 7
    %v682 = vsub.s32 5, %v681
    %v683 = vrot.slane %v307, %v682
    %685 = vbcast.lane.b32.xlu0 %v683, 256
    %v686 = vpop.permute.xlu0 %685
    %s688 = sor.u32 256, 8
    %689 = vbcast.lane.b32.xlu0 %v683, %s688
    %v690 = vpop.permute.xlu0 %689
    %v691 = vlaneseq
    %v692 = vshrl.u32 %v691, 7
    %v693 = vsub.s32 6, %v692
    %v694 = vrot.slane %v307, %v693
    %696 = vbcast.lane.b32.xlu0 %v694, 256
    %v697 = vpop.permute.xlu0 %696
    %s699 = sor.u32 256, 8
    %700 = vbcast.lane.b32.xlu0 %v694, %s699
    %v701 = vpop.permute.xlu0 %700
    %v702 = vlaneseq
    %v703 = vshrl.u32 %v702, 7
    %v704 = vsub.s32 7, %v703
    %v705 = vrot.slane %v307, %v704
    %707 = vbcast.lane.b32.xlu0 %v705, 256
    %v708 = vpop.permute.xlu0 %707
    %s710 = sor.u32 256, 8
    %711 = vbcast.lane.b32.xlu0 %v705, %s710
    %v712 = vpop.permute.xlu0 %711
    %v713 = vlaneseq
    %v714 = vshrl.u32 %v713, 7
    %v715 = vsub.s32 0, %v714
    %v716 = vrot.slane %v308, %v715
    %718 = vbcast.lane.b32.xlu0 %v716, 256
    %v719 = vpop.permute.xlu0 %718
    %s721 = sor.u32 256, 8
    %722 = vbcast.lane.b32.xlu0 %v716, %s721
    %v723 = vpop.permute.xlu0 %722
    %v724 = vlaneseq
    %v725 = vshrl.u32 %v724, 7
    %v726 = vsub.s32 1, %v725
    %v727 = vrot.slane %v308, %v726
    %729 = vbcast.lane.b32.xlu0 %v727, 256
    %v730 = vpop.permute.xlu0 %729
    %s732 = sor.u32 256, 8
    %733 = vbcast.lane.b32.xlu0 %v727, %s732
    %v734 = vpop.permute.xlu0 %733
    %v735 = vlaneseq
    %v736 = vshrl.u32 %v735, 7
    %v737 = vsub.s32 2, %v736
    %v738 = vrot.slane %v308, %v737
    %740 = vbcast.lane.b32.xlu0 %v738, 256
    %v741 = vpop.permute.xlu0 %740
    %s743 = sor.u32 256, 8
    %744 = vbcast.lane.b32.xlu0 %v738, %s743
    %v745 = vpop.permute.xlu0 %744
    %v746 = vlaneseq
    %v747 = vshrl.u32 %v746, 7
    %v748 = vsub.s32 3, %v747
    %v749 = vrot.slane %v308, %v748
    %751 = vbcast.lane.b32.xlu0 %v749, 256
    %v752 = vpop.permute.xlu0 %751
    %s754 = sor.u32 256, 8
    %755 = vbcast.lane.b32.xlu0 %v749, %s754
    %v756 = vpop.permute.xlu0 %755
    %v757 = vlaneseq
    %v758 = vshrl.u32 %v757, 7
    %v759 = vsub.s32 4, %v758
    %v760 = vrot.slane %v308, %v759
    %762 = vbcast.lane.b32.xlu0 %v760, 256
    %v763 = vpop.permute.xlu0 %762
    %s765 = sor.u32 256, 8
    %766 = vbcast.lane.b32.xlu0 %v760, %s765
    %v767 = vpop.permute.xlu0 %766
    %v768 = vlaneseq
    %v769 = vshrl.u32 %v768, 7
    %v770 = vsub.s32 5, %v769
    %v771 = vrot.slane %v308, %v770
    %773 = vbcast.lane.b32.xlu0 %v771, 256
    %v774 = vpop.permute.xlu0 %773
    %s776 = sor.u32 256, 8
    %777 = vbcast.lane.b32.xlu0 %v771, %s776
    %v778 = vpop.permute.xlu0 %777
    %v779 = vlaneseq
    %v780 = vshrl.u32 %v779, 7
    %v781 = vsub.s32 6, %v780
    %v782 = vrot.slane %v308, %v781
    %784 = vbcast.lane.b32.xlu0 %v782, 256
    %v785 = vpop.permute.xlu0 %784
    %s787 = sor.u32 256, 8
    %788 = vbcast.lane.b32.xlu0 %v782, %s787
    %v789 = vpop.permute.xlu0 %788
    %v790 = vlaneseq
    %v791 = vshrl.u32 %v790, 7
    %v792 = vsub.s32 7, %v791
    %v793 = vrot.slane %v308, %v792
    %795 = vbcast.lane.b32.xlu0 %v793, 256
    %v796 = vpop.permute.xlu0 %795
    %s798 = sor.u32 256, 8
    %799 = vbcast.lane.b32.xlu0 %v793, %s798
    %v800 = vpop.permute.xlu0 %799
    %v801 = vlaneseq
    %v802 = vshrl.u32 %v801, 7
    %v803 = vsub.s32 0, %v802
    %v804 = vrot.slane %v309, %v803
    %806 = vbcast.lane.b32.xlu0 %v804, 256
    %v807 = vpop.permute.xlu0 %806
    %s809 = sor.u32 256, 8
    %810 = vbcast.lane.b32.xlu0 %v804, %s809
    %v811 = vpop.permute.xlu0 %810
    %v812 = vlaneseq
    %v813 = vshrl.u32 %v812, 7
    %v814 = vsub.s32 1, %v813
    %v815 = vrot.slane %v309, %v814
    %817 = vbcast.lane.b32.xlu0 %v815, 256
    %v818 = vpop.permute.xlu0 %817
    %s820 = sor.u32 256, 8
    %821 = vbcast.lane.b32.xlu0 %v815, %s820
    %v822 = vpop.permute.xlu0 %821
    %v823 = vlaneseq
    %v824 = vshrl.u32 %v823, 7
    %v825 = vsub.s32 2, %v824
    %v826 = vrot.slane %v309, %v825
    %828 = vbcast.lane.b32.xlu0 %v826, 256
    %v829 = vpop.permute.xlu0 %828
    %s831 = sor.u32 256, 8
    %832 = vbcast.lane.b32.xlu0 %v826, %s831
    %v833 = vpop.permute.xlu0 %832
    %v834 = vlaneseq
    %v835 = vshrl.u32 %v834, 7
    %v836 = vsub.s32 3, %v835
    %v837 = vrot.slane %v309, %v836
    %839 = vbcast.lane.b32.xlu0 %v837, 256
    %v840 = vpop.permute.xlu0 %839
    %s842 = sor.u32 256, 8
    %843 = vbcast.lane.b32.xlu0 %v837, %s842
    %v844 = vpop.permute.xlu0 %843
    %v845 = vlaneseq
    %v846 = vshrl.u32 %v845, 7
    %v847 = vsub.s32 4, %v846
    %v848 = vrot.slane %v309, %v847
    %850 = vbcast.lane.b32.xlu0 %v848, 256
    %v851 = vpop.permute.xlu0 %850
    %s853 = sor.u32 256, 8
    %854 = vbcast.lane.b32.xlu0 %v848, %s853
    %v855 = vpop.permute.xlu0 %854
    %v856 = vlaneseq
    %v857 = vshrl.u32 %v856, 7
    %v858 = vsub.s32 5, %v857
    %v859 = vrot.slane %v309, %v858
    %861 = vbcast.lane.b32.xlu0 %v859, 256
    %v862 = vpop.permute.xlu0 %861
    %s864 = sor.u32 256, 8
    %865 = vbcast.lane.b32.xlu0 %v859, %s864
    %v866 = vpop.permute.xlu0 %865
    %v867 = vlaneseq
    %v868 = vshrl.u32 %v867, 7
    %v869 = vsub.s32 6, %v868
    %v870 = vrot.slane %v309, %v869
    %872 = vbcast.lane.b32.xlu0 %v870, 256
    %v873 = vpop.permute.xlu0 %872
    %s875 = sor.u32 256, 8
    %876 = vbcast.lane.b32.xlu0 %v870, %s875
    %v877 = vpop.permute.xlu0 %876
    %v878 = vlaneseq
    %v879 = vshrl.u32 %v878, 7
    %v880 = vsub.s32 7, %v879
    %v881 = vrot.slane %v309, %v880
    %883 = vbcast.lane.b32.xlu0 %v881, 256
    %v884 = vpop.permute.xlu0 %883
    %s886 = sor.u32 256, 8
    %887 = vbcast.lane.b32.xlu0 %v881, %s886
    %v888 = vpop.permute.xlu0 %887
    %v889 = vlaneseq
    %v890 = vshrl.u32 %v889, 7
    %v891 = vsub.s32 0, %v890
    %v892 = vrot.slane %v310, %v891
    %894 = vbcast.lane.b32.xlu0 %v892, 256
    %v895 = vpop.permute.xlu0 %894
    %s897 = sor.u32 256, 8
    %898 = vbcast.lane.b32.xlu0 %v892, %s897
    %v899 = vpop.permute.xlu0 %898
    %v900 = vlaneseq
    %v901 = vshrl.u32 %v900, 7
    %v902 = vsub.s32 1, %v901
    %v903 = vrot.slane %v310, %v902
    %905 = vbcast.lane.b32.xlu0 %v903, 256
    %v906 = vpop.permute.xlu0 %905
    %s908 = sor.u32 256, 8
    %909 = vbcast.lane.b32.xlu0 %v903, %s908
    %v910 = vpop.permute.xlu0 %909
    %v911 = vlaneseq
    %v912 = vshrl.u32 %v911, 7
    %v913 = vsub.s32 2, %v912
    %v914 = vrot.slane %v310, %v913
    %916 = vbcast.lane.b32.xlu0 %v914, 256
    %v917 = vpop.permute.xlu0 %916
    %s919 = sor.u32 256, 8
    %920 = vbcast.lane.b32.xlu0 %v914, %s919
    %v921 = vpop.permute.xlu0 %920
    %v922 = vlaneseq
    %v923 = vshrl.u32 %v922, 7
    %v924 = vsub.s32 3, %v923
    %v925 = vrot.slane %v310, %v924
    %927 = vbcast.lane.b32.xlu0 %v925, 256
    %v928 = vpop.permute.xlu0 %927
    %s930 = sor.u32 256, 8
    %931 = vbcast.lane.b32.xlu0 %v925, %s930
    %v932 = vpop.permute.xlu0 %931
    %v933 = vlaneseq
    %v934 = vshrl.u32 %v933, 7
    %v935 = vsub.s32 4, %v934
    %v936 = vrot.slane %v310, %v935
    %938 = vbcast.lane.b32.xlu0 %v936, 256
    %v939 = vpop.permute.xlu0 %938
    %s941 = sor.u32 256, 8
    %942 = vbcast.lane.b32.xlu0 %v936, %s941
    %v943 = vpop.permute.xlu0 %942
    %v944 = vlaneseq
    %v945 = vshrl.u32 %v944, 7
    %v946 = vsub.s32 5, %v945
    %v947 = vrot.slane %v310, %v946
    %949 = vbcast.lane.b32.xlu0 %v947, 256
    %v950 = vpop.permute.xlu0 %949
    %s952 = sor.u32 256, 8
    %953 = vbcast.lane.b32.xlu0 %v947, %s952
    %v954 = vpop.permute.xlu0 %953
    %v955 = vlaneseq
    %v956 = vshrl.u32 %v955, 7
    %v957 = vsub.s32 6, %v956
    %v958 = vrot.slane %v310, %v957
    %960 = vbcast.lane.b32.xlu0 %v958, 256
    %v961 = vpop.permute.xlu0 %960
    %s963 = sor.u32 256, 8
    %964 = vbcast.lane.b32.xlu0 %v958, %s963
    %v965 = vpop.permute.xlu0 %964
    %v966 = vlaneseq
    %v967 = vshrl.u32 %v966, 7
    %v968 = vsub.s32 7, %v967
    %v969 = vrot.slane %v310, %v968
    %971 = vbcast.lane.b32.xlu0 %v969, 256
    %v972 = vpop.permute.xlu0 %971
    %s974 = sor.u32 256, 8
    %975 = vbcast.lane.b32.xlu0 %v969, %s974
    %v976 = vpop.permute.xlu0 %975
    %v977 = vlaneseq
    %v978 = vshrl.u32 %v977, 7
    %v979 = vsub.s32 0, %v978
    %v980 = vrot.slane %v311, %v979
    %982 = vbcast.lane.b32.xlu0 %v980, 256
    %v983 = vpop.permute.xlu0 %982
    %s985 = sor.u32 256, 8
    %986 = vbcast.lane.b32.xlu0 %v980, %s985
    %v987 = vpop.permute.xlu0 %986
    %v988 = vlaneseq
    %v989 = vshrl.u32 %v988, 7
    %v990 = vsub.s32 1, %v989
    %v991 = vrot.slane %v311, %v990
    %993 = vbcast.lane.b32.xlu0 %v991, 256
    %v994 = vpop.permute.xlu0 %993
    %s996 = sor.u32 256, 8
    %997 = vbcast.lane.b32.xlu0 %v991, %s996
    %v998 = vpop.permute.xlu0 %997
    %v999 = vlaneseq
    %v1000 = vshrl.u32 %v999, 7
    %v1001 = vsub.s32 2, %v1000
    %v1002 = vrot.slane %v311, %v1001
    %1004 = vbcast.lane.b32.xlu0 %v1002, 256
    %v1005 = vpop.permute.xlu0 %1004
    %s1007 = sor.u32 256, 8
    %1008 = vbcast.lane.b32.xlu0 %v1002, %s1007
    %v1009 = vpop.permute.xlu0 %1008
    %v1010 = vlaneseq
    %v1011 = vshrl.u32 %v1010, 7
    %v1012 = vsub.s32 3, %v1011
    %v1013 = vrot.slane %v311, %v1012
    %1015 = vbcast.lane.b32.xlu0 %v1013, 256
    %v1016 = vpop.permute.xlu0 %1015
    %s1018 = sor.u32 256, 8
    %1019 = vbcast.lane.b32.xlu0 %v1013, %s1018
    %v1020 = vpop.permute.xlu0 %1019
    %v1021 = vlaneseq
    %v1022 = vshrl.u32 %v1021, 7
    %v1023 = vsub.s32 4, %v1022
    %v1024 = vrot.slane %v311, %v1023
    %1026 = vbcast.lane.b32.xlu0 %v1024, 256
    %v1027 = vpop.permute.xlu0 %1026
    %s1029 = sor.u32 256, 8
    %1030 = vbcast.lane.b32.xlu0 %v1024, %s1029
    %v1031 = vpop.permute.xlu0 %1030
    %v1032 = vlaneseq
    %v1033 = vshrl.u32 %v1032, 7
    %v1034 = vsub.s32 5, %v1033
    %v1035 = vrot.slane %v311, %v1034
    %1037 = vbcast.lane.b32.xlu0 %v1035, 256
    %v1038 = vpop.permute.xlu0 %1037
    %s1040 = sor.u32 256, 8
    %1041 = vbcast.lane.b32.xlu0 %v1035, %s1040
    %v1042 = vpop.permute.xlu0 %1041
    %v1043 = vlaneseq
    %v1044 = vshrl.u32 %v1043, 7
    %v1045 = vsub.s32 6, %v1044
    %v1046 = vrot.slane %v311, %v1045
    %1048 = vbcast.lane.b32.xlu0 %v1046, 256
    %v1049 = vpop.permute.xlu0 %1048
    %s1051 = sor.u32 256, 8
    %1052 = vbcast.lane.b32.xlu0 %v1046, %s1051
    %v1053 = vpop.permute.xlu0 %1052
    %v1054 = vlaneseq
    %v1055 = vshrl.u32 %v1054, 7
    %v1056 = vsub.s32 7, %v1055
    %v1057 = vrot.slane %v311, %v1056
    %1059 = vbcast.lane.b32.xlu0 %v1057, 256
    %v1060 = vpop.permute.xlu0 %1059
    %s1062 = sor.u32 256, 8
    %1063 = vbcast.lane.b32.xlu0 %v1057, %s1062
    %v1064 = vpop.permute.xlu0 %1063
    %v1065 = vlaneseq
    %v1066 = vshrl.u32 %v1065, 7
    %v1067 = vsub.s32 0, %v1066
    %v1068 = vrot.slane %v312, %v1067
    %1070 = vbcast.lane.b32.xlu0 %v1068, 256
    %v1071 = vpop.permute.xlu0 %1070
    %s1073 = sor.u32 256, 8
    %1074 = vbcast.lane.b32.xlu0 %v1068, %s1073
    %v1075 = vpop.permute.xlu0 %1074
    %v1076 = vlaneseq
    %v1077 = vshrl.u32 %v1076, 7
    %v1078 = vsub.s32 1, %v1077
    %v1079 = vrot.slane %v312, %v1078
    %1081 = vbcast.lane.b32.xlu0 %v1079, 256
    %v1082 = vpop.permute.xlu0 %1081
    %s1084 = sor.u32 256, 8
    %1085 = vbcast.lane.b32.xlu0 %v1079, %s1084
    %v1086 = vpop.permute.xlu0 %1085
    %v1087 = vlaneseq
    %v1088 = vshrl.u32 %v1087, 7
    %v1089 = vsub.s32 2, %v1088
    %v1090 = vrot.slane %v312, %v1089
    %1092 = vbcast.lane.b32.xlu0 %v1090, 256
    %v1093 = vpop.permute.xlu0 %1092
    %s1095 = sor.u32 256, 8
    %1096 = vbcast.lane.b32.xlu0 %v1090, %s1095
    %v1097 = vpop.permute.xlu0 %1096
    %v1098 = vlaneseq
    %v1099 = vshrl.u32 %v1098, 7
    %v1100 = vsub.s32 3, %v1099
    %v1101 = vrot.slane %v312, %v1100
    %1103 = vbcast.lane.b32.xlu0 %v1101, 256
    %v1104 = vpop.permute.xlu0 %1103
    %s1106 = sor.u32 256, 8
    %1107 = vbcast.lane.b32.xlu0 %v1101, %s1106
    %v1108 = vpop.permute.xlu0 %1107
    %v1109 = vlaneseq
    %v1110 = vshrl.u32 %v1109, 7
    %v1111 = vsub.s32 4, %v1110
    %v1112 = vrot.slane %v312, %v1111
    %1114 = vbcast.lane.b32.xlu0 %v1112, 256
    %v1115 = vpop.permute.xlu0 %1114
    %s1117 = sor.u32 256, 8
    %1118 = vbcast.lane.b32.xlu0 %v1112, %s1117
    %v1119 = vpop.permute.xlu0 %1118
    %v1120 = vlaneseq
    %v1121 = vshrl.u32 %v1120, 7
    %v1122 = vsub.s32 5, %v1121
    %v1123 = vrot.slane %v312, %v1122
    %1125 = vbcast.lane.b32.xlu0 %v1123, 256
    %v1126 = vpop.permute.xlu0 %1125
    %s1128 = sor.u32 256, 8
    %1129 = vbcast.lane.b32.xlu0 %v1123, %s1128
    %v1130 = vpop.permute.xlu0 %1129
    %v1131 = vlaneseq
    %v1132 = vshrl.u32 %v1131, 7
    %v1133 = vsub.s32 6, %v1132
    %v1134 = vrot.slane %v312, %v1133
    %1136 = vbcast.lane.b32.xlu0 %v1134, 256
    %v1137 = vpop.permute.xlu0 %1136
    %s1139 = sor.u32 256, 8
    %1140 = vbcast.lane.b32.xlu0 %v1134, %s1139
    %v1141 = vpop.permute.xlu0 %1140
    %v1142 = vlaneseq
    %v1143 = vshrl.u32 %v1142, 7
    %v1144 = vsub.s32 7, %v1143
    %v1145 = vrot.slane %v312, %v1144
    %1147 = vbcast.lane.b32.xlu0 %v1145, 256
    %v1148 = vpop.permute.xlu0 %1147
    %s1150 = sor.u32 256, 8
    %1151 = vbcast.lane.b32.xlu0 %v1145, %s1150
    %v1152 = vpop.permute.xlu0 %1151
    %v1161 = vcombine.high %v441, %v441
    %v1163 = vunpack.c.l.s4 1966171168
    %v1164 = vunpack.c.0.s8 %v1163
    %v1165 = vlaneseq
    %v1166 = vshrl.u32 %v1165, 7
    %v1167 = vsub.s32 %v1164, %v1166
    %v1168 = vrot.slane %v441, %v1167
    %v1170 = vunpack.c.l.s4 1966171168
    %v1171 = vunpack.c.0.s8 %v1170
    %v1172 = vlaneseq
    %v1173 = vshrl.u32 %v1172, 7
    %v1174 = vsub.s32 %v1171, %v1173
    %v1175 = vrot.slane %v1161, %v1174
    %v1176 = vcombine.high %v1168, %v1168
    %v1177 = vcombine.high %v1175, %v1175
    %v1179 = vunpack.c.l.s4 1966171168
    %v1180 = vunpack.c.0.s8 %v1179
    %v1181 = vlaneseq
    %v1182 = vshrl.u32 %v1181, 7
    %v1183 = vsub.s32 %v1180, %v1182
    %v1184 = vrot.slane %v1168, %v1183
    %v1186 = vunpack.c.l.s4 1966171168
    %v1187 = vunpack.c.0.s8 %v1186
    %v1188 = vlaneseq
    %v1189 = vshrl.u32 %v1188, 7
    %v1190 = vsub.s32 %v1187, %v1189
    %v1191 = vrot.slane %v1175, %v1190
    %v1193 = vunpack.c.l.s4 1966171168
    %v1194 = vunpack.c.0.s8 %v1193
    %v1195 = vlaneseq
    %v1196 = vshrl.u32 %v1195, 7
    %v1197 = vsub.s32 %v1194, %v1196
    %v1198 = vrot.slane %v1176, %v1197
    %v1200 = vunpack.c.l.s4 1966171168
    %v1201 = vunpack.c.0.s8 %v1200
    %v1202 = vlaneseq
    %v1203 = vshrl.u32 %v1202, 7
    %v1204 = vsub.s32 %v1201, %v1203
    %v1205 = vrot.slane %v1177, %v1204
    %v1206 = vcombine.high %v1184, %v1184
    %v1207 = vcombine.high %v1191, %v1191
    %v1208 = vcombine.high %v1198, %v1198
    %v1209 = vcombine.high %v1205, %v1205
    %v1210 = vcombine.high %v442, %v442
    %v1212 = vunpack.c.l.s4 1966171168
    %v1213 = vunpack.c.0.s8 %v1212
    %v1214 = vlaneseq
    %v1215 = vshrl.u32 %v1214, 7
    %v1216 = vsub.s32 %v1213, %v1215
    %v1217 = vrot.slane %v442, %v1216
    %v1219 = vunpack.c.l.s4 1966171168
    %v1220 = vunpack.c.0.s8 %v1219
    %v1221 = vlaneseq
    %v1222 = vshrl.u32 %v1221, 7
    %v1223 = vsub.s32 %v1220, %v1222
    %v1224 = vrot.slane %v1210, %v1223
    %v1225 = vcombine.high %v1217, %v1217
    %v1226 = vcombine.high %v1224, %v1224
    %v1228 = vunpack.c.l.s4 1966171168
    %v1229 = vunpack.c.0.s8 %v1228
    %v1230 = vlaneseq
    %v1231 = vshrl.u32 %v1230, 7
    %v1232 = vsub.s32 %v1229, %v1231
    %v1233 = vrot.slane %v1217, %v1232
    %v1235 = vunpack.c.l.s4 1966171168
    %v1236 = vunpack.c.0.s8 %v1235
    %v1237 = vlaneseq
    %v1238 = vshrl.u32 %v1237, 7
    %v1239 = vsub.s32 %v1236, %v1238
    %v1240 = vrot.slane %v1224, %v1239
    %v1242 = vunpack.c.l.s4 1966171168
    %v1243 = vunpack.c.0.s8 %v1242
    %v1244 = vlaneseq
    %v1245 = vshrl.u32 %v1244, 7
    %v1246 = vsub.s32 %v1243, %v1245
    %v1247 = vrot.slane %v1225, %v1246
    %v1249 = vunpack.c.l.s4 1966171168
    %v1250 = vunpack.c.0.s8 %v1249
    %v1251 = vlaneseq
    %v1252 = vshrl.u32 %v1251, 7
    %v1253 = vsub.s32 %v1250, %v1252
    %v1254 = vrot.slane %v1226, %v1253
    %v1255 = vcombine.high %v1233, %v1233
    %v1256 = vcombine.high %v1240, %v1240
    %v1257 = vcombine.high %v1247, %v1247
    %v1258 = vcombine.high %v1254, %v1254
    %v1259 = vcombine.high %v443, %v443
    %v1261 = vunpack.c.l.s4 1966171168
    %v1262 = vunpack.c.0.s8 %v1261
    %v1263 = vlaneseq
    %v1264 = vshrl.u32 %v1263, 7
    %v1265 = vsub.s32 %v1262, %v1264
    %v1266 = vrot.slane %v443, %v1265
    %v1268 = vunpack.c.l.s4 1966171168
    %v1269 = vunpack.c.0.s8 %v1268
    %v1270 = vlaneseq
    %v1271 = vshrl.u32 %v1270, 7
    %v1272 = vsub.s32 %v1269, %v1271
    %v1273 = vrot.slane %v1259, %v1272
    %v1274 = vcombine.high %v1266, %v1266
    %v1275 = vcombine.high %v1273, %v1273
    %v1277 = vunpack.c.l.s4 1966171168
    %v1278 = vunpack.c.0.s8 %v1277
    %v1279 = vlaneseq
    %v1280 = vshrl.u32 %v1279, 7
    %v1281 = vsub.s32 %v1278, %v1280
    %v1282 = vrot.slane %v1266, %v1281
    %v1284 = vunpack.c.l.s4 1966171168
    %v1285 = vunpack.c.0.s8 %v1284
    %v1286 = vlaneseq
    %v1287 = vshrl.u32 %v1286, 7
    %v1288 = vsub.s32 %v1285, %v1287
    %v1289 = vrot.slane %v1273, %v1288
    %v1291 = vunpack.c.l.s4 1966171168
    %v1292 = vunpack.c.0.s8 %v1291
    %v1293 = vlaneseq
    %v1294 = vshrl.u32 %v1293, 7
    %v1295 = vsub.s32 %v1292, %v1294
    %v1296 = vrot.slane %v1274, %v1295
    %v1298 = vunpack.c.l.s4 1966171168
    %v1299 = vunpack.c.0.s8 %v1298
    %v1300 = vlaneseq
    %v1301 = vshrl.u32 %v1300, 7
    %v1302 = vsub.s32 %v1299, %v1301
    %v1303 = vrot.slane %v1275, %v1302
    %v1304 = vcombine.high %v1282, %v1282
    %v1305 = vcombine.high %v1289, %v1289
    %v1306 = vcombine.high %v1296, %v1296
    %v1307 = vcombine.high %v1303, %v1303
    %v1308 = vcombine.high %v444, %v444
    %v1310 = vunpack.c.l.s4 1966171168
    %v1311 = vunpack.c.0.s8 %v1310
    %v1312 = vlaneseq
    %v1313 = vshrl.u32 %v1312, 7
    %v1314 = vsub.s32 %v1311, %v1313
    %v1315 = vrot.slane %v444, %v1314
    %v1317 = vunpack.c.l.s4 1966171168
    %v1318 = vunpack.c.0.s8 %v1317
    %v1319 = vlaneseq
    %v1320 = vshrl.u32 %v1319, 7
    %v1321 = vsub.s32 %v1318, %v1320
    %v1322 = vrot.slane %v1308, %v1321
    %v1323 = vcombine.high %v1315, %v1315
    %v1324 = vcombine.high %v1322, %v1322
    %v1326 = vunpack.c.l.s4 1966171168
    %v1327 = vunpack.c.0.s8 %v1326
    %v1328 = vlaneseq
    %v1329 = vshrl.u32 %v1328, 7
    %v1330 = vsub.s32 %v1327, %v1329
    %v1331 = vrot.slane %v1315, %v1330
    %v1333 = vunpack.c.l.s4 1966171168
    %v1334 = vunpack.c.0.s8 %v1333
    %v1335 = vlaneseq
    %v1336 = vshrl.u32 %v1335, 7
    %v1337 = vsub.s32 %v1334, %v1336
    %v1338 = vrot.slane %v1322, %v1337
    %v1340 = vunpack.c.l.s4 1966171168
    %v1341 = vunpack.c.0.s8 %v1340
    %v1342 = vlaneseq
    %v1343 = vshrl.u32 %v1342, 7
    %v1344 = vsub.s32 %v1341, %v1343
    %v1345 = vrot.slane %v1323, %v1344
    %v1347 = vunpack.c.l.s4 1966171168
    %v1348 = vunpack.c.0.s8 %v1347
    %v1349 = vlaneseq
    %v1350 = vshrl.u32 %v1349, 7
    %v1351 = vsub.s32 %v1348, %v1350
    %v1352 = vrot.slane %v1324, %v1351
    %v1353 = vcombine.high %v1331, %v1331
    %v1354 = vcombine.high %v1338, %v1338
    %v1355 = vcombine.high %v1345, %v1345
    %v1356 = vcombine.high %v1352, %v1352
    %v1357 = vcombine.high %v445, %v445
    %v1359 = vunpack.c.l.s4 1966171168
    %v1360 = vunpack.c.0.s8 %v1359
    %v1361 = vlaneseq
    %v1362 = vshrl.u32 %v1361, 7
    %v1363 = vsub.s32 %v1360, %v1362
    %v1364 = vrot.slane %v445, %v1363
    %v1366 = vunpack.c.l.s4 1966171168
    %v1367 = vunpack.c.0.s8 %v1366
    %v1368 = vlaneseq
    %v1369 = vshrl.u32 %v1368, 7
    %v1370 = vsub.s32 %v1367, %v1369
    %v1371 = vrot.slane %v1357, %v1370
    %v1372 = vcombine.high %v1364, %v1364
    %v1373 = vcombine.high %v1371, %v1371
    %v1375 = vunpack.c.l.s4 1966171168
    %v1376 = vunpack.c.0.s8 %v1375
    %v1377 = vlaneseq
    %v1378 = vshrl.u32 %v1377, 7
    %v1379 = vsub.s32 %v1376, %v1378
    %v1380 = vrot.slane %v1364, %v1379
    %v1382 = vunpack.c.l.s4 1966171168
    %v1383 = vunpack.c.0.s8 %v1382
    %v1384 = vlaneseq
    %v1385 = vshrl.u32 %v1384, 7
    %v1386 = vsub.s32 %v1383, %v1385
    %v1387 = vrot.slane %v1371, %v1386
    %v1389 = vunpack.c.l.s4 1966171168
    %v1390 = vunpack.c.0.s8 %v1389
    %v1391 = vlaneseq
    %v1392 = vshrl.u32 %v1391, 7
    %v1393 = vsub.s32 %v1390, %v1392
    %v1394 = vrot.slane %v1372, %v1393
    %v1396 = vunpack.c.l.s4 1966171168
    %v1397 = vunpack.c.0.s8 %v1396
    %v1398 = vlaneseq
    %v1399 = vshrl.u32 %v1398, 7
    %v1400 = vsub.s32 %v1397, %v1399
    %v1401 = vrot.slane %v1373, %v1400
    %v1402 = vcombine.high %v1380, %v1380
    %v1403 = vcombine.high %v1387, %v1387
    %v1404 = vcombine.high %v1394, %v1394
    %v1405 = vcombine.high %v1401, %v1401
    %v1406 = vcombine.high %v446, %v446
    %v1408 = vunpack.c.l.s4 1966171168
    %v1409 = vunpack.c.0.s8 %v1408
    %v1410 = vlaneseq
    %v1411 = vshrl.u32 %v1410, 7
    %v1412 = vsub.s32 %v1409, %v1411
    %v1413 = vrot.slane %v446, %v1412
    %v1415 = vunpack.c.l.s4 1966171168
    %v1416 = vunpack.c.0.s8 %v1415
    %v1417 = vlaneseq
    %v1418 = vshrl.u32 %v1417, 7
    %v1419 = vsub.s32 %v1416, %v1418
    %v1420 = vrot.slane %v1406, %v1419
    %v1421 = vcombine.high %v1413, %v1413
    %v1422 = vcombine.high %v1420, %v1420
    %v1424 = vunpack.c.l.s4 1966171168
    %v1425 = vunpack.c.0.s8 %v1424
    %v1426 = vlaneseq
    %v1427 = vshrl.u32 %v1426, 7
    %v1428 = vsub.s32 %v1425, %v1427
    %v1429 = vrot.slane %v1413, %v1428
    %v1431 = vunpack.c.l.s4 1966171168
    %v1432 = vunpack.c.0.s8 %v1431
    %v1433 = vlaneseq
    %v1434 = vshrl.u32 %v1433, 7
    %v1435 = vsub.s32 %v1432, %v1434
    %v1436 = vrot.slane %v1420, %v1435
    %v1438 = vunpack.c.l.s4 1966171168
    %v1439 = vunpack.c.0.s8 %v1438
    %v1440 = vlaneseq
    %v1441 = vshrl.u32 %v1440, 7
    %v1442 = vsub.s32 %v1439, %v1441
    %v1443 = vrot.slane %v1421, %v1442
    %v1445 = vunpack.c.l.s4 1966171168
    %v1446 = vunpack.c.0.s8 %v1445
    %v1447 = vlaneseq
    %v1448 = vshrl.u32 %v1447, 7
    %v1449 = vsub.s32 %v1446, %v1448
    %v1450 = vrot.slane %v1422, %v1449
    %v1451 = vcombine.high %v1429, %v1429
    %v1452 = vcombine.high %v1436, %v1436
    %v1453 = vcombine.high %v1443, %v1443
    %v1454 = vcombine.high %v1450, %v1450
    %v1455 = vcombine.high %v447, %v447
    %v1457 = vunpack.c.l.s4 1966171168
    %v1458 = vunpack.c.0.s8 %v1457
    %v1459 = vlaneseq
    %v1460 = vshrl.u32 %v1459, 7
    %v1461 = vsub.s32 %v1458, %v1460
    %v1462 = vrot.slane %v447, %v1461
    %v1464 = vunpack.c.l.s4 1966171168
    %v1465 = vunpack.c.0.s8 %v1464
    %v1466 = vlaneseq
    %v1467 = vshrl.u32 %v1466, 7
    %v1468 = vsub.s32 %v1465, %v1467
    %v1469 = vrot.slane %v1455, %v1468
    %v1470 = vcombine.high %v1462, %v1462
    %v1471 = vcombine.high %v1469, %v1469
    %v1473 = vunpack.c.l.s4 1966171168
    %v1474 = vunpack.c.0.s8 %v1473
    %v1475 = vlaneseq
    %v1476 = vshrl.u32 %v1475, 7
    %v1477 = vsub.s32 %v1474, %v1476
    %v1478 = vrot.slane %v1462, %v1477
    %v1480 = vunpack.c.l.s4 1966171168
    %v1481 = vunpack.c.0.s8 %v1480
    %v1482 = vlaneseq
    %v1483 = vshrl.u32 %v1482, 7
    %v1484 = vsub.s32 %v1481, %v1483
    %v1485 = vrot.slane %v1469, %v1484
    %v1487 = vunpack.c.l.s4 1966171168
    %v1488 = vunpack.c.0.s8 %v1487
    %v1489 = vlaneseq
    %v1490 = vshrl.u32 %v1489, 7
    %v1491 = vsub.s32 %v1488, %v1490
    %v1492 = vrot.slane %v1470, %v1491
    %v1494 = vunpack.c.l.s4 1966171168
    %v1495 = vunpack.c.0.s8 %v1494
    %v1496 = vlaneseq
    %v1497 = vshrl.u32 %v1496, 7
    %v1498 = vsub.s32 %v1495, %v1497
    %v1499 = vrot.slane %v1471, %v1498
    %v1500 = vcombine.high %v1478, %v1478
    %v1501 = vcombine.high %v1485, %v1485
    %v1502 = vcombine.high %v1492, %v1492
    %v1503 = vcombine.high %v1499, %v1499
    %v1504 = vcombine.high %v448, %v448
    %v1506 = vunpack.c.l.s4 1966171168
    %v1507 = vunpack.c.0.s8 %v1506
    %v1508 = vlaneseq
    %v1509 = vshrl.u32 %v1508, 7
    %v1510 = vsub.s32 %v1507, %v1509
    %v1511 = vrot.slane %v448, %v1510
    %v1513 = vunpack.c.l.s4 1966171168
    %v1514 = vunpack.c.0.s8 %v1513
    %v1515 = vlaneseq
    %v1516 = vshrl.u32 %v1515, 7
    %v1517 = vsub.s32 %v1514, %v1516
    %v1518 = vrot.slane %v1504, %v1517
    %v1519 = vcombine.high %v1511, %v1511
    %v1520 = vcombine.high %v1518, %v1518
    %v1522 = vunpack.c.l.s4 1966171168
    %v1523 = vunpack.c.0.s8 %v1522
    %v1524 = vlaneseq
    %v1525 = vshrl.u32 %v1524, 7
    %v1526 = vsub.s32 %v1523, %v1525
    %v1527 = vrot.slane %v1511, %v1526
    %v1529 = vunpack.c.l.s4 1966171168
    %v1530 = vunpack.c.0.s8 %v1529
    %v1531 = vlaneseq
    %v1532 = vshrl.u32 %v1531, 7
    %v1533 = vsub.s32 %v1530, %v1532
    %v1534 = vrot.slane %v1518, %v1533
    %v1536 = vunpack.c.l.s4 1966171168
    %v1537 = vunpack.c.0.s8 %v1536
    %v1538 = vlaneseq
    %v1539 = vshrl.u32 %v1538, 7
    %v1540 = vsub.s32 %v1537, %v1539
    %v1541 = vrot.slane %v1519, %v1540
    %v1543 = vunpack.c.l.s4 1966171168
    %v1544 = vunpack.c.0.s8 %v1543
    %v1545 = vlaneseq
    %v1546 = vshrl.u32 %v1545, 7
    %v1547 = vsub.s32 %v1544, %v1546
    %v1548 = vrot.slane %v1520, %v1547
    %v1549 = vcombine.high %v1527, %v1527
    %v1550 = vcombine.high %v1534, %v1534
    %v1551 = vcombine.high %v1541, %v1541
    %v1552 = vcombine.high %v1548, %v1548
    %v1553 = vlaneseq
    %v1554 = vshrl.u32 %v1553, 7
    %v1555 = vsub.s32 0, %v1554
    %v1556 = vrot.slane %v1184, %v1555
    %v1557 = vlaneseq
    %v1558 = vshrl.u32 %v1557, 7
    %v1559 = vsub.s32 0, %v1558
    %v1560 = vrot.slane %v1198, %v1559
    %v1561 = vlaneseq
    %v1562 = vshrl.u32 %v1561, 7
    %v1563 = vsub.s32 0, %v1562
    %v1564 = vrot.slane %v1206, %v1563
    %v1565 = vlaneseq
    %v1566 = vshrl.u32 %v1565, 7
    %v1567 = vsub.s32 0, %v1566
    %v1568 = vrot.slane %v1208, %v1567
    %v1569 = vlaneseq
    %v1570 = vshrl.u32 %v1569, 7
    %v1571 = vsub.s32 0, %v1570
    %v1572 = vrot.slane %v1191, %v1571
    %v1573 = vlaneseq
    %v1574 = vshrl.u32 %v1573, 7
    %v1575 = vsub.s32 0, %v1574
    %v1576 = vrot.slane %v1205, %v1575
    %v1577 = vlaneseq
    %v1578 = vshrl.u32 %v1577, 7
    %v1579 = vsub.s32 0, %v1578
    %v1580 = vrot.slane %v1207, %v1579
    %v1581 = vlaneseq
    %v1582 = vshrl.u32 %v1581, 7
    %v1583 = vsub.s32 0, %v1582
    %v1584 = vrot.slane %v1209, %v1583
    %v1585 = vlaneseq
    %v1586 = vshrl.u32 %v1585, 7
    %v1587 = vsub.s32 0, %v1586
    %v1588 = vrot.slane %v1233, %v1587
    %v1589 = vlaneseq
    %v1590 = vshrl.u32 %v1589, 7
    %v1591 = vsub.s32 0, %v1590
    %v1592 = vrot.slane %v1247, %v1591
    %v1593 = vlaneseq
    %v1594 = vshrl.u32 %v1593, 7
    %v1595 = vsub.s32 0, %v1594
    %v1596 = vrot.slane %v1255, %v1595
    %v1597 = vlaneseq
    %v1598 = vshrl.u32 %v1597, 7
    %v1599 = vsub.s32 0, %v1598
    %v1600 = vrot.slane %v1257, %v1599
    %v1601 = vlaneseq
    %v1602 = vshrl.u32 %v1601, 7
    %v1603 = vsub.s32 0, %v1602
    %v1604 = vrot.slane %v1240, %v1603
    %v1605 = vlaneseq
    %v1606 = vshrl.u32 %v1605, 7
    %v1607 = vsub.s32 0, %v1606
    %v1608 = vrot.slane %v1254, %v1607
    %v1609 = vlaneseq
    %v1610 = vshrl.u32 %v1609, 7
    %v1611 = vsub.s32 0, %v1610
    %v1612 = vrot.slane %v1256, %v1611
    %v1613 = vlaneseq
    %v1614 = vshrl.u32 %v1613, 7
    %v1615 = vsub.s32 0, %v1614
    %v1616 = vrot.slane %v1258, %v1615
    %v1617 = vlaneseq
    %v1618 = vshrl.u32 %v1617, 7
    %v1619 = vsub.s32 0, %v1618
    %v1620 = vrot.slane %v1282, %v1619
    %v1621 = vlaneseq
    %v1622 = vshrl.u32 %v1621, 7
    %v1623 = vsub.s32 0, %v1622
    %v1624 = vrot.slane %v1296, %v1623
    %v1625 = vlaneseq
    %v1626 = vshrl.u32 %v1625, 7
    %v1627 = vsub.s32 0, %v1626
    %v1628 = vrot.slane %v1304, %v1627
    %v1629 = vlaneseq
    %v1630 = vshrl.u32 %v1629, 7
    %v1631 = vsub.s32 0, %v1630
    %v1632 = vrot.slane %v1306, %v1631
    %v1633 = vlaneseq
    %v1634 = vshrl.u32 %v1633, 7
    %v1635 = vsub.s32 0, %v1634
    %v1636 = vrot.slane %v1289, %v1635
    %v1637 = vlaneseq
    %v1638 = vshrl.u32 %v1637, 7
    %v1639 = vsub.s32 0, %v1638
    %v1640 = vrot.slane %v1303, %v1639
    %v1641 = vlaneseq
    %v1642 = vshrl.u32 %v1641, 7
    %v1643 = vsub.s32 0, %v1642
    %v1644 = vrot.slane %v1305, %v1643
    %v1645 = vlaneseq
    %v1646 = vshrl.u32 %v1645, 7
    %v1647 = vsub.s32 0, %v1646
    %v1648 = vrot.slane %v1307, %v1647
    %v1649 = vlaneseq
    %v1650 = vshrl.u32 %v1649, 7
    %v1651 = vsub.s32 0, %v1650
    %v1652 = vrot.slane %v1331, %v1651
    %v1653 = vlaneseq
    %v1654 = vshrl.u32 %v1653, 7
    %v1655 = vsub.s32 0, %v1654
    %v1656 = vrot.slane %v1345, %v1655
    %v1657 = vlaneseq
    %v1658 = vshrl.u32 %v1657, 7
    %v1659 = vsub.s32 0, %v1658
    %v1660 = vrot.slane %v1353, %v1659
    %v1661 = vlaneseq
    %v1662 = vshrl.u32 %v1661, 7
    %v1663 = vsub.s32 0, %v1662
    %v1664 = vrot.slane %v1355, %v1663
    %v1665 = vlaneseq
    %v1666 = vshrl.u32 %v1665, 7
    %v1667 = vsub.s32 0, %v1666
    %v1668 = vrot.slane %v1338, %v1667
    %v1669 = vlaneseq
    %v1670 = vshrl.u32 %v1669, 7
    %v1671 = vsub.s32 0, %v1670
    %v1672 = vrot.slane %v1352, %v1671
    %v1673 = vlaneseq
    %v1674 = vshrl.u32 %v1673, 7
    %v1675 = vsub.s32 0, %v1674
    %v1676 = vrot.slane %v1354, %v1675
    %v1677 = vlaneseq
    %v1678 = vshrl.u32 %v1677, 7
    %v1679 = vsub.s32 0, %v1678
    %v1680 = vrot.slane %v1356, %v1679
    %v1681 = vlaneseq
    %v1682 = vshrl.u32 %v1681, 7
    %v1683 = vsub.s32 0, %v1682
    %v1684 = vrot.slane %v1380, %v1683
    %v1685 = vlaneseq
    %v1686 = vshrl.u32 %v1685, 7
    %v1687 = vsub.s32 0, %v1686
    %v1688 = vrot.slane %v1394, %v1687
    %v1689 = vlaneseq
    %v1690 = vshrl.u32 %v1689, 7
    %v1691 = vsub.s32 0, %v1690
    %v1692 = vrot.slane %v1402, %v1691
    %v1693 = vlaneseq
    %v1694 = vshrl.u32 %v1693, 7
    %v1695 = vsub.s32 0, %v1694
    %v1696 = vrot.slane %v1404, %v1695
    %v1697 = vlaneseq
    %v1698 = vshrl.u32 %v1697, 7
    %v1699 = vsub.s32 0, %v1698
    %v1700 = vrot.slane %v1387, %v1699
    %v1701 = vlaneseq
    %v1702 = vshrl.u32 %v1701, 7
    %v1703 = vsub.s32 0, %v1702
    %v1704 = vrot.slane %v1401, %v1703
    %v1705 = vlaneseq
    %v1706 = vshrl.u32 %v1705, 7
    %v1707 = vsub.s32 0, %v1706
    %v1708 = vrot.slane %v1403, %v1707
    %v1709 = vlaneseq
    %v1710 = vshrl.u32 %v1709, 7
    %v1711 = vsub.s32 0, %v1710
    %v1712 = vrot.slane %v1405, %v1711
    %v1713 = vlaneseq
    %v1714 = vshrl.u32 %v1713, 7
    %v1715 = vsub.s32 0, %v1714
    %v1716 = vrot.slane %v1429, %v1715
    %v1717 = vlaneseq
    %v1718 = vshrl.u32 %v1717, 7
    %v1719 = vsub.s32 0, %v1718
    %v1720 = vrot.slane %v1443, %v1719
    %v1721 = vlaneseq
    %v1722 = vshrl.u32 %v1721, 7
    %v1723 = vsub.s32 0, %v1722
    %v1724 = vrot.slane %v1451, %v1723
    %v1725 = vlaneseq
    %v1726 = vshrl.u32 %v1725, 7
    %v1727 = vsub.s32 0, %v1726
    %v1728 = vrot.slane %v1453, %v1727
    %v1729 = vlaneseq
    %v1730 = vshrl.u32 %v1729, 7
    %v1731 = vsub.s32 0, %v1730
    %v1732 = vrot.slane %v1436, %v1731
    %v1733 = vlaneseq
    %v1734 = vshrl.u32 %v1733, 7
    %v1735 = vsub.s32 0, %v1734
    %v1736 = vrot.slane %v1450, %v1735
    %v1737 = vlaneseq
    %v1738 = vshrl.u32 %v1737, 7
    %v1739 = vsub.s32 0, %v1738
    %v1740 = vrot.slane %v1452, %v1739
    %v1741 = vlaneseq
    %v1742 = vshrl.u32 %v1741, 7
    %v1743 = vsub.s32 0, %v1742
    %v1744 = vrot.slane %v1454, %v1743
    %v1745 = vlaneseq
    %v1746 = vshrl.u32 %v1745, 7
    %v1747 = vsub.s32 0, %v1746
    %v1748 = vrot.slane %v1478, %v1747
    %v1749 = vlaneseq
    %v1750 = vshrl.u32 %v1749, 7
    %v1751 = vsub.s32 0, %v1750
    %v1752 = vrot.slane %v1492, %v1751
    %v1753 = vlaneseq
    %v1754 = vshrl.u32 %v1753, 7
    %v1755 = vsub.s32 0, %v1754
    %v1756 = vrot.slane %v1500, %v1755
    %v1757 = vlaneseq
    %v1758 = vshrl.u32 %v1757, 7
    %v1759 = vsub.s32 0, %v1758
    %v1760 = vrot.slane %v1502, %v1759
    %v1761 = vlaneseq
    %v1762 = vshrl.u32 %v1761, 7
    %v1763 = vsub.s32 0, %v1762
    %v1764 = vrot.slane %v1485, %v1763
    %v1765 = vlaneseq
    %v1766 = vshrl.u32 %v1765, 7
    %v1767 = vsub.s32 0, %v1766
    %v1768 = vrot.slane %v1499, %v1767
    %v1769 = vlaneseq
    %v1770 = vshrl.u32 %v1769, 7
    %v1771 = vsub.s32 0, %v1770
    %v1772 = vrot.slane %v1501, %v1771
    %v1773 = vlaneseq
    %v1774 = vshrl.u32 %v1773, 7
    %v1775 = vsub.s32 0, %v1774
    %v1776 = vrot.slane %v1503, %v1775
    %v1777 = vlaneseq
    %v1778 = vshrl.u32 %v1777, 7
    %v1779 = vsub.s32 0, %v1778
    %v1780 = vrot.slane %v1527, %v1779
    %v1781 = vlaneseq
    %v1782 = vshrl.u32 %v1781, 7
    %v1783 = vsub.s32 0, %v1782
    %v1784 = vrot.slane %v1541, %v1783
    %v1785 = vlaneseq
    %v1786 = vshrl.u32 %v1785, 7
    %v1787 = vsub.s32 0, %v1786
    %v1788 = vrot.slane %v1549, %v1787
    %v1789 = vlaneseq
    %v1790 = vshrl.u32 %v1789, 7
    %v1791 = vsub.s32 0, %v1790
    %v1792 = vrot.slane %v1551, %v1791
    %v1793 = vlaneseq
    %v1794 = vshrl.u32 %v1793, 7
    %v1795 = vsub.s32 0, %v1794
    %v1796 = vrot.slane %v1534, %v1795
    %v1797 = vlaneseq
    %v1798 = vshrl.u32 %v1797, 7
    %v1799 = vsub.s32 0, %v1798
    %v1800 = vrot.slane %v1548, %v1799
    %v1801 = vlaneseq
    %v1802 = vshrl.u32 %v1801, 7
    %v1803 = vsub.s32 0, %v1802
    %v1804 = vrot.slane %v1550, %v1803
    %v1805 = vlaneseq
    %v1806 = vshrl.u32 %v1805, 7
    %v1807 = vsub.s32 0, %v1806
    %v1808 = vrot.slane %v1552, %v1807
    %v1873 = vadd.f32 %v455, %v1556
    %v1874 = vadd.f32 %v459, %v1556
    %v1875 = vadd.f32 %v466, %v1560
    %v1876 = vadd.f32 %v470, %v1560
    %v1877 = vadd.f32 %v477, %v1564
    %v1878 = vadd.f32 %v481, %v1564
    %v1879 = vadd.f32 %v488, %v1568
    %v1880 = vadd.f32 %v492, %v1568
    %v1881 = vadd.f32 %v499, %v1572
    %v1882 = vadd.f32 %v503, %v1572
    %v1883 = vadd.f32 %v510, %v1576
    %v1884 = vadd.f32 %v514, %v1576
    %v1885 = vadd.f32 %v521, %v1580
    %v1886 = vadd.f32 %v525, %v1580
    %v1887 = vadd.f32 %v532, %v1584
    %v1888 = vadd.f32 %v536, %v1584
    %v1889 = vadd.f32 %v543, %v1588
    %v1890 = vadd.f32 %v547, %v1588
    %v1891 = vadd.f32 %v554, %v1592
    %v1892 = vadd.f32 %v558, %v1592
    %v1893 = vadd.f32 %v565, %v1596
    %v1894 = vadd.f32 %v569, %v1596
    %v1895 = vadd.f32 %v576, %v1600
    %v1896 = vadd.f32 %v580, %v1600
    %v1897 = vadd.f32 %v587, %v1604
    %v1898 = vadd.f32 %v591, %v1604
    %v1899 = vadd.f32 %v598, %v1608
    %v1900 = vadd.f32 %v602, %v1608
    %v1901 = vadd.f32 %v609, %v1612
    %v1902 = vadd.f32 %v613, %v1612
    %v1903 = vadd.f32 %v620, %v1616
    %v1904 = vadd.f32 %v624, %v1616
    %v1905 = vadd.f32 %v631, %v1620
    %v1906 = vadd.f32 %v635, %v1620
    %v1907 = vadd.f32 %v642, %v1624
    %v1908 = vadd.f32 %v646, %v1624
    %v1909 = vadd.f32 %v653, %v1628
    %v1910 = vadd.f32 %v657, %v1628
    %v1911 = vadd.f32 %v664, %v1632
    %v1912 = vadd.f32 %v668, %v1632
    %v1913 = vadd.f32 %v675, %v1636
    %v1914 = vadd.f32 %v679, %v1636
    %v1915 = vadd.f32 %v686, %v1640
    %v1916 = vadd.f32 %v690, %v1640
    %v1917 = vadd.f32 %v697, %v1644
    %v1918 = vadd.f32 %v701, %v1644
    %v1919 = vadd.f32 %v708, %v1648
    %v1920 = vadd.f32 %v712, %v1648
    %v1921 = vadd.f32 %v719, %v1652
    %v1922 = vadd.f32 %v723, %v1652
    %v1923 = vadd.f32 %v730, %v1656
    %v1924 = vadd.f32 %v734, %v1656
    %v1925 = vadd.f32 %v741, %v1660
    %v1926 = vadd.f32 %v745, %v1660
    %v1927 = vadd.f32 %v752, %v1664
    %v1928 = vadd.f32 %v756, %v1664
    %v1929 = vadd.f32 %v763, %v1668
    %v1930 = vadd.f32 %v767, %v1668
    %v1931 = vadd.f32 %v774, %v1672
    %v1932 = vadd.f32 %v778, %v1672
    %v1933 = vadd.f32 %v785, %v1676
    %v1934 = vadd.f32 %v789, %v1676
    %v1935 = vadd.f32 %v796, %v1680
    %v1936 = vadd.f32 %v800, %v1680
    %v1937 = vadd.f32 %v807, %v1684
    %v1938 = vadd.f32 %v811, %v1684
    %v1939 = vadd.f32 %v818, %v1688
    %v1940 = vadd.f32 %v822, %v1688
    %v1941 = vadd.f32 %v829, %v1692
    %v1942 = vadd.f32 %v833, %v1692
    %v1943 = vadd.f32 %v840, %v1696
    %v1944 = vadd.f32 %v844, %v1696
    %v1945 = vadd.f32 %v851, %v1700
    %v1946 = vadd.f32 %v855, %v1700
    %v1947 = vadd.f32 %v862, %v1704
    %v1948 = vadd.f32 %v866, %v1704
    %v1949 = vadd.f32 %v873, %v1708
    %v1950 = vadd.f32 %v877, %v1708
    %v1951 = vadd.f32 %v884, %v1712
    %v1952 = vadd.f32 %v888, %v1712
    %v1953 = vadd.f32 %v895, %v1716
    %v1954 = vadd.f32 %v899, %v1716
    %v1955 = vadd.f32 %v906, %v1720
    %v1956 = vadd.f32 %v910, %v1720
    %v1957 = vadd.f32 %v917, %v1724
    %v1958 = vadd.f32 %v921, %v1724
    %v1959 = vadd.f32 %v928, %v1728
    %v1960 = vadd.f32 %v932, %v1728
    %v1961 = vadd.f32 %v939, %v1732
    %v1962 = vadd.f32 %v943, %v1732
    %v1963 = vadd.f32 %v950, %v1736
    %v1964 = vadd.f32 %v954, %v1736
    %v1965 = vadd.f32 %v961, %v1740
    %v1966 = vadd.f32 %v965, %v1740
    %v1967 = vadd.f32 %v972, %v1744
    %v1968 = vadd.f32 %v976, %v1744
    %v1969 = vadd.f32 %v983, %v1748
    %v1970 = vadd.f32 %v987, %v1748
    %v1971 = vadd.f32 %v994, %v1752
    %v1972 = vadd.f32 %v998, %v1752
    %v1973 = vadd.f32 %v1005, %v1756
    %v1974 = vadd.f32 %v1009, %v1756
    %v1975 = vadd.f32 %v1016, %v1760
    %v1976 = vadd.f32 %v1020, %v1760
    %v1977 = vadd.f32 %v1027, %v1764
    %v1978 = vadd.f32 %v1031, %v1764
    %v1979 = vadd.f32 %v1038, %v1768
    %v1980 = vadd.f32 %v1042, %v1768
    %v1981 = vadd.f32 %v1049, %v1772
    %v1982 = vadd.f32 %v1053, %v1772
    %v1983 = vadd.f32 %v1060, %v1776
    %v1984 = vadd.f32 %v1064, %v1776
    %v1985 = vadd.f32 %v1071, %v1780
    %v1986 = vadd.f32 %v1075, %v1780
    %v1987 = vadd.f32 %v1082, %v1784
    %v1988 = vadd.f32 %v1086, %v1784
    %v1989 = vadd.f32 %v1093, %v1788
    %v1990 = vadd.f32 %v1097, %v1788
    %v1991 = vadd.f32 %v1104, %v1792
    %v1992 = vadd.f32 %v1108, %v1792
    %v1993 = vadd.f32 %v1115, %v1796
    %v1994 = vadd.f32 %v1119, %v1796
    %v1995 = vadd.f32 %v1126, %v1800
    %v1996 = vadd.f32 %v1130, %v1800
    %v1997 = vadd.f32 %v1137, %v1804
    %v1998 = vadd.f32 %v1141, %v1804
    %v1999 = vadd.f32 %v1148, %v1808
    %v2000 = vadd.f32 %v1152, %v1808
    %v2001 = vcombine.low %v1873, %v1877
    %v2002 = vcombine.high %v1873, %v1877
    %v2004 = vunpack.c.l.s4 1983009808
    %v2005 = vunpack.c.0.s8 %v2004
    %v2006 = vlaneseq
    %v2007 = vshrl.u32 %v2006, 7
    %v2008 = vsub.s32 %v2005, %v2007
    %v2009 = vrot.slane %v2001, %v2008
    %v2011 = vunpack.c.l.s4 1983009808
    %v2012 = vunpack.c.0.s8 %v2011
    %v2013 = vlaneseq
    %v2014 = vshrl.u32 %v2013, 7
    %v2015 = vsub.s32 %v2012, %v2014
    %v2016 = vrot.slane %v2002, %v2015
    %v2017 = vcombine.low %v1875, %v1879
    %v2018 = vcombine.high %v1875, %v1879
    %v2020 = vunpack.c.l.s4 1983009808
    %v2021 = vunpack.c.0.s8 %v2020
    %v2022 = vlaneseq
    %v2023 = vshrl.u32 %v2022, 7
    %v2024 = vsub.s32 %v2021, %v2023
    %v2025 = vrot.slane %v2017, %v2024
    %v2027 = vunpack.c.l.s4 1983009808
    %v2028 = vunpack.c.0.s8 %v2027
    %v2029 = vlaneseq
    %v2030 = vshrl.u32 %v2029, 7
    %v2031 = vsub.s32 %v2028, %v2030
    %v2032 = vrot.slane %v2018, %v2031
    %v2033 = vcombine.low %v1881, %v1885
    %v2034 = vcombine.high %v1881, %v1885
    %v2036 = vunpack.c.l.s4 1983009808
    %v2037 = vunpack.c.0.s8 %v2036
    %v2038 = vlaneseq
    %v2039 = vshrl.u32 %v2038, 7
    %v2040 = vsub.s32 %v2037, %v2039
    %v2041 = vrot.slane %v2033, %v2040
    %v2043 = vunpack.c.l.s4 1983009808
    %v2044 = vunpack.c.0.s8 %v2043
    %v2045 = vlaneseq
    %v2046 = vshrl.u32 %v2045, 7
    %v2047 = vsub.s32 %v2044, %v2046
    %v2048 = vrot.slane %v2034, %v2047
    %v2049 = vcombine.low %v1883, %v1887
    %v2050 = vcombine.high %v1883, %v1887
    %v2052 = vunpack.c.l.s4 1983009808
    %v2053 = vunpack.c.0.s8 %v2052
    %v2054 = vlaneseq
    %v2055 = vshrl.u32 %v2054, 7
    %v2056 = vsub.s32 %v2053, %v2055
    %v2057 = vrot.slane %v2049, %v2056
    %v2059 = vunpack.c.l.s4 1983009808
    %v2060 = vunpack.c.0.s8 %v2059
    %v2061 = vlaneseq
    %v2062 = vshrl.u32 %v2061, 7
    %v2063 = vsub.s32 %v2060, %v2062
    %v2064 = vrot.slane %v2050, %v2063
    %v2065 = vcombine.low %v2009, %v2025
    %v2066 = vcombine.high %v2009, %v2025
    %v2068 = vunpack.c.l.s4 1934713408
    %v2069 = vunpack.c.0.s8 %v2068
    %v2070 = vlaneseq
    %v2071 = vshrl.u32 %v2070, 7
    %v2072 = vsub.s32 %v2069, %v2071
    %v2073 = vrot.slane %v2065, %v2072
    %v2075 = vunpack.c.l.s4 1934713408
    %v2076 = vunpack.c.0.s8 %v2075
    %v2077 = vlaneseq
    %v2078 = vshrl.u32 %v2077, 7
    %v2079 = vsub.s32 %v2076, %v2078
    %v2080 = vrot.slane %v2066, %v2079
    %v2081 = vcombine.low %v2016, %v2032
    %v2082 = vcombine.high %v2016, %v2032
    %v2084 = vunpack.c.l.s4 1934713408
    %v2085 = vunpack.c.0.s8 %v2084
    %v2086 = vlaneseq
    %v2087 = vshrl.u32 %v2086, 7
    %v2088 = vsub.s32 %v2085, %v2087
    %v2089 = vrot.slane %v2081, %v2088
    %v2091 = vunpack.c.l.s4 1934713408
    %v2092 = vunpack.c.0.s8 %v2091
    %v2093 = vlaneseq
    %v2094 = vshrl.u32 %v2093, 7
    %v2095 = vsub.s32 %v2092, %v2094
    %v2096 = vrot.slane %v2082, %v2095
    %v2097 = vcombine.low %v2041, %v2057
    %v2098 = vcombine.high %v2041, %v2057
    %v2100 = vunpack.c.l.s4 1934713408
    %v2101 = vunpack.c.0.s8 %v2100
    %v2102 = vlaneseq
    %v2103 = vshrl.u32 %v2102, 7
    %v2104 = vsub.s32 %v2101, %v2103
    %v2105 = vrot.slane %v2097, %v2104
    %v2107 = vunpack.c.l.s4 1934713408
    %v2108 = vunpack.c.0.s8 %v2107
    %v2109 = vlaneseq
    %v2110 = vshrl.u32 %v2109, 7
    %v2111 = vsub.s32 %v2108, %v2110
    %v2112 = vrot.slane %v2098, %v2111
    %v2113 = vcombine.low %v2048, %v2064
    %v2114 = vcombine.high %v2048, %v2064
    %v2116 = vunpack.c.l.s4 1934713408
    %v2117 = vunpack.c.0.s8 %v2116
    %v2118 = vlaneseq
    %v2119 = vshrl.u32 %v2118, 7
    %v2120 = vsub.s32 %v2117, %v2119
    %v2121 = vrot.slane %v2113, %v2120
    %v2123 = vunpack.c.l.s4 1934713408
    %v2124 = vunpack.c.0.s8 %v2123
    %v2125 = vlaneseq
    %v2126 = vshrl.u32 %v2125, 7
    %v2127 = vsub.s32 %v2124, %v2126
    %v2128 = vrot.slane %v2114, %v2127
    %v2129 = vcombine.low %v2073, %v2105
    %v2130 = vcombine.high %v2073, %v2105
    %v2131 = vcombine.low %v2080, %v2112
    %v2132 = vcombine.high %v2080, %v2112
    %v2133 = vcombine.low %v2089, %v2121
    %v2134 = vcombine.high %v2089, %v2121
    %v2135 = vcombine.low %v2096, %v2128
    %v2136 = vcombine.high %v2096, %v2128
    %v2137 = vcombine.low %v1874, %v1878
    %v2138 = vcombine.high %v1874, %v1878
    %v2140 = vunpack.c.l.s4 1983009808
    %v2141 = vunpack.c.0.s8 %v2140
    %v2142 = vlaneseq
    %v2143 = vshrl.u32 %v2142, 7
    %v2144 = vsub.s32 %v2141, %v2143
    %v2145 = vrot.slane %v2137, %v2144
    %v2147 = vunpack.c.l.s4 1983009808
    %v2148 = vunpack.c.0.s8 %v2147
    %v2149 = vlaneseq
    %v2150 = vshrl.u32 %v2149, 7
    %v2151 = vsub.s32 %v2148, %v2150
    %v2152 = vrot.slane %v2138, %v2151
    %v2153 = vcombine.low %v1876, %v1880
    %v2154 = vcombine.high %v1876, %v1880
    %v2156 = vunpack.c.l.s4 1983009808
    %v2157 = vunpack.c.0.s8 %v2156
    %v2158 = vlaneseq
    %v2159 = vshrl.u32 %v2158, 7
    %v2160 = vsub.s32 %v2157, %v2159
    %v2161 = vrot.slane %v2153, %v2160
    %v2163 = vunpack.c.l.s4 1983009808
    %v2164 = vunpack.c.0.s8 %v2163
    %v2165 = vlaneseq
    %v2166 = vshrl.u32 %v2165, 7
    %v2167 = vsub.s32 %v2164, %v2166
    %v2168 = vrot.slane %v2154, %v2167
    %v2169 = vcombine.low %v1882, %v1886
    %v2170 = vcombine.high %v1882, %v1886
    %v2172 = vunpack.c.l.s4 1983009808
    %v2173 = vunpack.c.0.s8 %v2172
    %v2174 = vlaneseq
    %v2175 = vshrl.u32 %v2174, 7
    %v2176 = vsub.s32 %v2173, %v2175
    %v2177 = vrot.slane %v2169, %v2176
    %v2179 = vunpack.c.l.s4 1983009808
    %v2180 = vunpack.c.0.s8 %v2179
    %v2181 = vlaneseq
    %v2182 = vshrl.u32 %v2181, 7
    %v2183 = vsub.s32 %v2180, %v2182
    %v2184 = vrot.slane %v2170, %v2183
    %v2185 = vcombine.low %v1884, %v1888
    %v2186 = vcombine.high %v1884, %v1888
    %v2188 = vunpack.c.l.s4 1983009808
    %v2189 = vunpack.c.0.s8 %v2188
    %v2190 = vlaneseq
    %v2191 = vshrl.u32 %v2190, 7
    %v2192 = vsub.s32 %v2189, %v2191
    %v2193 = vrot.slane %v2185, %v2192
    %v2195 = vunpack.c.l.s4 1983009808
    %v2196 = vunpack.c.0.s8 %v2195
    %v2197 = vlaneseq
    %v2198 = vshrl.u32 %v2197, 7
    %v2199 = vsub.s32 %v2196, %v2198
    %v2200 = vrot.slane %v2186, %v2199
    %v2201 = vcombine.low %v2145, %v2161
    %v2202 = vcombine.high %v2145, %v2161
    %v2204 = vunpack.c.l.s4 1934713408
    %v2205 = vunpack.c.0.s8 %v2204
    %v2206 = vlaneseq
    %v2207 = vshrl.u32 %v2206, 7
    %v2208 = vsub.s32 %v2205, %v2207
    %v2209 = vrot.slane %v2201, %v2208
    %v2211 = vunpack.c.l.s4 1934713408
    %v2212 = vunpack.c.0.s8 %v2211
    %v2213 = vlaneseq
    %v2214 = vshrl.u32 %v2213, 7
    %v2215 = vsub.s32 %v2212, %v2214
    %v2216 = vrot.slane %v2202, %v2215
    %v2217 = vcombine.low %v2152, %v2168
    %v2218 = vcombine.high %v2152, %v2168
    %v2220 = vunpack.c.l.s4 1934713408
    %v2221 = vunpack.c.0.s8 %v2220
    %v2222 = vlaneseq
    %v2223 = vshrl.u32 %v2222, 7
    %v2224 = vsub.s32 %v2221, %v2223
    %v2225 = vrot.slane %v2217, %v2224
    %v2227 = vunpack.c.l.s4 1934713408
    %v2228 = vunpack.c.0.s8 %v2227
    %v2229 = vlaneseq
    %v2230 = vshrl.u32 %v2229, 7
    %v2231 = vsub.s32 %v2228, %v2230
    %v2232 = vrot.slane %v2218, %v2231
    %v2233 = vcombine.low %v2177, %v2193
    %v2234 = vcombine.high %v2177, %v2193
    %v2236 = vunpack.c.l.s4 1934713408
    %v2237 = vunpack.c.0.s8 %v2236
    %v2238 = vlaneseq
    %v2239 = vshrl.u32 %v2238, 7
    %v2240 = vsub.s32 %v2237, %v2239
    %v2241 = vrot.slane %v2233, %v2240
    %v2243 = vunpack.c.l.s4 1934713408
    %v2244 = vunpack.c.0.s8 %v2243
    %v2245 = vlaneseq
    %v2246 = vshrl.u32 %v2245, 7
    %v2247 = vsub.s32 %v2244, %v2246
    %v2248 = vrot.slane %v2234, %v2247
    %v2249 = vcombine.low %v2184, %v2200
    %v2250 = vcombine.high %v2184, %v2200
    %v2252 = vunpack.c.l.s4 1934713408
    %v2253 = vunpack.c.0.s8 %v2252
    %v2254 = vlaneseq
    %v2255 = vshrl.u32 %v2254, 7
    %v2256 = vsub.s32 %v2253, %v2255
    %v2257 = vrot.slane %v2249, %v2256
    %v2259 = vunpack.c.l.s4 1934713408
    %v2260 = vunpack.c.0.s8 %v2259
    %v2261 = vlaneseq
    %v2262 = vshrl.u32 %v2261, 7
    %v2263 = vsub.s32 %v2260, %v2262
    %v2264 = vrot.slane %v2250, %v2263
    %v2265 = vcombine.low %v2209, %v2241
    %v2266 = vcombine.high %v2209, %v2241
    %v2267 = vcombine.low %v2216, %v2248
    %v2268 = vcombine.high %v2216, %v2248
    %v2269 = vcombine.low %v2225, %v2257
    %v2270 = vcombine.high %v2225, %v2257
    %v2271 = vcombine.low %v2232, %v2264
    %v2272 = vcombine.high %v2232, %v2264
    %v2273 = vcombine.low %v1889, %v1893
    %v2274 = vcombine.high %v1889, %v1893
    %v2276 = vunpack.c.l.s4 1983009808
    %v2277 = vunpack.c.0.s8 %v2276
    %v2278 = vlaneseq
    %v2279 = vshrl.u32 %v2278, 7
    %v2280 = vsub.s32 %v2277, %v2279
    %v2281 = vrot.slane %v2273, %v2280
    %v2283 = vunpack.c.l.s4 1983009808
    %v2284 = vunpack.c.0.s8 %v2283
    %v2285 = vlaneseq
    %v2286 = vshrl.u32 %v2285, 7
    %v2287 = vsub.s32 %v2284, %v2286
    %v2288 = vrot.slane %v2274, %v2287
    %v2289 = vcombine.low %v1891, %v1895
    %v2290 = vcombine.high %v1891, %v1895
    %v2292 = vunpack.c.l.s4 1983009808
    %v2293 = vunpack.c.0.s8 %v2292
    %v2294 = vlaneseq
    %v2295 = vshrl.u32 %v2294, 7
    %v2296 = vsub.s32 %v2293, %v2295
    %v2297 = vrot.slane %v2289, %v2296
    %v2299 = vunpack.c.l.s4 1983009808
    %v2300 = vunpack.c.0.s8 %v2299
    %v2301 = vlaneseq
    %v2302 = vshrl.u32 %v2301, 7
    %v2303 = vsub.s32 %v2300, %v2302
    %v2304 = vrot.slane %v2290, %v2303
    %v2305 = vcombine.low %v1897, %v1901
    %v2306 = vcombine.high %v1897, %v1901
    %v2308 = vunpack.c.l.s4 1983009808
    %v2309 = vunpack.c.0.s8 %v2308
    %v2310 = vlaneseq
    %v2311 = vshrl.u32 %v2310, 7
    %v2312 = vsub.s32 %v2309, %v2311
    %v2313 = vrot.slane %v2305, %v2312
    %v2315 = vunpack.c.l.s4 1983009808
    %v2316 = vunpack.c.0.s8 %v2315
    %v2317 = vlaneseq
    %v2318 = vshrl.u32 %v2317, 7
    %v2319 = vsub.s32 %v2316, %v2318
    %v2320 = vrot.slane %v2306, %v2319
    %v2321 = vcombine.low %v1899, %v1903
    %v2322 = vcombine.high %v1899, %v1903
    %v2324 = vunpack.c.l.s4 1983009808
    %v2325 = vunpack.c.0.s8 %v2324
    %v2326 = vlaneseq
    %v2327 = vshrl.u32 %v2326, 7
    %v2328 = vsub.s32 %v2325, %v2327
    %v2329 = vrot.slane %v2321, %v2328
    %v2331 = vunpack.c.l.s4 1983009808
    %v2332 = vunpack.c.0.s8 %v2331
    %v2333 = vlaneseq
    %v2334 = vshrl.u32 %v2333, 7
    %v2335 = vsub.s32 %v2332, %v2334
    %v2336 = vrot.slane %v2322, %v2335
    %v2337 = vcombine.low %v2281, %v2297
    %v2338 = vcombine.high %v2281, %v2297
    %v2340 = vunpack.c.l.s4 1934713408
    %v2341 = vunpack.c.0.s8 %v2340
    %v2342 = vlaneseq
    %v2343 = vshrl.u32 %v2342, 7
    %v2344 = vsub.s32 %v2341, %v2343
    %v2345 = vrot.slane %v2337, %v2344
    %v2347 = vunpack.c.l.s4 1934713408
    %v2348 = vunpack.c.0.s8 %v2347
    %v2349 = vlaneseq
    %v2350 = vshrl.u32 %v2349, 7
    %v2351 = vsub.s32 %v2348, %v2350
    %v2352 = vrot.slane %v2338, %v2351
    %v2353 = vcombine.low %v2288, %v2304
    %v2354 = vcombine.high %v2288, %v2304
    %v2356 = vunpack.c.l.s4 1934713408
    %v2357 = vunpack.c.0.s8 %v2356
    %v2358 = vlaneseq
    %v2359 = vshrl.u32 %v2358, 7
    %v2360 = vsub.s32 %v2357, %v2359
    %v2361 = vrot.slane %v2353, %v2360
    %v2363 = vunpack.c.l.s4 1934713408
    %v2364 = vunpack.c.0.s8 %v2363
    %v2365 = vlaneseq
    %v2366 = vshrl.u32 %v2365, 7
    %v2367 = vsub.s32 %v2364, %v2366
    %v2368 = vrot.slane %v2354, %v2367
    %v2369 = vcombine.low %v2313, %v2329
    %v2370 = vcombine.high %v2313, %v2329
    %v2372 = vunpack.c.l.s4 1934713408
    %v2373 = vunpack.c.0.s8 %v2372
    %v2374 = vlaneseq
    %v2375 = vshrl.u32 %v2374, 7
    %v2376 = vsub.s32 %v2373, %v2375
    %v2377 = vrot.slane %v2369, %v2376
    %v2379 = vunpack.c.l.s4 1934713408
    %v2380 = vunpack.c.0.s8 %v2379
    %v2381 = vlaneseq
    %v2382 = vshrl.u32 %v2381, 7
    %v2383 = vsub.s32 %v2380, %v2382
    %v2384 = vrot.slane %v2370, %v2383
    %v2385 = vcombine.low %v2320, %v2336
    %v2386 = vcombine.high %v2320, %v2336
    %v2388 = vunpack.c.l.s4 1934713408
    %v2389 = vunpack.c.0.s8 %v2388
    %v2390 = vlaneseq
    %v2391 = vshrl.u32 %v2390, 7
    %v2392 = vsub.s32 %v2389, %v2391
    %v2393 = vrot.slane %v2385, %v2392
    %v2395 = vunpack.c.l.s4 1934713408
    %v2396 = vunpack.c.0.s8 %v2395
    %v2397 = vlaneseq
    %v2398 = vshrl.u32 %v2397, 7
    %v2399 = vsub.s32 %v2396, %v2398
    %v2400 = vrot.slane %v2386, %v2399
    %v2401 = vcombine.low %v2345, %v2377
    %v2402 = vcombine.high %v2345, %v2377
    %v2403 = vcombine.low %v2352, %v2384
    %v2404 = vcombine.high %v2352, %v2384
    %v2405 = vcombine.low %v2361, %v2393
    %v2406 = vcombine.high %v2361, %v2393
    %v2407 = vcombine.low %v2368, %v2400
    %v2408 = vcombine.high %v2368, %v2400
    %v2409 = vcombine.low %v1890, %v1894
    %v2410 = vcombine.high %v1890, %v1894
    %v2412 = vunpack.c.l.s4 1983009808
    %v2413 = vunpack.c.0.s8 %v2412
    %v2414 = vlaneseq
    %v2415 = vshrl.u32 %v2414, 7
    %v2416 = vsub.s32 %v2413, %v2415
    %v2417 = vrot.slane %v2409, %v2416
    %v2419 = vunpack.c.l.s4 1983009808
    %v2420 = vunpack.c.0.s8 %v2419
    %v2421 = vlaneseq
    %v2422 = vshrl.u32 %v2421, 7
    %v2423 = vsub.s32 %v2420, %v2422
    %v2424 = vrot.slane %v2410, %v2423
    %v2425 = vcombine.low %v1892, %v1896
    %v2426 = vcombine.high %v1892, %v1896
    %v2428 = vunpack.c.l.s4 1983009808
    %v2429 = vunpack.c.0.s8 %v2428
    %v2430 = vlaneseq
    %v2431 = vshrl.u32 %v2430, 7
    %v2432 = vsub.s32 %v2429, %v2431
    %v2433 = vrot.slane %v2425, %v2432
    %v2435 = vunpack.c.l.s4 1983009808
    %v2436 = vunpack.c.0.s8 %v2435
    %v2437 = vlaneseq
    %v2438 = vshrl.u32 %v2437, 7
    %v2439 = vsub.s32 %v2436, %v2438
    %v2440 = vrot.slane %v2426, %v2439
    %v2441 = vcombine.low %v1898, %v1902
    %v2442 = vcombine.high %v1898, %v1902
    %v2444 = vunpack.c.l.s4 1983009808
    %v2445 = vunpack.c.0.s8 %v2444
    %v2446 = vlaneseq
    %v2447 = vshrl.u32 %v2446, 7
    %v2448 = vsub.s32 %v2445, %v2447
    %v2449 = vrot.slane %v2441, %v2448
    %v2451 = vunpack.c.l.s4 1983009808
    %v2452 = vunpack.c.0.s8 %v2451
    %v2453 = vlaneseq
    %v2454 = vshrl.u32 %v2453, 7
    %v2455 = vsub.s32 %v2452, %v2454
    %v2456 = vrot.slane %v2442, %v2455
    %v2457 = vcombine.low %v1900, %v1904
    %v2458 = vcombine.high %v1900, %v1904
    %v2460 = vunpack.c.l.s4 1983009808
    %v2461 = vunpack.c.0.s8 %v2460
    %v2462 = vlaneseq
    %v2463 = vshrl.u32 %v2462, 7
    %v2464 = vsub.s32 %v2461, %v2463
    %v2465 = vrot.slane %v2457, %v2464
    %v2467 = vunpack.c.l.s4 1983009808
    %v2468 = vunpack.c.0.s8 %v2467
    %v2469 = vlaneseq
    %v2470 = vshrl.u32 %v2469, 7
    %v2471 = vsub.s32 %v2468, %v2470
    %v2472 = vrot.slane %v2458, %v2471
    %v2473 = vcombine.low %v2417, %v2433
    %v2474 = vcombine.high %v2417, %v2433
    %v2476 = vunpack.c.l.s4 1934713408
    %v2477 = vunpack.c.0.s8 %v2476
    %v2478 = vlaneseq
    %v2479 = vshrl.u32 %v2478, 7
    %v2480 = vsub.s32 %v2477, %v2479
    %v2481 = vrot.slane %v2473, %v2480
    %v2483 = vunpack.c.l.s4 1934713408
    %v2484 = vunpack.c.0.s8 %v2483
    %v2485 = vlaneseq
    %v2486 = vshrl.u32 %v2485, 7
    %v2487 = vsub.s32 %v2484, %v2486
    %v2488 = vrot.slane %v2474, %v2487
    %v2489 = vcombine.low %v2424, %v2440
    %v2490 = vcombine.high %v2424, %v2440
    %v2492 = vunpack.c.l.s4 1934713408
    %v2493 = vunpack.c.0.s8 %v2492
    %v2494 = vlaneseq
    %v2495 = vshrl.u32 %v2494, 7
    %v2496 = vsub.s32 %v2493, %v2495
    %v2497 = vrot.slane %v2489, %v2496
    %v2499 = vunpack.c.l.s4 1934713408
    %v2500 = vunpack.c.0.s8 %v2499
    %v2501 = vlaneseq
    %v2502 = vshrl.u32 %v2501, 7
    %v2503 = vsub.s32 %v2500, %v2502
    %v2504 = vrot.slane %v2490, %v2503
    %v2505 = vcombine.low %v2449, %v2465
    %v2506 = vcombine.high %v2449, %v2465
    %v2508 = vunpack.c.l.s4 1934713408
    %v2509 = vunpack.c.0.s8 %v2508
    %v2510 = vlaneseq
    %v2511 = vshrl.u32 %v2510, 7
    %v2512 = vsub.s32 %v2509, %v2511
    %v2513 = vrot.slane %v2505, %v2512
    %v2515 = vunpack.c.l.s4 1934713408
    %v2516 = vunpack.c.0.s8 %v2515
    %v2517 = vlaneseq
    %v2518 = vshrl.u32 %v2517, 7
    %v2519 = vsub.s32 %v2516, %v2518
    %v2520 = vrot.slane %v2506, %v2519
    %v2521 = vcombine.low %v2456, %v2472
    %v2522 = vcombine.high %v2456, %v2472
    %v2524 = vunpack.c.l.s4 1934713408
    %v2525 = vunpack.c.0.s8 %v2524
    %v2526 = vlaneseq
    %v2527 = vshrl.u32 %v2526, 7
    %v2528 = vsub.s32 %v2525, %v2527
    %v2529 = vrot.slane %v2521, %v2528
    %v2531 = vunpack.c.l.s4 1934713408
    %v2532 = vunpack.c.0.s8 %v2531
    %v2533 = vlaneseq
    %v2534 = vshrl.u32 %v2533, 7
    %v2535 = vsub.s32 %v2532, %v2534
    %v2536 = vrot.slane %v2522, %v2535
    %v2537 = vcombine.low %v2481, %v2513
    %v2538 = vcombine.high %v2481, %v2513
    %v2539 = vcombine.low %v2488, %v2520
    %v2540 = vcombine.high %v2488, %v2520
    %v2541 = vcombine.low %v2497, %v2529
    %v2542 = vcombine.high %v2497, %v2529
    %v2543 = vcombine.low %v2504, %v2536
    %v2544 = vcombine.high %v2504, %v2536
    %v2545 = vcombine.low %v1905, %v1909
    %v2546 = vcombine.high %v1905, %v1909
    %v2548 = vunpack.c.l.s4 1983009808
    %v2549 = vunpack.c.0.s8 %v2548
    %v2550 = vlaneseq
    %v2551 = vshrl.u32 %v2550, 7
    %v2552 = vsub.s32 %v2549, %v2551
    %v2553 = vrot.slane %v2545, %v2552
    %v2555 = vunpack.c.l.s4 1983009808
    %v2556 = vunpack.c.0.s8 %v2555
    %v2557 = vlaneseq
    %v2558 = vshrl.u32 %v2557, 7
    %v2559 = vsub.s32 %v2556, %v2558
    %v2560 = vrot.slane %v2546, %v2559
    %v2561 = vcombine.low %v1907, %v1911
    %v2562 = vcombine.high %v1907, %v1911
    %v2564 = vunpack.c.l.s4 1983009808
    %v2565 = vunpack.c.0.s8 %v2564
    %v2566 = vlaneseq
    %v2567 = vshrl.u32 %v2566, 7
    %v2568 = vsub.s32 %v2565, %v2567
    %v2569 = vrot.slane %v2561, %v2568
    %v2571 = vunpack.c.l.s4 1983009808
    %v2572 = vunpack.c.0.s8 %v2571
    %v2573 = vlaneseq
    %v2574 = vshrl.u32 %v2573, 7
    %v2575 = vsub.s32 %v2572, %v2574
    %v2576 = vrot.slane %v2562, %v2575
    %v2577 = vcombine.low %v1913, %v1917
    %v2578 = vcombine.high %v1913, %v1917
    %v2580 = vunpack.c.l.s4 1983009808
    %v2581 = vunpack.c.0.s8 %v2580
    %v2582 = vlaneseq
    %v2583 = vshrl.u32 %v2582, 7
    %v2584 = vsub.s32 %v2581, %v2583
    %v2585 = vrot.slane %v2577, %v2584
    %v2587 = vunpack.c.l.s4 1983009808
    %v2588 = vunpack.c.0.s8 %v2587
    %v2589 = vlaneseq
    %v2590 = vshrl.u32 %v2589, 7
    %v2591 = vsub.s32 %v2588, %v2590
    %v2592 = vrot.slane %v2578, %v2591
    %v2593 = vcombine.low %v1915, %v1919
    %v2594 = vcombine.high %v1915, %v1919
    %v2596 = vunpack.c.l.s4 1983009808
    %v2597 = vunpack.c.0.s8 %v2596
    %v2598 = vlaneseq
    %v2599 = vshrl.u32 %v2598, 7
    %v2600 = vsub.s32 %v2597, %v2599
    %v2601 = vrot.slane %v2593, %v2600
    %v2603 = vunpack.c.l.s4 1983009808
    %v2604 = vunpack.c.0.s8 %v2603
    %v2605 = vlaneseq
    %v2606 = vshrl.u32 %v2605, 7
    %v2607 = vsub.s32 %v2604, %v2606
    %v2608 = vrot.slane %v2594, %v2607
    %v2609 = vcombine.low %v2553, %v2569
    %v2610 = vcombine.high %v2553, %v2569
    %v2612 = vunpack.c.l.s4 1934713408
    %v2613 = vunpack.c.0.s8 %v2612
    %v2614 = vlaneseq
    %v2615 = vshrl.u32 %v2614, 7
    %v2616 = vsub.s32 %v2613, %v2615
    %v2617 = vrot.slane %v2609, %v2616
    %v2619 = vunpack.c.l.s4 1934713408
    %v2620 = vunpack.c.0.s8 %v2619
    %v2621 = vlaneseq
    %v2622 = vshrl.u32 %v2621, 7
    %v2623 = vsub.s32 %v2620, %v2622
    %v2624 = vrot.slane %v2610, %v2623
    %v2625 = vcombine.low %v2560, %v2576
    %v2626 = vcombine.high %v2560, %v2576
    %v2628 = vunpack.c.l.s4 1934713408
    %v2629 = vunpack.c.0.s8 %v2628
    %v2630 = vlaneseq
    %v2631 = vshrl.u32 %v2630, 7
    %v2632 = vsub.s32 %v2629, %v2631
    %v2633 = vrot.slane %v2625, %v2632
    %v2635 = vunpack.c.l.s4 1934713408
    %v2636 = vunpack.c.0.s8 %v2635
    %v2637 = vlaneseq
    %v2638 = vshrl.u32 %v2637, 7
    %v2639 = vsub.s32 %v2636, %v2638
    %v2640 = vrot.slane %v2626, %v2639
    %v2641 = vcombine.low %v2585, %v2601
    %v2642 = vcombine.high %v2585, %v2601
    %v2644 = vunpack.c.l.s4 1934713408
    %v2645 = vunpack.c.0.s8 %v2644
    %v2646 = vlaneseq
    %v2647 = vshrl.u32 %v2646, 7
    %v2648 = vsub.s32 %v2645, %v2647
    %v2649 = vrot.slane %v2641, %v2648
    %v2651 = vunpack.c.l.s4 1934713408
    %v2652 = vunpack.c.0.s8 %v2651
    %v2653 = vlaneseq
    %v2654 = vshrl.u32 %v2653, 7
    %v2655 = vsub.s32 %v2652, %v2654
    %v2656 = vrot.slane %v2642, %v2655
    %v2657 = vcombine.low %v2592, %v2608
    %v2658 = vcombine.high %v2592, %v2608
    %v2660 = vunpack.c.l.s4 1934713408
    %v2661 = vunpack.c.0.s8 %v2660
    %v2662 = vlaneseq
    %v2663 = vshrl.u32 %v2662, 7
    %v2664 = vsub.s32 %v2661, %v2663
    %v2665 = vrot.slane %v2657, %v2664
    %v2667 = vunpack.c.l.s4 1934713408
    %v2668 = vunpack.c.0.s8 %v2667
    %v2669 = vlaneseq
    %v2670 = vshrl.u32 %v2669, 7
    %v2671 = vsub.s32 %v2668, %v2670
    %v2672 = vrot.slane %v2658, %v2671
    %v2673 = vcombine.low %v2617, %v2649
    %v2674 = vcombine.high %v2617, %v2649
    %v2675 = vcombine.low %v2624, %v2656
    %v2676 = vcombine.high %v2624, %v2656
    %v2677 = vcombine.low %v2633, %v2665
    %v2678 = vcombine.high %v2633, %v2665
    %v2679 = vcombine.low %v2640, %v2672
    %v2680 = vcombine.high %v2640, %v2672
    %v2681 = vcombine.low %v1906, %v1910
    %v2682 = vcombine.high %v1906, %v1910
    %v2684 = vunpack.c.l.s4 1983009808
    %v2685 = vunpack.c.0.s8 %v2684
    %v2686 = vlaneseq
    %v2687 = vshrl.u32 %v2686, 7
    %v2688 = vsub.s32 %v2685, %v2687
    %v2689 = vrot.slane %v2681, %v2688
    %v2691 = vunpack.c.l.s4 1983009808
    %v2692 = vunpack.c.0.s8 %v2691
    %v2693 = vlaneseq
    %v2694 = vshrl.u32 %v2693, 7
    %v2695 = vsub.s32 %v2692, %v2694
    %v2696 = vrot.slane %v2682, %v2695
    %v2697 = vcombine.low %v1908, %v1912
    %v2698 = vcombine.high %v1908, %v1912
    %v2700 = vunpack.c.l.s4 1983009808
    %v2701 = vunpack.c.0.s8 %v2700
    %v2702 = vlaneseq
    %v2703 = vshrl.u32 %v2702, 7
    %v2704 = vsub.s32 %v2701, %v2703
    %v2705 = vrot.slane %v2697, %v2704
    %v2707 = vunpack.c.l.s4 1983009808
    %v2708 = vunpack.c.0.s8 %v2707
    %v2709 = vlaneseq
    %v2710 = vshrl.u32 %v2709, 7
    %v2711 = vsub.s32 %v2708, %v2710
    %v2712 = vrot.slane %v2698, %v2711
    %v2713 = vcombine.low %v1914, %v1918
    %v2714 = vcombine.high %v1914, %v1918
    %v2716 = vunpack.c.l.s4 1983009808
    %v2717 = vunpack.c.0.s8 %v2716
    %v2718 = vlaneseq
    %v2719 = vshrl.u32 %v2718, 7
    %v2720 = vsub.s32 %v2717, %v2719
    %v2721 = vrot.slane %v2713, %v2720
    %v2723 = vunpack.c.l.s4 1983009808
    %v2724 = vunpack.c.0.s8 %v2723
    %v2725 = vlaneseq
    %v2726 = vshrl.u32 %v2725, 7
    %v2727 = vsub.s32 %v2724, %v2726
    %v2728 = vrot.slane %v2714, %v2727
    %v2729 = vcombine.low %v1916, %v1920
    %v2730 = vcombine.high %v1916, %v1920
    %v2732 = vunpack.c.l.s4 1983009808
    %v2733 = vunpack.c.0.s8 %v2732
    %v2734 = vlaneseq
    %v2735 = vshrl.u32 %v2734, 7
    %v2736 = vsub.s32 %v2733, %v2735
    %v2737 = vrot.slane %v2729, %v2736
    %v2739 = vunpack.c.l.s4 1983009808
    %v2740 = vunpack.c.0.s8 %v2739
    %v2741 = vlaneseq
    %v2742 = vshrl.u32 %v2741, 7
    %v2743 = vsub.s32 %v2740, %v2742
    %v2744 = vrot.slane %v2730, %v2743
    %v2745 = vcombine.low %v2689, %v2705
    %v2746 = vcombine.high %v2689, %v2705
    %v2748 = vunpack.c.l.s4 1934713408
    %v2749 = vunpack.c.0.s8 %v2748
    %v2750 = vlaneseq
    %v2751 = vshrl.u32 %v2750, 7
    %v2752 = vsub.s32 %v2749, %v2751
    %v2753 = vrot.slane %v2745, %v2752
    %v2755 = vunpack.c.l.s4 1934713408
    %v2756 = vunpack.c.0.s8 %v2755
    %v2757 = vlaneseq
    %v2758 = vshrl.u32 %v2757, 7
    %v2759 = vsub.s32 %v2756, %v2758
    %v2760 = vrot.slane %v2746, %v2759
    %v2761 = vcombine.low %v2696, %v2712
    %v2762 = vcombine.high %v2696, %v2712
    %v2764 = vunpack.c.l.s4 1934713408
    %v2765 = vunpack.c.0.s8 %v2764
    %v2766 = vlaneseq
    %v2767 = vshrl.u32 %v2766, 7
    %v2768 = vsub.s32 %v2765, %v2767
    %v2769 = vrot.slane %v2761, %v2768
    %v2771 = vunpack.c.l.s4 1934713408
    %v2772 = vunpack.c.0.s8 %v2771
    %v2773 = vlaneseq
    %v2774 = vshrl.u32 %v2773, 7
    %v2775 = vsub.s32 %v2772, %v2774
    %v2776 = vrot.slane %v2762, %v2775
    %v2777 = vcombine.low %v2721, %v2737
    %v2778 = vcombine.high %v2721, %v2737
    %v2780 = vunpack.c.l.s4 1934713408
    %v2781 = vunpack.c.0.s8 %v2780
    %v2782 = vlaneseq
    %v2783 = vshrl.u32 %v2782, 7
    %v2784 = vsub.s32 %v2781, %v2783
    %v2785 = vrot.slane %v2777, %v2784
    %v2787 = vunpack.c.l.s4 1934713408
    %v2788 = vunpack.c.0.s8 %v2787
    %v2789 = vlaneseq
    %v2790 = vshrl.u32 %v2789, 7
    %v2791 = vsub.s32 %v2788, %v2790
    %v2792 = vrot.slane %v2778, %v2791
    %v2793 = vcombine.low %v2728, %v2744
    %v2794 = vcombine.high %v2728, %v2744
    %v2796 = vunpack.c.l.s4 1934713408
    %v2797 = vunpack.c.0.s8 %v2796
    %v2798 = vlaneseq
    %v2799 = vshrl.u32 %v2798, 7
    %v2800 = vsub.s32 %v2797, %v2799
    %v2801 = vrot.slane %v2793, %v2800
    %v2803 = vunpack.c.l.s4 1934713408
    %v2804 = vunpack.c.0.s8 %v2803
    %v2805 = vlaneseq
    %v2806 = vshrl.u32 %v2805, 7
    %v2807 = vsub.s32 %v2804, %v2806
    %v2808 = vrot.slane %v2794, %v2807
    %v2809 = vcombine.low %v2753, %v2785
    %v2810 = vcombine.high %v2753, %v2785
    %v2811 = vcombine.low %v2760, %v2792
    %v2812 = vcombine.high %v2760, %v2792
    %v2813 = vcombine.low %v2769, %v2801
    %v2814 = vcombine.high %v2769, %v2801
    %v2815 = vcombine.low %v2776, %v2808
    %v2816 = vcombine.high %v2776, %v2808
    %v2817 = vcombine.low %v1921, %v1925
    %v2818 = vcombine.high %v1921, %v1925
    %v2820 = vunpack.c.l.s4 1983009808
    %v2821 = vunpack.c.0.s8 %v2820
    %v2822 = vlaneseq
    %v2823 = vshrl.u32 %v2822, 7
    %v2824 = vsub.s32 %v2821, %v2823
    %v2825 = vrot.slane %v2817, %v2824
    %v2827 = vunpack.c.l.s4 1983009808
    %v2828 = vunpack.c.0.s8 %v2827
    %v2829 = vlaneseq
    %v2830 = vshrl.u32 %v2829, 7
    %v2831 = vsub.s32 %v2828, %v2830
    %v2832 = vrot.slane %v2818, %v2831
    %v2833 = vcombine.low %v1923, %v1927
    %v2834 = vcombine.high %v1923, %v1927
    %v2836 = vunpack.c.l.s4 1983009808
    %v2837 = vunpack.c.0.s8 %v2836
    %v2838 = vlaneseq
    %v2839 = vshrl.u32 %v2838, 7
    %v2840 = vsub.s32 %v2837, %v2839
    %v2841 = vrot.slane %v2833, %v2840
    %v2843 = vunpack.c.l.s4 1983009808
    %v2844 = vunpack.c.0.s8 %v2843
    %v2845 = vlaneseq
    %v2846 = vshrl.u32 %v2845, 7
    %v2847 = vsub.s32 %v2844, %v2846
    %v2848 = vrot.slane %v2834, %v2847
    %v2849 = vcombine.low %v1929, %v1933
    %v2850 = vcombine.high %v1929, %v1933
    %v2852 = vunpack.c.l.s4 1983009808
    %v2853 = vunpack.c.0.s8 %v2852
    %v2854 = vlaneseq
    %v2855 = vshrl.u32 %v2854, 7
    %v2856 = vsub.s32 %v2853, %v2855
    %v2857 = vrot.slane %v2849, %v2856
    %v2859 = vunpack.c.l.s4 1983009808
    %v2860 = vunpack.c.0.s8 %v2859
    %v2861 = vlaneseq
    %v2862 = vshrl.u32 %v2861, 7
    %v2863 = vsub.s32 %v2860, %v2862
    %v2864 = vrot.slane %v2850, %v2863
    %v2865 = vcombine.low %v1931, %v1935
    %v2866 = vcombine.high %v1931, %v1935
    %v2868 = vunpack.c.l.s4 1983009808
    %v2869 = vunpack.c.0.s8 %v2868
    %v2870 = vlaneseq
    %v2871 = vshrl.u32 %v2870, 7
    %v2872 = vsub.s32 %v2869, %v2871
    %v2873 = vrot.slane %v2865, %v2872
    %v2875 = vunpack.c.l.s4 1983009808
    %v2876 = vunpack.c.0.s8 %v2875
    %v2877 = vlaneseq
    %v2878 = vshrl.u32 %v2877, 7
    %v2879 = vsub.s32 %v2876, %v2878
    %v2880 = vrot.slane %v2866, %v2879
    %v2881 = vcombine.low %v2825, %v2841
    %v2882 = vcombine.high %v2825, %v2841
    %v2884 = vunpack.c.l.s4 1934713408
    %v2885 = vunpack.c.0.s8 %v2884
    %v2886 = vlaneseq
    %v2887 = vshrl.u32 %v2886, 7
    %v2888 = vsub.s32 %v2885, %v2887
    %v2889 = vrot.slane %v2881, %v2888
    %v2891 = vunpack.c.l.s4 1934713408
    %v2892 = vunpack.c.0.s8 %v2891
    %v2893 = vlaneseq
    %v2894 = vshrl.u32 %v2893, 7
    %v2895 = vsub.s32 %v2892, %v2894
    %v2896 = vrot.slane %v2882, %v2895
    %v2897 = vcombine.low %v2832, %v2848
    %v2898 = vcombine.high %v2832, %v2848
    %v2900 = vunpack.c.l.s4 1934713408
    %v2901 = vunpack.c.0.s8 %v2900
    %v2902 = vlaneseq
    %v2903 = vshrl.u32 %v2902, 7
    %v2904 = vsub.s32 %v2901, %v2903
    %v2905 = vrot.slane %v2897, %v2904
    %v2907 = vunpack.c.l.s4 1934713408
    %v2908 = vunpack.c.0.s8 %v2907
    %v2909 = vlaneseq
    %v2910 = vshrl.u32 %v2909, 7
    %v2911 = vsub.s32 %v2908, %v2910
    %v2912 = vrot.slane %v2898, %v2911
    %v2913 = vcombine.low %v2857, %v2873
    %v2914 = vcombine.high %v2857, %v2873
    %v2916 = vunpack.c.l.s4 1934713408
    %v2917 = vunpack.c.0.s8 %v2916
    %v2918 = vlaneseq
    %v2919 = vshrl.u32 %v2918, 7
    %v2920 = vsub.s32 %v2917, %v2919
    %v2921 = vrot.slane %v2913, %v2920
    %v2923 = vunpack.c.l.s4 1934713408
    %v2924 = vunpack.c.0.s8 %v2923
    %v2925 = vlaneseq
    %v2926 = vshrl.u32 %v2925, 7
    %v2927 = vsub.s32 %v2924, %v2926
    %v2928 = vrot.slane %v2914, %v2927
    %v2929 = vcombine.low %v2864, %v2880
    %v2930 = vcombine.high %v2864, %v2880
    %v2932 = vunpack.c.l.s4 1934713408
    %v2933 = vunpack.c.0.s8 %v2932
    %v2934 = vlaneseq
    %v2935 = vshrl.u32 %v2934, 7
    %v2936 = vsub.s32 %v2933, %v2935
    %v2937 = vrot.slane %v2929, %v2936
    %v2939 = vunpack.c.l.s4 1934713408
    %v2940 = vunpack.c.0.s8 %v2939
    %v2941 = vlaneseq
    %v2942 = vshrl.u32 %v2941, 7
    %v2943 = vsub.s32 %v2940, %v2942
    %v2944 = vrot.slane %v2930, %v2943
    %v2945 = vcombine.low %v2889, %v2921
    %v2946 = vcombine.high %v2889, %v2921
    %v2947 = vcombine.low %v2896, %v2928
    %v2948 = vcombine.high %v2896, %v2928
    %v2949 = vcombine.low %v2905, %v2937
    %v2950 = vcombine.high %v2905, %v2937
    %v2951 = vcombine.low %v2912, %v2944
    %v2952 = vcombine.high %v2912, %v2944
    %v2953 = vcombine.low %v1922, %v1926
    %v2954 = vcombine.high %v1922, %v1926
    %v2956 = vunpack.c.l.s4 1983009808
    %v2957 = vunpack.c.0.s8 %v2956
    %v2958 = vlaneseq
    %v2959 = vshrl.u32 %v2958, 7
    %v2960 = vsub.s32 %v2957, %v2959
    %v2961 = vrot.slane %v2953, %v2960
    %v2963 = vunpack.c.l.s4 1983009808
    %v2964 = vunpack.c.0.s8 %v2963
    %v2965 = vlaneseq
    %v2966 = vshrl.u32 %v2965, 7
    %v2967 = vsub.s32 %v2964, %v2966
    %v2968 = vrot.slane %v2954, %v2967
    %v2969 = vcombine.low %v1924, %v1928
    %v2970 = vcombine.high %v1924, %v1928
    %v2972 = vunpack.c.l.s4 1983009808
    %v2973 = vunpack.c.0.s8 %v2972
    %v2974 = vlaneseq
    %v2975 = vshrl.u32 %v2974, 7
    %v2976 = vsub.s32 %v2973, %v2975
    %v2977 = vrot.slane %v2969, %v2976
    %v2979 = vunpack.c.l.s4 1983009808
    %v2980 = vunpack.c.0.s8 %v2979
    %v2981 = vlaneseq
    %v2982 = vshrl.u32 %v2981, 7
    %v2983 = vsub.s32 %v2980, %v2982
    %v2984 = vrot.slane %v2970, %v2983
    %v2985 = vcombine.low %v1930, %v1934
    %v2986 = vcombine.high %v1930, %v1934
    %v2988 = vunpack.c.l.s4 1983009808
    %v2989 = vunpack.c.0.s8 %v2988
    %v2990 = vlaneseq
    %v2991 = vshrl.u32 %v2990, 7
    %v2992 = vsub.s32 %v2989, %v2991
    %v2993 = vrot.slane %v2985, %v2992
    %v2995 = vunpack.c.l.s4 1983009808
    %v2996 = vunpack.c.0.s8 %v2995
    %v2997 = vlaneseq
    %v2998 = vshrl.u32 %v2997, 7
    %v2999 = vsub.s32 %v2996, %v2998
    %v3000 = vrot.slane %v2986, %v2999
    %v3001 = vcombine.low %v1932, %v1936
    %v3002 = vcombine.high %v1932, %v1936
    %v3004 = vunpack.c.l.s4 1983009808
    %v3005 = vunpack.c.0.s8 %v3004
    %v3006 = vlaneseq
    %v3007 = vshrl.u32 %v3006, 7
    %v3008 = vsub.s32 %v3005, %v3007
    %v3009 = vrot.slane %v3001, %v3008
    %v3011 = vunpack.c.l.s4 1983009808
    %v3012 = vunpack.c.0.s8 %v3011
    %v3013 = vlaneseq
    %v3014 = vshrl.u32 %v3013, 7
    %v3015 = vsub.s32 %v3012, %v3014
    %v3016 = vrot.slane %v3002, %v3015
    %v3017 = vcombine.low %v2961, %v2977
    %v3018 = vcombine.high %v2961, %v2977
    %v3020 = vunpack.c.l.s4 1934713408
    %v3021 = vunpack.c.0.s8 %v3020
    %v3022 = vlaneseq
    %v3023 = vshrl.u32 %v3022, 7
    %v3024 = vsub.s32 %v3021, %v3023
    %v3025 = vrot.slane %v3017, %v3024
    %v3027 = vunpack.c.l.s4 1934713408
    %v3028 = vunpack.c.0.s8 %v3027
    %v3029 = vlaneseq
    %v3030 = vshrl.u32 %v3029, 7
    %v3031 = vsub.s32 %v3028, %v3030
    %v3032 = vrot.slane %v3018, %v3031
    %v3033 = vcombine.low %v2968, %v2984
    %v3034 = vcombine.high %v2968, %v2984
    %v3036 = vunpack.c.l.s4 1934713408
    %v3037 = vunpack.c.0.s8 %v3036
    %v3038 = vlaneseq
    %v3039 = vshrl.u32 %v3038, 7
    %v3040 = vsub.s32 %v3037, %v3039
    %v3041 = vrot.slane %v3033, %v3040
    %v3043 = vunpack.c.l.s4 1934713408
    %v3044 = vunpack.c.0.s8 %v3043
    %v3045 = vlaneseq
    %v3046 = vshrl.u32 %v3045, 7
    %v3047 = vsub.s32 %v3044, %v3046
    %v3048 = vrot.slane %v3034, %v3047
    %v3049 = vcombine.low %v2993, %v3009
    %v3050 = vcombine.high %v2993, %v3009
    %v3052 = vunpack.c.l.s4 1934713408
    %v3053 = vunpack.c.0.s8 %v3052
    %v3054 = vlaneseq
    %v3055 = vshrl.u32 %v3054, 7
    %v3056 = vsub.s32 %v3053, %v3055
    %v3057 = vrot.slane %v3049, %v3056
    %v3059 = vunpack.c.l.s4 1934713408
    %v3060 = vunpack.c.0.s8 %v3059
    %v3061 = vlaneseq
    %v3062 = vshrl.u32 %v3061, 7
    %v3063 = vsub.s32 %v3060, %v3062
    %v3064 = vrot.slane %v3050, %v3063
    %v3065 = vcombine.low %v3000, %v3016
    %v3066 = vcombine.high %v3000, %v3016
    %v3068 = vunpack.c.l.s4 1934713408
    %v3069 = vunpack.c.0.s8 %v3068
    %v3070 = vlaneseq
    %v3071 = vshrl.u32 %v3070, 7
    %v3072 = vsub.s32 %v3069, %v3071
    %v3073 = vrot.slane %v3065, %v3072
    %v3075 = vunpack.c.l.s4 1934713408
    %v3076 = vunpack.c.0.s8 %v3075
    %v3077 = vlaneseq
    %v3078 = vshrl.u32 %v3077, 7
    %v3079 = vsub.s32 %v3076, %v3078
    %v3080 = vrot.slane %v3066, %v3079
    %v3081 = vcombine.low %v3025, %v3057
    %v3082 = vcombine.high %v3025, %v3057
    %v3083 = vcombine.low %v3032, %v3064
    %v3084 = vcombine.high %v3032, %v3064
    %v3085 = vcombine.low %v3041, %v3073
    %v3086 = vcombine.high %v3041, %v3073
    %v3087 = vcombine.low %v3048, %v3080
    %v3088 = vcombine.high %v3048, %v3080
    %v3089 = vcombine.low %v1937, %v1941
    %v3090 = vcombine.high %v1937, %v1941
    %v3092 = vunpack.c.l.s4 1983009808
    %v3093 = vunpack.c.0.s8 %v3092
    %v3094 = vlaneseq
    %v3095 = vshrl.u32 %v3094, 7
    %v3096 = vsub.s32 %v3093, %v3095
    %v3097 = vrot.slane %v3089, %v3096
    %v3099 = vunpack.c.l.s4 1983009808
    %v3100 = vunpack.c.0.s8 %v3099
    %v3101 = vlaneseq
    %v3102 = vshrl.u32 %v3101, 7
    %v3103 = vsub.s32 %v3100, %v3102
    %v3104 = vrot.slane %v3090, %v3103
    %v3105 = vcombine.low %v1939, %v1943
    %v3106 = vcombine.high %v1939, %v1943
    %v3108 = vunpack.c.l.s4 1983009808
    %v3109 = vunpack.c.0.s8 %v3108
    %v3110 = vlaneseq
    %v3111 = vshrl.u32 %v3110, 7
    %v3112 = vsub.s32 %v3109, %v3111
    %v3113 = vrot.slane %v3105, %v3112
    %v3115 = vunpack.c.l.s4 1983009808
    %v3116 = vunpack.c.0.s8 %v3115
    %v3117 = vlaneseq
    %v3118 = vshrl.u32 %v3117, 7
    %v3119 = vsub.s32 %v3116, %v3118
    %v3120 = vrot.slane %v3106, %v3119
    %v3121 = vcombine.low %v1945, %v1949
    %v3122 = vcombine.high %v1945, %v1949
    %v3124 = vunpack.c.l.s4 1983009808
    %v3125 = vunpack.c.0.s8 %v3124
    %v3126 = vlaneseq
    %v3127 = vshrl.u32 %v3126, 7
    %v3128 = vsub.s32 %v3125, %v3127
    %v3129 = vrot.slane %v3121, %v3128
    %v3131 = vunpack.c.l.s4 1983009808
    %v3132 = vunpack.c.0.s8 %v3131
    %v3133 = vlaneseq
    %v3134 = vshrl.u32 %v3133, 7
    %v3135 = vsub.s32 %v3132, %v3134
    %v3136 = vrot.slane %v3122, %v3135
    %v3137 = vcombine.low %v1947, %v1951
    %v3138 = vcombine.high %v1947, %v1951
    %v3140 = vunpack.c.l.s4 1983009808
    %v3141 = vunpack.c.0.s8 %v3140
    %v3142 = vlaneseq
    %v3143 = vshrl.u32 %v3142, 7
    %v3144 = vsub.s32 %v3141, %v3143
    %v3145 = vrot.slane %v3137, %v3144
    %v3147 = vunpack.c.l.s4 1983009808
    %v3148 = vunpack.c.0.s8 %v3147
    %v3149 = vlaneseq
    %v3150 = vshrl.u32 %v3149, 7
    %v3151 = vsub.s32 %v3148, %v3150
    %v3152 = vrot.slane %v3138, %v3151
    %v3153 = vcombine.low %v3097, %v3113
    %v3154 = vcombine.high %v3097, %v3113
    %v3156 = vunpack.c.l.s4 1934713408
    %v3157 = vunpack.c.0.s8 %v3156
    %v3158 = vlaneseq
    %v3159 = vshrl.u32 %v3158, 7
    %v3160 = vsub.s32 %v3157, %v3159
    %v3161 = vrot.slane %v3153, %v3160
    %v3163 = vunpack.c.l.s4 1934713408
    %v3164 = vunpack.c.0.s8 %v3163
    %v3165 = vlaneseq
    %v3166 = vshrl.u32 %v3165, 7
    %v3167 = vsub.s32 %v3164, %v3166
    %v3168 = vrot.slane %v3154, %v3167
    %v3169 = vcombine.low %v3104, %v3120
    %v3170 = vcombine.high %v3104, %v3120
    %v3172 = vunpack.c.l.s4 1934713408
    %v3173 = vunpack.c.0.s8 %v3172
    %v3174 = vlaneseq
    %v3175 = vshrl.u32 %v3174, 7
    %v3176 = vsub.s32 %v3173, %v3175
    %v3177 = vrot.slane %v3169, %v3176
    %v3179 = vunpack.c.l.s4 1934713408
    %v3180 = vunpack.c.0.s8 %v3179
    %v3181 = vlaneseq
    %v3182 = vshrl.u32 %v3181, 7
    %v3183 = vsub.s32 %v3180, %v3182
    %v3184 = vrot.slane %v3170, %v3183
    %v3185 = vcombine.low %v3129, %v3145
    %v3186 = vcombine.high %v3129, %v3145
    %v3188 = vunpack.c.l.s4 1934713408
    %v3189 = vunpack.c.0.s8 %v3188
    %v3190 = vlaneseq
    %v3191 = vshrl.u32 %v3190, 7
    %v3192 = vsub.s32 %v3189, %v3191
    %v3193 = vrot.slane %v3185, %v3192
    %v3195 = vunpack.c.l.s4 1934713408
    %v3196 = vunpack.c.0.s8 %v3195
    %v3197 = vlaneseq
    %v3198 = vshrl.u32 %v3197, 7
    %v3199 = vsub.s32 %v3196, %v3198
    %v3200 = vrot.slane %v3186, %v3199
    %v3201 = vcombine.low %v3136, %v3152
    %v3202 = vcombine.high %v3136, %v3152
    %v3204 = vunpack.c.l.s4 1934713408
    %v3205 = vunpack.c.0.s8 %v3204
    %v3206 = vlaneseq
    %v3207 = vshrl.u32 %v3206, 7
    %v3208 = vsub.s32 %v3205, %v3207
    %v3209 = vrot.slane %v3201, %v3208
    %v3211 = vunpack.c.l.s4 1934713408
    %v3212 = vunpack.c.0.s8 %v3211
    %v3213 = vlaneseq
    %v3214 = vshrl.u32 %v3213, 7
    %v3215 = vsub.s32 %v3212, %v3214
    %v3216 = vrot.slane %v3202, %v3215
    %v3217 = vcombine.low %v3161, %v3193
    %v3218 = vcombine.high %v3161, %v3193
    %v3219 = vcombine.low %v3168, %v3200
    %v3220 = vcombine.high %v3168, %v3200
    %v3221 = vcombine.low %v3177, %v3209
    %v3222 = vcombine.high %v3177, %v3209
    %v3223 = vcombine.low %v3184, %v3216
    %v3224 = vcombine.high %v3184, %v3216
    %v3225 = vcombine.low %v1938, %v1942
    %v3226 = vcombine.high %v1938, %v1942
    %v3228 = vunpack.c.l.s4 1983009808
    %v3229 = vunpack.c.0.s8 %v3228
    %v3230 = vlaneseq
    %v3231 = vshrl.u32 %v3230, 7
    %v3232 = vsub.s32 %v3229, %v3231
    %v3233 = vrot.slane %v3225, %v3232
    %v3235 = vunpack.c.l.s4 1983009808
    %v3236 = vunpack.c.0.s8 %v3235
    %v3237 = vlaneseq
    %v3238 = vshrl.u32 %v3237, 7
    %v3239 = vsub.s32 %v3236, %v3238
    %v3240 = vrot.slane %v3226, %v3239
    %v3241 = vcombine.low %v1940, %v1944
    %v3242 = vcombine.high %v1940, %v1944
    %v3244 = vunpack.c.l.s4 1983009808
    %v3245 = vunpack.c.0.s8 %v3244
    %v3246 = vlaneseq
    %v3247 = vshrl.u32 %v3246, 7
    %v3248 = vsub.s32 %v3245, %v3247
    %v3249 = vrot.slane %v3241, %v3248
    %v3251 = vunpack.c.l.s4 1983009808
    %v3252 = vunpack.c.0.s8 %v3251
    %v3253 = vlaneseq
    %v3254 = vshrl.u32 %v3253, 7
    %v3255 = vsub.s32 %v3252, %v3254
    %v3256 = vrot.slane %v3242, %v3255
    %v3257 = vcombine.low %v1946, %v1950
    %v3258 = vcombine.high %v1946, %v1950
    %v3260 = vunpack.c.l.s4 1983009808
    %v3261 = vunpack.c.0.s8 %v3260
    %v3262 = vlaneseq
    %v3263 = vshrl.u32 %v3262, 7
    %v3264 = vsub.s32 %v3261, %v3263
    %v3265 = vrot.slane %v3257, %v3264
    %v3267 = vunpack.c.l.s4 1983009808
    %v3268 = vunpack.c.0.s8 %v3267
    %v3269 = vlaneseq
    %v3270 = vshrl.u32 %v3269, 7
    %v3271 = vsub.s32 %v3268, %v3270
    %v3272 = vrot.slane %v3258, %v3271
    %v3273 = vcombine.low %v1948, %v1952
    %v3274 = vcombine.high %v1948, %v1952
    %v3276 = vunpack.c.l.s4 1983009808
    %v3277 = vunpack.c.0.s8 %v3276
    %v3278 = vlaneseq
    %v3279 = vshrl.u32 %v3278, 7
    %v3280 = vsub.s32 %v3277, %v3279
    %v3281 = vrot.slane %v3273, %v3280
    %v3283 = vunpack.c.l.s4 1983009808
    %v3284 = vunpack.c.0.s8 %v3283
    %v3285 = vlaneseq
    %v3286 = vshrl.u32 %v3285, 7
    %v3287 = vsub.s32 %v3284, %v3286
    %v3288 = vrot.slane %v3274, %v3287
    %v3289 = vcombine.low %v3233, %v3249
    %v3290 = vcombine.high %v3233, %v3249
    %v3292 = vunpack.c.l.s4 1934713408
    %v3293 = vunpack.c.0.s8 %v3292
    %v3294 = vlaneseq
    %v3295 = vshrl.u32 %v3294, 7
    %v3296 = vsub.s32 %v3293, %v3295
    %v3297 = vrot.slane %v3289, %v3296
    %v3299 = vunpack.c.l.s4 1934713408
    %v3300 = vunpack.c.0.s8 %v3299
    %v3301 = vlaneseq
    %v3302 = vshrl.u32 %v3301, 7
    %v3303 = vsub.s32 %v3300, %v3302
    %v3304 = vrot.slane %v3290, %v3303
    %v3305 = vcombine.low %v3240, %v3256
    %v3306 = vcombine.high %v3240, %v3256
    %v3308 = vunpack.c.l.s4 1934713408
    %v3309 = vunpack.c.0.s8 %v3308
    %v3310 = vlaneseq
    %v3311 = vshrl.u32 %v3310, 7
    %v3312 = vsub.s32 %v3309, %v3311
    %v3313 = vrot.slane %v3305, %v3312
    %v3315 = vunpack.c.l.s4 1934713408
    %v3316 = vunpack.c.0.s8 %v3315
    %v3317 = vlaneseq
    %v3318 = vshrl.u32 %v3317, 7
    %v3319 = vsub.s32 %v3316, %v3318
    %v3320 = vrot.slane %v3306, %v3319
    %v3321 = vcombine.low %v3265, %v3281
    %v3322 = vcombine.high %v3265, %v3281
    %v3324 = vunpack.c.l.s4 1934713408
    %v3325 = vunpack.c.0.s8 %v3324
    %v3326 = vlaneseq
    %v3327 = vshrl.u32 %v3326, 7
    %v3328 = vsub.s32 %v3325, %v3327
    %v3329 = vrot.slane %v3321, %v3328
    %v3331 = vunpack.c.l.s4 1934713408
    %v3332 = vunpack.c.0.s8 %v3331
    %v3333 = vlaneseq
    %v3334 = vshrl.u32 %v3333, 7
    %v3335 = vsub.s32 %v3332, %v3334
    %v3336 = vrot.slane %v3322, %v3335
    %v3337 = vcombine.low %v3272, %v3288
    %v3338 = vcombine.high %v3272, %v3288
    %v3340 = vunpack.c.l.s4 1934713408
    %v3341 = vunpack.c.0.s8 %v3340
    %v3342 = vlaneseq
    %v3343 = vshrl.u32 %v3342, 7
    %v3344 = vsub.s32 %v3341, %v3343
    %v3345 = vrot.slane %v3337, %v3344
    %v3347 = vunpack.c.l.s4 1934713408
    %v3348 = vunpack.c.0.s8 %v3347
    %v3349 = vlaneseq
    %v3350 = vshrl.u32 %v3349, 7
    %v3351 = vsub.s32 %v3348, %v3350
    %v3352 = vrot.slane %v3338, %v3351
    %v3353 = vcombine.low %v3297, %v3329
    %v3354 = vcombine.high %v3297, %v3329
    %v3355 = vcombine.low %v3304, %v3336
    %v3356 = vcombine.high %v3304, %v3336
    %v3357 = vcombine.low %v3313, %v3345
    %v3358 = vcombine.high %v3313, %v3345
    %v3359 = vcombine.low %v3320, %v3352
    %v3360 = vcombine.high %v3320, %v3352
    %v3361 = vcombine.low %v1953, %v1957
    %v3362 = vcombine.high %v1953, %v1957
    %v3364 = vunpack.c.l.s4 1983009808
    %v3365 = vunpack.c.0.s8 %v3364
    %v3366 = vlaneseq
    %v3367 = vshrl.u32 %v3366, 7
    %v3368 = vsub.s32 %v3365, %v3367
    %v3369 = vrot.slane %v3361, %v3368
    %v3371 = vunpack.c.l.s4 1983009808
    %v3372 = vunpack.c.0.s8 %v3371
    %v3373 = vlaneseq
    %v3374 = vshrl.u32 %v3373, 7
    %v3375 = vsub.s32 %v3372, %v3374
    %v3376 = vrot.slane %v3362, %v3375
    %v3377 = vcombine.low %v1955, %v1959
    %v3378 = vcombine.high %v1955, %v1959
    %v3380 = vunpack.c.l.s4 1983009808
    %v3381 = vunpack.c.0.s8 %v3380
    %v3382 = vlaneseq
    %v3383 = vshrl.u32 %v3382, 7
    %v3384 = vsub.s32 %v3381, %v3383
    %v3385 = vrot.slane %v3377, %v3384
    %v3387 = vunpack.c.l.s4 1983009808
    %v3388 = vunpack.c.0.s8 %v3387
    %v3389 = vlaneseq
    %v3390 = vshrl.u32 %v3389, 7
    %v3391 = vsub.s32 %v3388, %v3390
    %v3392 = vrot.slane %v3378, %v3391
    %v3393 = vcombine.low %v1961, %v1965
    %v3394 = vcombine.high %v1961, %v1965
    %v3396 = vunpack.c.l.s4 1983009808
    %v3397 = vunpack.c.0.s8 %v3396
    %v3398 = vlaneseq
    %v3399 = vshrl.u32 %v3398, 7
    %v3400 = vsub.s32 %v3397, %v3399
    %v3401 = vrot.slane %v3393, %v3400
    %v3403 = vunpack.c.l.s4 1983009808
    %v3404 = vunpack.c.0.s8 %v3403
    %v3405 = vlaneseq
    %v3406 = vshrl.u32 %v3405, 7
    %v3407 = vsub.s32 %v3404, %v3406
    %v3408 = vrot.slane %v3394, %v3407
    %v3409 = vcombine.low %v1963, %v1967
    %v3410 = vcombine.high %v1963, %v1967
    %v3412 = vunpack.c.l.s4 1983009808
    %v3413 = vunpack.c.0.s8 %v3412
    %v3414 = vlaneseq
    %v3415 = vshrl.u32 %v3414, 7
    %v3416 = vsub.s32 %v3413, %v3415
    %v3417 = vrot.slane %v3409, %v3416
    %v3419 = vunpack.c.l.s4 1983009808
    %v3420 = vunpack.c.0.s8 %v3419
    %v3421 = vlaneseq
    %v3422 = vshrl.u32 %v3421, 7
    %v3423 = vsub.s32 %v3420, %v3422
    %v3424 = vrot.slane %v3410, %v3423
    %v3425 = vcombine.low %v3369, %v3385
    %v3426 = vcombine.high %v3369, %v3385
    %v3428 = vunpack.c.l.s4 1934713408
    %v3429 = vunpack.c.0.s8 %v3428
    %v3430 = vlaneseq
    %v3431 = vshrl.u32 %v3430, 7
    %v3432 = vsub.s32 %v3429, %v3431
    %v3433 = vrot.slane %v3425, %v3432
    %v3435 = vunpack.c.l.s4 1934713408
    %v3436 = vunpack.c.0.s8 %v3435
    %v3437 = vlaneseq
    %v3438 = vshrl.u32 %v3437, 7
    %v3439 = vsub.s32 %v3436, %v3438
    %v3440 = vrot.slane %v3426, %v3439
    %v3441 = vcombine.low %v3376, %v3392
    %v3442 = vcombine.high %v3376, %v3392
    %v3444 = vunpack.c.l.s4 1934713408
    %v3445 = vunpack.c.0.s8 %v3444
    %v3446 = vlaneseq
    %v3447 = vshrl.u32 %v3446, 7
    %v3448 = vsub.s32 %v3445, %v3447
    %v3449 = vrot.slane %v3441, %v3448
    %v3451 = vunpack.c.l.s4 1934713408
    %v3452 = vunpack.c.0.s8 %v3451
    %v3453 = vlaneseq
    %v3454 = vshrl.u32 %v3453, 7
    %v3455 = vsub.s32 %v3452, %v3454
    %v3456 = vrot.slane %v3442, %v3455
    %v3457 = vcombine.low %v3401, %v3417
    %v3458 = vcombine.high %v3401, %v3417
    %v3460 = vunpack.c.l.s4 1934713408
    %v3461 = vunpack.c.0.s8 %v3460
    %v3462 = vlaneseq
    %v3463 = vshrl.u32 %v3462, 7
    %v3464 = vsub.s32 %v3461, %v3463
    %v3465 = vrot.slane %v3457, %v3464
    %v3467 = vunpack.c.l.s4 1934713408
    %v3468 = vunpack.c.0.s8 %v3467
    %v3469 = vlaneseq
    %v3470 = vshrl.u32 %v3469, 7
    %v3471 = vsub.s32 %v3468, %v3470
    %v3472 = vrot.slane %v3458, %v3471
    %v3473 = vcombine.low %v3408, %v3424
    %v3474 = vcombine.high %v3408, %v3424
    %v3476 = vunpack.c.l.s4 1934713408
    %v3477 = vunpack.c.0.s8 %v3476
    %v3478 = vlaneseq
    %v3479 = vshrl.u32 %v3478, 7
    %v3480 = vsub.s32 %v3477, %v3479
    %v3481 = vrot.slane %v3473, %v3480
    %v3483 = vunpack.c.l.s4 1934713408
    %v3484 = vunpack.c.0.s8 %v3483
    %v3485 = vlaneseq
    %v3486 = vshrl.u32 %v3485, 7
    %v3487 = vsub.s32 %v3484, %v3486
    %v3488 = vrot.slane %v3474, %v3487
    %v3489 = vcombine.low %v3433, %v3465
    %v3490 = vcombine.high %v3433, %v3465
    %v3491 = vcombine.low %v3440, %v3472
    %v3492 = vcombine.high %v3440, %v3472
    %v3493 = vcombine.low %v3449, %v3481
    %v3494 = vcombine.high %v3449, %v3481
    %v3495 = vcombine.low %v3456, %v3488
    %v3496 = vcombine.high %v3456, %v3488
    %v3497 = vcombine.low %v1954, %v1958
    %v3498 = vcombine.high %v1954, %v1958
    %v3500 = vunpack.c.l.s4 1983009808
    %v3501 = vunpack.c.0.s8 %v3500
    %v3502 = vlaneseq
    %v3503 = vshrl.u32 %v3502, 7
    %v3504 = vsub.s32 %v3501, %v3503
    %v3505 = vrot.slane %v3497, %v3504
    %v3507 = vunpack.c.l.s4 1983009808
    %v3508 = vunpack.c.0.s8 %v3507
    %v3509 = vlaneseq
    %v3510 = vshrl.u32 %v3509, 7
    %v3511 = vsub.s32 %v3508, %v3510
    %v3512 = vrot.slane %v3498, %v3511
    %v3513 = vcombine.low %v1956, %v1960
    %v3514 = vcombine.high %v1956, %v1960
    %v3516 = vunpack.c.l.s4 1983009808
    %v3517 = vunpack.c.0.s8 %v3516
    %v3518 = vlaneseq
    %v3519 = vshrl.u32 %v3518, 7
    %v3520 = vsub.s32 %v3517, %v3519
    %v3521 = vrot.slane %v3513, %v3520
    %v3523 = vunpack.c.l.s4 1983009808
    %v3524 = vunpack.c.0.s8 %v3523
    %v3525 = vlaneseq
    %v3526 = vshrl.u32 %v3525, 7
    %v3527 = vsub.s32 %v3524, %v3526
    %v3528 = vrot.slane %v3514, %v3527
    %v3529 = vcombine.low %v1962, %v1966
    %v3530 = vcombine.high %v1962, %v1966
    %v3532 = vunpack.c.l.s4 1983009808
    %v3533 = vunpack.c.0.s8 %v3532
    %v3534 = vlaneseq
    %v3535 = vshrl.u32 %v3534, 7
    %v3536 = vsub.s32 %v3533, %v3535
    %v3537 = vrot.slane %v3529, %v3536
    %v3539 = vunpack.c.l.s4 1983009808
    %v3540 = vunpack.c.0.s8 %v3539
    %v3541 = vlaneseq
    %v3542 = vshrl.u32 %v3541, 7
    %v3543 = vsub.s32 %v3540, %v3542
    %v3544 = vrot.slane %v3530, %v3543
    %v3545 = vcombine.low %v1964, %v1968
    %v3546 = vcombine.high %v1964, %v1968
    %v3548 = vunpack.c.l.s4 1983009808
    %v3549 = vunpack.c.0.s8 %v3548
    %v3550 = vlaneseq
    %v3551 = vshrl.u32 %v3550, 7
    %v3552 = vsub.s32 %v3549, %v3551
    %v3553 = vrot.slane %v3545, %v3552
    %v3555 = vunpack.c.l.s4 1983009808
    %v3556 = vunpack.c.0.s8 %v3555
    %v3557 = vlaneseq
    %v3558 = vshrl.u32 %v3557, 7
    %v3559 = vsub.s32 %v3556, %v3558
    %v3560 = vrot.slane %v3546, %v3559
    %v3561 = vcombine.low %v3505, %v3521
    %v3562 = vcombine.high %v3505, %v3521
    %v3564 = vunpack.c.l.s4 1934713408
    %v3565 = vunpack.c.0.s8 %v3564
    %v3566 = vlaneseq
    %v3567 = vshrl.u32 %v3566, 7
    %v3568 = vsub.s32 %v3565, %v3567
    %v3569 = vrot.slane %v3561, %v3568
    %v3571 = vunpack.c.l.s4 1934713408
    %v3572 = vunpack.c.0.s8 %v3571
    %v3573 = vlaneseq
    %v3574 = vshrl.u32 %v3573, 7
    %v3575 = vsub.s32 %v3572, %v3574
    %v3576 = vrot.slane %v3562, %v3575
    %v3577 = vcombine.low %v3512, %v3528
    %v3578 = vcombine.high %v3512, %v3528
    %v3580 = vunpack.c.l.s4 1934713408
    %v3581 = vunpack.c.0.s8 %v3580
    %v3582 = vlaneseq
    %v3583 = vshrl.u32 %v3582, 7
    %v3584 = vsub.s32 %v3581, %v3583
    %v3585 = vrot.slane %v3577, %v3584
    %v3587 = vunpack.c.l.s4 1934713408
    %v3588 = vunpack.c.0.s8 %v3587
    %v3589 = vlaneseq
    %v3590 = vshrl.u32 %v3589, 7
    %v3591 = vsub.s32 %v3588, %v3590
    %v3592 = vrot.slane %v3578, %v3591
    %v3593 = vcombine.low %v3537, %v3553
    %v3594 = vcombine.high %v3537, %v3553
    %v3596 = vunpack.c.l.s4 1934713408
    %v3597 = vunpack.c.0.s8 %v3596
    %v3598 = vlaneseq
    %v3599 = vshrl.u32 %v3598, 7
    %v3600 = vsub.s32 %v3597, %v3599
    %v3601 = vrot.slane %v3593, %v3600
    %v3603 = vunpack.c.l.s4 1934713408
    %v3604 = vunpack.c.0.s8 %v3603
    %v3605 = vlaneseq
    %v3606 = vshrl.u32 %v3605, 7
    %v3607 = vsub.s32 %v3604, %v3606
    %v3608 = vrot.slane %v3594, %v3607
    %v3609 = vcombine.low %v3544, %v3560
    %v3610 = vcombine.high %v3544, %v3560
    %v3612 = vunpack.c.l.s4 1934713408
    %v3613 = vunpack.c.0.s8 %v3612
    %v3614 = vlaneseq
    %v3615 = vshrl.u32 %v3614, 7
    %v3616 = vsub.s32 %v3613, %v3615
    %v3617 = vrot.slane %v3609, %v3616
    %v3619 = vunpack.c.l.s4 1934713408
    %v3620 = vunpack.c.0.s8 %v3619
    %v3621 = vlaneseq
    %v3622 = vshrl.u32 %v3621, 7
    %v3623 = vsub.s32 %v3620, %v3622
    %v3624 = vrot.slane %v3610, %v3623
    %v3625 = vcombine.low %v3569, %v3601
    %v3626 = vcombine.high %v3569, %v3601
    %v3627 = vcombine.low %v3576, %v3608
    %v3628 = vcombine.high %v3576, %v3608
    %v3629 = vcombine.low %v3585, %v3617
    %v3630 = vcombine.high %v3585, %v3617
    %v3631 = vcombine.low %v3592, %v3624
    %v3632 = vcombine.high %v3592, %v3624
    %v3633 = vcombine.low %v1969, %v1973
    %v3634 = vcombine.high %v1969, %v1973
    %v3636 = vunpack.c.l.s4 1983009808
    %v3637 = vunpack.c.0.s8 %v3636
    %v3638 = vlaneseq
    %v3639 = vshrl.u32 %v3638, 7
    %v3640 = vsub.s32 %v3637, %v3639
    %v3641 = vrot.slane %v3633, %v3640
    %v3643 = vunpack.c.l.s4 1983009808
    %v3644 = vunpack.c.0.s8 %v3643
    %v3645 = vlaneseq
    %v3646 = vshrl.u32 %v3645, 7
    %v3647 = vsub.s32 %v3644, %v3646
    %v3648 = vrot.slane %v3634, %v3647
    %v3649 = vcombine.low %v1971, %v1975
    %v3650 = vcombine.high %v1971, %v1975
    %v3652 = vunpack.c.l.s4 1983009808
    %v3653 = vunpack.c.0.s8 %v3652
    %v3654 = vlaneseq
    %v3655 = vshrl.u32 %v3654, 7
    %v3656 = vsub.s32 %v3653, %v3655
    %v3657 = vrot.slane %v3649, %v3656
    %v3659 = vunpack.c.l.s4 1983009808
    %v3660 = vunpack.c.0.s8 %v3659
    %v3661 = vlaneseq
    %v3662 = vshrl.u32 %v3661, 7
    %v3663 = vsub.s32 %v3660, %v3662
    %v3664 = vrot.slane %v3650, %v3663
    %v3665 = vcombine.low %v1977, %v1981
    %v3666 = vcombine.high %v1977, %v1981
    %v3668 = vunpack.c.l.s4 1983009808
    %v3669 = vunpack.c.0.s8 %v3668
    %v3670 = vlaneseq
    %v3671 = vshrl.u32 %v3670, 7
    %v3672 = vsub.s32 %v3669, %v3671
    %v3673 = vrot.slane %v3665, %v3672
    %v3675 = vunpack.c.l.s4 1983009808
    %v3676 = vunpack.c.0.s8 %v3675
    %v3677 = vlaneseq
    %v3678 = vshrl.u32 %v3677, 7
    %v3679 = vsub.s32 %v3676, %v3678
    %v3680 = vrot.slane %v3666, %v3679
    %v3681 = vcombine.low %v1979, %v1983
    %v3682 = vcombine.high %v1979, %v1983
    %v3684 = vunpack.c.l.s4 1983009808
    %v3685 = vunpack.c.0.s8 %v3684
    %v3686 = vlaneseq
    %v3687 = vshrl.u32 %v3686, 7
    %v3688 = vsub.s32 %v3685, %v3687
    %v3689 = vrot.slane %v3681, %v3688
    %v3691 = vunpack.c.l.s4 1983009808
    %v3692 = vunpack.c.0.s8 %v3691
    %v3693 = vlaneseq
    %v3694 = vshrl.u32 %v3693, 7
    %v3695 = vsub.s32 %v3692, %v3694
    %v3696 = vrot.slane %v3682, %v3695
    %v3697 = vcombine.low %v3641, %v3657
    %v3698 = vcombine.high %v3641, %v3657
    %v3700 = vunpack.c.l.s4 1934713408
    %v3701 = vunpack.c.0.s8 %v3700
    %v3702 = vlaneseq
    %v3703 = vshrl.u32 %v3702, 7
    %v3704 = vsub.s32 %v3701, %v3703
    %v3705 = vrot.slane %v3697, %v3704
    %v3707 = vunpack.c.l.s4 1934713408
    %v3708 = vunpack.c.0.s8 %v3707
    %v3709 = vlaneseq
    %v3710 = vshrl.u32 %v3709, 7
    %v3711 = vsub.s32 %v3708, %v3710
    %v3712 = vrot.slane %v3698, %v3711
    %v3713 = vcombine.low %v3648, %v3664
    %v3714 = vcombine.high %v3648, %v3664
    %v3716 = vunpack.c.l.s4 1934713408
    %v3717 = vunpack.c.0.s8 %v3716
    %v3718 = vlaneseq
    %v3719 = vshrl.u32 %v3718, 7
    %v3720 = vsub.s32 %v3717, %v3719
    %v3721 = vrot.slane %v3713, %v3720
    %v3723 = vunpack.c.l.s4 1934713408
    %v3724 = vunpack.c.0.s8 %v3723
    %v3725 = vlaneseq
    %v3726 = vshrl.u32 %v3725, 7
    %v3727 = vsub.s32 %v3724, %v3726
    %v3728 = vrot.slane %v3714, %v3727
    %v3729 = vcombine.low %v3673, %v3689
    %v3730 = vcombine.high %v3673, %v3689
    %v3732 = vunpack.c.l.s4 1934713408
    %v3733 = vunpack.c.0.s8 %v3732
    %v3734 = vlaneseq
    %v3735 = vshrl.u32 %v3734, 7
    %v3736 = vsub.s32 %v3733, %v3735
    %v3737 = vrot.slane %v3729, %v3736
    %v3739 = vunpack.c.l.s4 1934713408
    %v3740 = vunpack.c.0.s8 %v3739
    %v3741 = vlaneseq
    %v3742 = vshrl.u32 %v3741, 7
    %v3743 = vsub.s32 %v3740, %v3742
    %v3744 = vrot.slane %v3730, %v3743
    %v3745 = vcombine.low %v3680, %v3696
    %v3746 = vcombine.high %v3680, %v3696
    %v3748 = vunpack.c.l.s4 1934713408
    %v3749 = vunpack.c.0.s8 %v3748
    %v3750 = vlaneseq
    %v3751 = vshrl.u32 %v3750, 7
    %v3752 = vsub.s32 %v3749, %v3751
    %v3753 = vrot.slane %v3745, %v3752
    %v3755 = vunpack.c.l.s4 1934713408
    %v3756 = vunpack.c.0.s8 %v3755
    %v3757 = vlaneseq
    %v3758 = vshrl.u32 %v3757, 7
    %v3759 = vsub.s32 %v3756, %v3758
    %v3760 = vrot.slane %v3746, %v3759
    %v3761 = vcombine.low %v3705, %v3737
    %v3762 = vcombine.high %v3705, %v3737
    %v3763 = vcombine.low %v3712, %v3744
    %v3764 = vcombine.high %v3712, %v3744
    %v3765 = vcombine.low %v3721, %v3753
    %v3766 = vcombine.high %v3721, %v3753
    %v3767 = vcombine.low %v3728, %v3760
    %v3768 = vcombine.high %v3728, %v3760
    %v3769 = vcombine.low %v1970, %v1974
    %v3770 = vcombine.high %v1970, %v1974
    %v3772 = vunpack.c.l.s4 1983009808
    %v3773 = vunpack.c.0.s8 %v3772
    %v3774 = vlaneseq
    %v3775 = vshrl.u32 %v3774, 7
    %v3776 = vsub.s32 %v3773, %v3775
    %v3777 = vrot.slane %v3769, %v3776
    %v3779 = vunpack.c.l.s4 1983009808
    %v3780 = vunpack.c.0.s8 %v3779
    %v3781 = vlaneseq
    %v3782 = vshrl.u32 %v3781, 7
    %v3783 = vsub.s32 %v3780, %v3782
    %v3784 = vrot.slane %v3770, %v3783
    %v3785 = vcombine.low %v1972, %v1976
    %v3786 = vcombine.high %v1972, %v1976
    %v3788 = vunpack.c.l.s4 1983009808
    %v3789 = vunpack.c.0.s8 %v3788
    %v3790 = vlaneseq
    %v3791 = vshrl.u32 %v3790, 7
    %v3792 = vsub.s32 %v3789, %v3791
    %v3793 = vrot.slane %v3785, %v3792
    %v3795 = vunpack.c.l.s4 1983009808
    %v3796 = vunpack.c.0.s8 %v3795
    %v3797 = vlaneseq
    %v3798 = vshrl.u32 %v3797, 7
    %v3799 = vsub.s32 %v3796, %v3798
    %v3800 = vrot.slane %v3786, %v3799
    %v3801 = vcombine.low %v1978, %v1982
    %v3802 = vcombine.high %v1978, %v1982
    %v3804 = vunpack.c.l.s4 1983009808
    %v3805 = vunpack.c.0.s8 %v3804
    %v3806 = vlaneseq
    %v3807 = vshrl.u32 %v3806, 7
    %v3808 = vsub.s32 %v3805, %v3807
    %v3809 = vrot.slane %v3801, %v3808
    %v3811 = vunpack.c.l.s4 1983009808
    %v3812 = vunpack.c.0.s8 %v3811
    %v3813 = vlaneseq
    %v3814 = vshrl.u32 %v3813, 7
    %v3815 = vsub.s32 %v3812, %v3814
    %v3816 = vrot.slane %v3802, %v3815
    %v3817 = vcombine.low %v1980, %v1984
    %v3818 = vcombine.high %v1980, %v1984
    %v3820 = vunpack.c.l.s4 1983009808
    %v3821 = vunpack.c.0.s8 %v3820
    %v3822 = vlaneseq
    %v3823 = vshrl.u32 %v3822, 7
    %v3824 = vsub.s32 %v3821, %v3823
    %v3825 = vrot.slane %v3817, %v3824
    %v3827 = vunpack.c.l.s4 1983009808
    %v3828 = vunpack.c.0.s8 %v3827
    %v3829 = vlaneseq
    %v3830 = vshrl.u32 %v3829, 7
    %v3831 = vsub.s32 %v3828, %v3830
    %v3832 = vrot.slane %v3818, %v3831
    %v3833 = vcombine.low %v3777, %v3793
    %v3834 = vcombine.high %v3777, %v3793
    %v3836 = vunpack.c.l.s4 1934713408
    %v3837 = vunpack.c.0.s8 %v3836
    %v3838 = vlaneseq
    %v3839 = vshrl.u32 %v3838, 7
    %v3840 = vsub.s32 %v3837, %v3839
    %v3841 = vrot.slane %v3833, %v3840
    %v3843 = vunpack.c.l.s4 1934713408
    %v3844 = vunpack.c.0.s8 %v3843
    %v3845 = vlaneseq
    %v3846 = vshrl.u32 %v3845, 7
    %v3847 = vsub.s32 %v3844, %v3846
    %v3848 = vrot.slane %v3834, %v3847
    %v3849 = vcombine.low %v3784, %v3800
    %v3850 = vcombine.high %v3784, %v3800
    %v3852 = vunpack.c.l.s4 1934713408
    %v3853 = vunpack.c.0.s8 %v3852
    %v3854 = vlaneseq
    %v3855 = vshrl.u32 %v3854, 7
    %v3856 = vsub.s32 %v3853, %v3855
    %v3857 = vrot.slane %v3849, %v3856
    %v3859 = vunpack.c.l.s4 1934713408
    %v3860 = vunpack.c.0.s8 %v3859
    %v3861 = vlaneseq
    %v3862 = vshrl.u32 %v3861, 7
    %v3863 = vsub.s32 %v3860, %v3862
    %v3864 = vrot.slane %v3850, %v3863
    %v3865 = vcombine.low %v3809, %v3825
    %v3866 = vcombine.high %v3809, %v3825
    %v3868 = vunpack.c.l.s4 1934713408
    %v3869 = vunpack.c.0.s8 %v3868
    %v3870 = vlaneseq
    %v3871 = vshrl.u32 %v3870, 7
    %v3872 = vsub.s32 %v3869, %v3871
    %v3873 = vrot.slane %v3865, %v3872
    %v3875 = vunpack.c.l.s4 1934713408
    %v3876 = vunpack.c.0.s8 %v3875
    %v3877 = vlaneseq
    %v3878 = vshrl.u32 %v3877, 7
    %v3879 = vsub.s32 %v3876, %v3878
    %v3880 = vrot.slane %v3866, %v3879
    %v3881 = vcombine.low %v3816, %v3832
    %v3882 = vcombine.high %v3816, %v3832
    %v3884 = vunpack.c.l.s4 1934713408
    %v3885 = vunpack.c.0.s8 %v3884
    %v3886 = vlaneseq
    %v3887 = vshrl.u32 %v3886, 7
    %v3888 = vsub.s32 %v3885, %v3887
    %v3889 = vrot.slane %v3881, %v3888
    %v3891 = vunpack.c.l.s4 1934713408
    %v3892 = vunpack.c.0.s8 %v3891
    %v3893 = vlaneseq
    %v3894 = vshrl.u32 %v3893, 7
    %v3895 = vsub.s32 %v3892, %v3894
    %v3896 = vrot.slane %v3882, %v3895
    %v3897 = vcombine.low %v3841, %v3873
    %v3898 = vcombine.high %v3841, %v3873
    %v3899 = vcombine.low %v3848, %v3880
    %v3900 = vcombine.high %v3848, %v3880
    %v3901 = vcombine.low %v3857, %v3889
    %v3902 = vcombine.high %v3857, %v3889
    %v3903 = vcombine.low %v3864, %v3896
    %v3904 = vcombine.high %v3864, %v3896
    %v3905 = vcombine.low %v1985, %v1989
    %v3906 = vcombine.high %v1985, %v1989
    %v3908 = vunpack.c.l.s4 1983009808
    %v3909 = vunpack.c.0.s8 %v3908
    %v3910 = vlaneseq
    %v3911 = vshrl.u32 %v3910, 7
    %v3912 = vsub.s32 %v3909, %v3911
    %v3913 = vrot.slane %v3905, %v3912
    %v3915 = vunpack.c.l.s4 1983009808
    %v3916 = vunpack.c.0.s8 %v3915
    %v3917 = vlaneseq
    %v3918 = vshrl.u32 %v3917, 7
    %v3919 = vsub.s32 %v3916, %v3918
    %v3920 = vrot.slane %v3906, %v3919
    %v3921 = vcombine.low %v1987, %v1991
    %v3922 = vcombine.high %v1987, %v1991
    %v3924 = vunpack.c.l.s4 1983009808
    %v3925 = vunpack.c.0.s8 %v3924
    %v3926 = vlaneseq
    %v3927 = vshrl.u32 %v3926, 7
    %v3928 = vsub.s32 %v3925, %v3927
    %v3929 = vrot.slane %v3921, %v3928
    %v3931 = vunpack.c.l.s4 1983009808
    %v3932 = vunpack.c.0.s8 %v3931
    %v3933 = vlaneseq
    %v3934 = vshrl.u32 %v3933, 7
    %v3935 = vsub.s32 %v3932, %v3934
    %v3936 = vrot.slane %v3922, %v3935
    %v3937 = vcombine.low %v1993, %v1997
    %v3938 = vcombine.high %v1993, %v1997
    %v3940 = vunpack.c.l.s4 1983009808
    %v3941 = vunpack.c.0.s8 %v3940
    %v3942 = vlaneseq
    %v3943 = vshrl.u32 %v3942, 7
    %v3944 = vsub.s32 %v3941, %v3943
    %v3945 = vrot.slane %v3937, %v3944
    %v3947 = vunpack.c.l.s4 1983009808
    %v3948 = vunpack.c.0.s8 %v3947
    %v3949 = vlaneseq
    %v3950 = vshrl.u32 %v3949, 7
    %v3951 = vsub.s32 %v3948, %v3950
    %v3952 = vrot.slane %v3938, %v3951
    %v3953 = vcombine.low %v1995, %v1999
    %v3954 = vcombine.high %v1995, %v1999
    %v3956 = vunpack.c.l.s4 1983009808
    %v3957 = vunpack.c.0.s8 %v3956
    %v3958 = vlaneseq
    %v3959 = vshrl.u32 %v3958, 7
    %v3960 = vsub.s32 %v3957, %v3959
    %v3961 = vrot.slane %v3953, %v3960
    %v3963 = vunpack.c.l.s4 1983009808
    %v3964 = vunpack.c.0.s8 %v3963
    %v3965 = vlaneseq
    %v3966 = vshrl.u32 %v3965, 7
    %v3967 = vsub.s32 %v3964, %v3966
    %v3968 = vrot.slane %v3954, %v3967
    %v3969 = vcombine.low %v3913, %v3929
    %v3970 = vcombine.high %v3913, %v3929
    %v3972 = vunpack.c.l.s4 1934713408
    %v3973 = vunpack.c.0.s8 %v3972
    %v3974 = vlaneseq
    %v3975 = vshrl.u32 %v3974, 7
    %v3976 = vsub.s32 %v3973, %v3975
    %v3977 = vrot.slane %v3969, %v3976
    %v3979 = vunpack.c.l.s4 1934713408
    %v3980 = vunpack.c.0.s8 %v3979
    %v3981 = vlaneseq
    %v3982 = vshrl.u32 %v3981, 7
    %v3983 = vsub.s32 %v3980, %v3982
    %v3984 = vrot.slane %v3970, %v3983
    %v3985 = vcombine.low %v3920, %v3936
    %v3986 = vcombine.high %v3920, %v3936
    %v3988 = vunpack.c.l.s4 1934713408
    %v3989 = vunpack.c.0.s8 %v3988
    %v3990 = vlaneseq
    %v3991 = vshrl.u32 %v3990, 7
    %v3992 = vsub.s32 %v3989, %v3991
    %v3993 = vrot.slane %v3985, %v3992
    %v3995 = vunpack.c.l.s4 1934713408
    %v3996 = vunpack.c.0.s8 %v3995
    %v3997 = vlaneseq
    %v3998 = vshrl.u32 %v3997, 7
    %v3999 = vsub.s32 %v3996, %v3998
    %v4000 = vrot.slane %v3986, %v3999
    %v4001 = vcombine.low %v3945, %v3961
    %v4002 = vcombine.high %v3945, %v3961
    %v4004 = vunpack.c.l.s4 1934713408
    %v4005 = vunpack.c.0.s8 %v4004
    %v4006 = vlaneseq
    %v4007 = vshrl.u32 %v4006, 7
    %v4008 = vsub.s32 %v4005, %v4007
    %v4009 = vrot.slane %v4001, %v4008
    %v4011 = vunpack.c.l.s4 1934713408
    %v4012 = vunpack.c.0.s8 %v4011
    %v4013 = vlaneseq
    %v4014 = vshrl.u32 %v4013, 7
    %v4015 = vsub.s32 %v4012, %v4014
    %v4016 = vrot.slane %v4002, %v4015
    %v4017 = vcombine.low %v3952, %v3968
    %v4018 = vcombine.high %v3952, %v3968
    %v4020 = vunpack.c.l.s4 1934713408
    %v4021 = vunpack.c.0.s8 %v4020
    %v4022 = vlaneseq
    %v4023 = vshrl.u32 %v4022, 7
    %v4024 = vsub.s32 %v4021, %v4023
    %v4025 = vrot.slane %v4017, %v4024
    %v4027 = vunpack.c.l.s4 1934713408
    %v4028 = vunpack.c.0.s8 %v4027
    %v4029 = vlaneseq
    %v4030 = vshrl.u32 %v4029, 7
    %v4031 = vsub.s32 %v4028, %v4030
    %v4032 = vrot.slane %v4018, %v4031
    %v4033 = vcombine.low %v3977, %v4009
    %v4034 = vcombine.high %v3977, %v4009
    %v4035 = vcombine.low %v3984, %v4016
    %v4036 = vcombine.high %v3984, %v4016
    %v4037 = vcombine.low %v3993, %v4025
    %v4038 = vcombine.high %v3993, %v4025
    %v4039 = vcombine.low %v4000, %v4032
    %v4040 = vcombine.high %v4000, %v4032
    %v4041 = vcombine.low %v1986, %v1990
    %v4042 = vcombine.high %v1986, %v1990
    %v4044 = vunpack.c.l.s4 1983009808
    %v4045 = vunpack.c.0.s8 %v4044
    %v4046 = vlaneseq
    %v4047 = vshrl.u32 %v4046, 7
    %v4048 = vsub.s32 %v4045, %v4047
    %v4049 = vrot.slane %v4041, %v4048
    %v4051 = vunpack.c.l.s4 1983009808
    %v4052 = vunpack.c.0.s8 %v4051
    %v4053 = vlaneseq
    %v4054 = vshrl.u32 %v4053, 7
    %v4055 = vsub.s32 %v4052, %v4054
    %v4056 = vrot.slane %v4042, %v4055
    %v4057 = vcombine.low %v1988, %v1992
    %v4058 = vcombine.high %v1988, %v1992
    %v4060 = vunpack.c.l.s4 1983009808
    %v4061 = vunpack.c.0.s8 %v4060
    %v4062 = vlaneseq
    %v4063 = vshrl.u32 %v4062, 7
    %v4064 = vsub.s32 %v4061, %v4063
    %v4065 = vrot.slane %v4057, %v4064
    %v4067 = vunpack.c.l.s4 1983009808
    %v4068 = vunpack.c.0.s8 %v4067
    %v4069 = vlaneseq
    %v4070 = vshrl.u32 %v4069, 7
    %v4071 = vsub.s32 %v4068, %v4070
    %v4072 = vrot.slane %v4058, %v4071
    %v4073 = vcombine.low %v1994, %v1998
    %v4074 = vcombine.high %v1994, %v1998
    %v4076 = vunpack.c.l.s4 1983009808
    %v4077 = vunpack.c.0.s8 %v4076
    %v4078 = vlaneseq
    %v4079 = vshrl.u32 %v4078, 7
    %v4080 = vsub.s32 %v4077, %v4079
    %v4081 = vrot.slane %v4073, %v4080
    %v4083 = vunpack.c.l.s4 1983009808
    %v4084 = vunpack.c.0.s8 %v4083
    %v4085 = vlaneseq
    %v4086 = vshrl.u32 %v4085, 7
    %v4087 = vsub.s32 %v4084, %v4086
    %v4088 = vrot.slane %v4074, %v4087
    %v4089 = vcombine.low %v1996, %v2000
    %v4090 = vcombine.high %v1996, %v2000
    %v4092 = vunpack.c.l.s4 1983009808
    %v4093 = vunpack.c.0.s8 %v4092
    %v4094 = vlaneseq
    %v4095 = vshrl.u32 %v4094, 7
    %v4096 = vsub.s32 %v4093, %v4095
    %v4097 = vrot.slane %v4089, %v4096
    %v4099 = vunpack.c.l.s4 1983009808
    %v4100 = vunpack.c.0.s8 %v4099
    %v4101 = vlaneseq
    %v4102 = vshrl.u32 %v4101, 7
    %v4103 = vsub.s32 %v4100, %v4102
    %v4104 = vrot.slane %v4090, %v4103
    %v4105 = vcombine.low %v4049, %v4065
    %v4106 = vcombine.high %v4049, %v4065
    %v4108 = vunpack.c.l.s4 1934713408
    %v4109 = vunpack.c.0.s8 %v4108
    %v4110 = vlaneseq
    %v4111 = vshrl.u32 %v4110, 7
    %v4112 = vsub.s32 %v4109, %v4111
    %v4113 = vrot.slane %v4105, %v4112
    %v4115 = vunpack.c.l.s4 1934713408
    %v4116 = vunpack.c.0.s8 %v4115
    %v4117 = vlaneseq
    %v4118 = vshrl.u32 %v4117, 7
    %v4119 = vsub.s32 %v4116, %v4118
    %v4120 = vrot.slane %v4106, %v4119
    %v4121 = vcombine.low %v4056, %v4072
    %v4122 = vcombine.high %v4056, %v4072
    %v4124 = vunpack.c.l.s4 1934713408
    %v4125 = vunpack.c.0.s8 %v4124
    %v4126 = vlaneseq
    %v4127 = vshrl.u32 %v4126, 7
    %v4128 = vsub.s32 %v4125, %v4127
    %v4129 = vrot.slane %v4121, %v4128
    %v4131 = vunpack.c.l.s4 1934713408
    %v4132 = vunpack.c.0.s8 %v4131
    %v4133 = vlaneseq
    %v4134 = vshrl.u32 %v4133, 7
    %v4135 = vsub.s32 %v4132, %v4134
    %v4136 = vrot.slane %v4122, %v4135
    %v4137 = vcombine.low %v4081, %v4097
    %v4138 = vcombine.high %v4081, %v4097
    %v4140 = vunpack.c.l.s4 1934713408
    %v4141 = vunpack.c.0.s8 %v4140
    %v4142 = vlaneseq
    %v4143 = vshrl.u32 %v4142, 7
    %v4144 = vsub.s32 %v4141, %v4143
    %v4145 = vrot.slane %v4137, %v4144
    %v4147 = vunpack.c.l.s4 1934713408
    %v4148 = vunpack.c.0.s8 %v4147
    %v4149 = vlaneseq
    %v4150 = vshrl.u32 %v4149, 7
    %v4151 = vsub.s32 %v4148, %v4150
    %v4152 = vrot.slane %v4138, %v4151
    %v4153 = vcombine.low %v4088, %v4104
    %v4154 = vcombine.high %v4088, %v4104
    %v4156 = vunpack.c.l.s4 1934713408
    %v4157 = vunpack.c.0.s8 %v4156
    %v4158 = vlaneseq
    %v4159 = vshrl.u32 %v4158, 7
    %v4160 = vsub.s32 %v4157, %v4159
    %v4161 = vrot.slane %v4153, %v4160
    %v4163 = vunpack.c.l.s4 1934713408
    %v4164 = vunpack.c.0.s8 %v4163
    %v4165 = vlaneseq
    %v4166 = vshrl.u32 %v4165, 7
    %v4167 = vsub.s32 %v4164, %v4166
    %v4168 = vrot.slane %v4154, %v4167
    %v4169 = vcombine.low %v4113, %v4145
    %v4170 = vcombine.high %v4113, %v4145
    %v4171 = vcombine.low %v4120, %v4152
    %v4172 = vcombine.high %v4120, %v4152
    %v4173 = vcombine.low %v4129, %v4161
    %v4174 = vcombine.high %v4129, %v4161
    %v4175 = vcombine.low %v4136, %v4168
    %v4176 = vcombine.high %v4136, %v4168
    %4185 = vrot.lane.b32.xlu0 %v2130, 16
    %v4186 = vpop.permute.xlu0 %4185
    %4187 = vrot.lane.b32.xlu0 %v2402, 16
    %v4188 = vpop.permute.xlu0 %4187
    %4189 = vrot.lane.b32.xlu0 %v2674, 16
    %v4190 = vpop.permute.xlu0 %4189
    %4191 = vrot.lane.b32.xlu0 %v2946, 16
    %v4192 = vpop.permute.xlu0 %4191
    %4193 = vrot.lane.b32.xlu0 %v3218, 16
    %v4194 = vpop.permute.xlu0 %4193
    %4195 = vrot.lane.b32.xlu0 %v3490, 16
    %v4196 = vpop.permute.xlu0 %4195
    %4197 = vrot.lane.b32.xlu0 %v3762, 16
    %v4198 = vpop.permute.xlu0 %4197
    %4199 = vrot.lane.b32.xlu0 %v4034, 16
    %v4200 = vpop.permute.xlu0 %4199
    %4217 = vrot.lane.b32.xlu0 %v2131, 32
    %v4218 = vpop.permute.xlu0 %4217
    %4219 = vrot.lane.b32.xlu0 %v2403, 32
    %v4220 = vpop.permute.xlu0 %4219
    %4221 = vrot.lane.b32.xlu0 %v2675, 32
    %v4222 = vpop.permute.xlu0 %4221
    %4223 = vrot.lane.b32.xlu0 %v2947, 32
    %v4224 = vpop.permute.xlu0 %4223
    %4225 = vrot.lane.b32.xlu0 %v3219, 32
    %v4226 = vpop.permute.xlu0 %4225
    %4227 = vrot.lane.b32.xlu0 %v3491, 32
    %v4228 = vpop.permute.xlu0 %4227
    %4229 = vrot.lane.b32.xlu0 %v3763, 32
    %v4230 = vpop.permute.xlu0 %4229
    %4231 = vrot.lane.b32.xlu0 %v4035, 32
    %v4232 = vpop.permute.xlu0 %4231
    %4249 = vrot.lane.b32.xlu0 %v2132, 48
    %v4250 = vpop.permute.xlu0 %4249
    %4251 = vrot.lane.b32.xlu0 %v2404, 48
    %v4252 = vpop.permute.xlu0 %4251
    %4253 = vrot.lane.b32.xlu0 %v2676, 48
    %v4254 = vpop.permute.xlu0 %4253
    %4255 = vrot.lane.b32.xlu0 %v2948, 48
    %v4256 = vpop.permute.xlu0 %4255
    %4257 = vrot.lane.b32.xlu0 %v3220, 48
    %v4258 = vpop.permute.xlu0 %4257
    %4259 = vrot.lane.b32.xlu0 %v3492, 48
    %v4260 = vpop.permute.xlu0 %4259
    %4261 = vrot.lane.b32.xlu0 %v3764, 48
    %v4262 = vpop.permute.xlu0 %4261
    %4263 = vrot.lane.b32.xlu0 %v4036, 48
    %v4264 = vpop.permute.xlu0 %4263
    %4281 = vrot.lane.b32.xlu0 %v2133, 64
    %v4282 = vpop.permute.xlu0 %4281
    %4283 = vrot.lane.b32.xlu0 %v2405, 64
    %v4284 = vpop.permute.xlu0 %4283
    %4285 = vrot.lane.b32.xlu0 %v2677, 64
    %v4286 = vpop.permute.xlu0 %4285
    %4287 = vrot.lane.b32.xlu0 %v2949, 64
    %v4288 = vpop.permute.xlu0 %4287
    %4289 = vrot.lane.b32.xlu0 %v3221, 64
    %v4290 = vpop.permute.xlu0 %4289
    %4291 = vrot.lane.b32.xlu0 %v3493, 64
    %v4292 = vpop.permute.xlu0 %4291
    %4293 = vrot.lane.b32.xlu0 %v3765, 64
    %v4294 = vpop.permute.xlu0 %4293
    %4295 = vrot.lane.b32.xlu0 %v4037, 64
    %v4296 = vpop.permute.xlu0 %4295
    %4313 = vrot.lane.b32.xlu0 %v2134, 80
    %v4314 = vpop.permute.xlu0 %4313
    %4315 = vrot.lane.b32.xlu0 %v2406, 80
    %v4316 = vpop.permute.xlu0 %4315
    %4317 = vrot.lane.b32.xlu0 %v2678, 80
    %v4318 = vpop.permute.xlu0 %4317
    %4319 = vrot.lane.b32.xlu0 %v2950, 80
    %v4320 = vpop.permute.xlu0 %4319
    %4321 = vrot.lane.b32.xlu0 %v3222, 80
    %v4322 = vpop.permute.xlu0 %4321
    %4323 = vrot.lane.b32.xlu0 %v3494, 80
    %v4324 = vpop.permute.xlu0 %4323
    %4325 = vrot.lane.b32.xlu0 %v3766, 80
    %v4326 = vpop.permute.xlu0 %4325
    %4327 = vrot.lane.b32.xlu0 %v4038, 80
    %v4328 = vpop.permute.xlu0 %4327
    %4345 = vrot.lane.b32.xlu0 %v2135, 96
    %v4346 = vpop.permute.xlu0 %4345
    %4347 = vrot.lane.b32.xlu0 %v2407, 96
    %v4348 = vpop.permute.xlu0 %4347
    %4349 = vrot.lane.b32.xlu0 %v2679, 96
    %v4350 = vpop.permute.xlu0 %4349
    %4351 = vrot.lane.b32.xlu0 %v2951, 96
    %v4352 = vpop.permute.xlu0 %4351
    %4353 = vrot.lane.b32.xlu0 %v3223, 96
    %v4354 = vpop.permute.xlu0 %4353
    %4355 = vrot.lane.b32.xlu0 %v3495, 96
    %v4356 = vpop.permute.xlu0 %4355
    %4357 = vrot.lane.b32.xlu0 %v3767, 96
    %v4358 = vpop.permute.xlu0 %4357
    %4359 = vrot.lane.b32.xlu0 %v4039, 96
    %v4360 = vpop.permute.xlu0 %4359
    %4377 = vrot.lane.b32.xlu0 %v2136, 112
    %v4378 = vpop.permute.xlu0 %4377
    %4379 = vrot.lane.b32.xlu0 %v2408, 112
    %v4380 = vpop.permute.xlu0 %4379
    %4381 = vrot.lane.b32.xlu0 %v2680, 112
    %v4382 = vpop.permute.xlu0 %4381
    %4383 = vrot.lane.b32.xlu0 %v2952, 112
    %v4384 = vpop.permute.xlu0 %4383
    %4385 = vrot.lane.b32.xlu0 %v3224, 112
    %v4386 = vpop.permute.xlu0 %4385
    %4387 = vrot.lane.b32.xlu0 %v3496, 112
    %v4388 = vpop.permute.xlu0 %4387
    %4389 = vrot.lane.b32.xlu0 %v3768, 112
    %v4390 = vpop.permute.xlu0 %4389
    %4391 = vrot.lane.b32.xlu0 %v4040, 112
    %v4392 = vpop.permute.xlu0 %4391
    %4409 = vrot.lane.b32.xlu0 %v2266, 16
    %v4410 = vpop.permute.xlu0 %4409
    %4411 = vrot.lane.b32.xlu0 %v2538, 16
    %v4412 = vpop.permute.xlu0 %4411
    %4413 = vrot.lane.b32.xlu0 %v2810, 16
    %v4414 = vpop.permute.xlu0 %4413
    %4415 = vrot.lane.b32.xlu0 %v3082, 16
    %v4416 = vpop.permute.xlu0 %4415
    %4417 = vrot.lane.b32.xlu0 %v3354, 16
    %v4418 = vpop.permute.xlu0 %4417
    %4419 = vrot.lane.b32.xlu0 %v3626, 16
    %v4420 = vpop.permute.xlu0 %4419
    %4421 = vrot.lane.b32.xlu0 %v3898, 16
    %v4422 = vpop.permute.xlu0 %4421
    %4423 = vrot.lane.b32.xlu0 %v4170, 16
    %v4424 = vpop.permute.xlu0 %4423
    %4441 = vrot.lane.b32.xlu0 %v2267, 32
    %v4442 = vpop.permute.xlu0 %4441
    %4443 = vrot.lane.b32.xlu0 %v2539, 32
    %v4444 = vpop.permute.xlu0 %4443
    %4445 = vrot.lane.b32.xlu0 %v2811, 32
    %v4446 = vpop.permute.xlu0 %4445
    %4447 = vrot.lane.b32.xlu0 %v3083, 32
    %v4448 = vpop.permute.xlu0 %4447
    %4449 = vrot.lane.b32.xlu0 %v3355, 32
    %v4450 = vpop.permute.xlu0 %4449
    %4451 = vrot.lane.b32.xlu0 %v3627, 32
    %v4452 = vpop.permute.xlu0 %4451
    %4453 = vrot.lane.b32.xlu0 %v3899, 32
    %v4454 = vpop.permute.xlu0 %4453
    %4455 = vrot.lane.b32.xlu0 %v4171, 32
    %v4456 = vpop.permute.xlu0 %4455
    %4473 = vrot.lane.b32.xlu0 %v2268, 48
    %v4474 = vpop.permute.xlu0 %4473
    %4475 = vrot.lane.b32.xlu0 %v2540, 48
    %v4476 = vpop.permute.xlu0 %4475
    %4477 = vrot.lane.b32.xlu0 %v2812, 48
    %v4478 = vpop.permute.xlu0 %4477
    %4479 = vrot.lane.b32.xlu0 %v3084, 48
    %v4480 = vpop.permute.xlu0 %4479
    %4481 = vrot.lane.b32.xlu0 %v3356, 48
    %v4482 = vpop.permute.xlu0 %4481
    %4483 = vrot.lane.b32.xlu0 %v3628, 48
    %v4484 = vpop.permute.xlu0 %4483
    %4485 = vrot.lane.b32.xlu0 %v3900, 48
    %v4486 = vpop.permute.xlu0 %4485
    %4487 = vrot.lane.b32.xlu0 %v4172, 48
    %v4488 = vpop.permute.xlu0 %4487
    %4505 = vrot.lane.b32.xlu0 %v2269, 64
    %v4506 = vpop.permute.xlu0 %4505
    %4507 = vrot.lane.b32.xlu0 %v2541, 64
    %v4508 = vpop.permute.xlu0 %4507
    %4509 = vrot.lane.b32.xlu0 %v2813, 64
    %v4510 = vpop.permute.xlu0 %4509
    %4511 = vrot.lane.b32.xlu0 %v3085, 64
    %v4512 = vpop.permute.xlu0 %4511
    %4513 = vrot.lane.b32.xlu0 %v3357, 64
    %v4514 = vpop.permute.xlu0 %4513
    %4515 = vrot.lane.b32.xlu0 %v3629, 64
    %v4516 = vpop.permute.xlu0 %4515
    %4517 = vrot.lane.b32.xlu0 %v3901, 64
    %v4518 = vpop.permute.xlu0 %4517
    %4519 = vrot.lane.b32.xlu0 %v4173, 64
    %v4520 = vpop.permute.xlu0 %4519
    %4537 = vrot.lane.b32.xlu0 %v2270, 80
    %v4538 = vpop.permute.xlu0 %4537
    %4539 = vrot.lane.b32.xlu0 %v2542, 80
    %v4540 = vpop.permute.xlu0 %4539
    %4541 = vrot.lane.b32.xlu0 %v2814, 80
    %v4542 = vpop.permute.xlu0 %4541
    %4543 = vrot.lane.b32.xlu0 %v3086, 80
    %v4544 = vpop.permute.xlu0 %4543
    %4545 = vrot.lane.b32.xlu0 %v3358, 80
    %v4546 = vpop.permute.xlu0 %4545
    %4547 = vrot.lane.b32.xlu0 %v3630, 80
    %v4548 = vpop.permute.xlu0 %4547
    %4549 = vrot.lane.b32.xlu0 %v3902, 80
    %v4550 = vpop.permute.xlu0 %4549
    %4551 = vrot.lane.b32.xlu0 %v4174, 80
    %v4552 = vpop.permute.xlu0 %4551
    %4569 = vrot.lane.b32.xlu0 %v2271, 96
    %v4570 = vpop.permute.xlu0 %4569
    %4571 = vrot.lane.b32.xlu0 %v2543, 96
    %v4572 = vpop.permute.xlu0 %4571
    %4573 = vrot.lane.b32.xlu0 %v2815, 96
    %v4574 = vpop.permute.xlu0 %4573
    %4575 = vrot.lane.b32.xlu0 %v3087, 96
    %v4576 = vpop.permute.xlu0 %4575
    %4577 = vrot.lane.b32.xlu0 %v3359, 96
    %v4578 = vpop.permute.xlu0 %4577
    %4579 = vrot.lane.b32.xlu0 %v3631, 96
    %v4580 = vpop.permute.xlu0 %4579
    %4581 = vrot.lane.b32.xlu0 %v3903, 96
    %v4582 = vpop.permute.xlu0 %4581
    %4583 = vrot.lane.b32.xlu0 %v4175, 96
    %v4584 = vpop.permute.xlu0 %4583
    %4601 = vrot.lane.b32.xlu0 %v2272, 112
    %v4602 = vpop.permute.xlu0 %4601
    %4603 = vrot.lane.b32.xlu0 %v2544, 112
    %v4604 = vpop.permute.xlu0 %4603
    %4605 = vrot.lane.b32.xlu0 %v2816, 112
    %v4606 = vpop.permute.xlu0 %4605
    %4607 = vrot.lane.b32.xlu0 %v3088, 112
    %v4608 = vpop.permute.xlu0 %4607
    %4609 = vrot.lane.b32.xlu0 %v3360, 112
    %v4610 = vpop.permute.xlu0 %4609
    %4611 = vrot.lane.b32.xlu0 %v3632, 112
    %v4612 = vpop.permute.xlu0 %4611
    %4613 = vrot.lane.b32.xlu0 %v3904, 112
    %v4614 = vpop.permute.xlu0 %4613
    %4615 = vrot.lane.b32.xlu0 %v4176, 112
    %v4616 = vpop.permute.xlu0 %4615
    %vm4625 = vcmask 130048
    %v4626 = vsel %vm4625, %v2129, %v4186
    %v4627 = vsel %vm4625, %v2401, %v4188
    %v4628 = vsel %vm4625, %v2673, %v4190
    %v4629 = vsel %vm4625, %v2945, %v4192
    %v4630 = vsel %vm4625, %v3217, %v4194
    %v4631 = vsel %vm4625, %v3489, %v4196
    %v4632 = vsel %vm4625, %v3761, %v4198
    %v4633 = vsel %vm4625, %v4033, %v4200
    %vm4634 = vcmask 261120
    %v4635 = vsel %vm4634, %v4626, %v4218
    %v4636 = vsel %vm4634, %v4627, %v4220
    %v4637 = vsel %vm4634, %v4628, %v4222
    %v4638 = vsel %vm4634, %v4629, %v4224
    %v4639 = vsel %vm4634, %v4630, %v4226
    %v4640 = vsel %vm4634, %v4631, %v4228
    %v4641 = vsel %vm4634, %v4632, %v4230
    %v4642 = vsel %vm4634, %v4633, %v4232
    %vm4643 = vcmask 392192
    %v4644 = vsel %vm4643, %v4635, %v4250
    %v4645 = vsel %vm4643, %v4636, %v4252
    %v4646 = vsel %vm4643, %v4637, %v4254
    %v4647 = vsel %vm4643, %v4638, %v4256
    %v4648 = vsel %vm4643, %v4639, %v4258
    %v4649 = vsel %vm4643, %v4640, %v4260
    %v4650 = vsel %vm4643, %v4641, %v4262
    %v4651 = vsel %vm4643, %v4642, %v4264
    %vm4652 = vcmask 523264
    %v4653 = vsel %vm4652, %v4644, %v4282
    %v4654 = vsel %vm4652, %v4645, %v4284
    %v4655 = vsel %vm4652, %v4646, %v4286
    %v4656 = vsel %vm4652, %v4647, %v4288
    %v4657 = vsel %vm4652, %v4648, %v4290
    %v4658 = vsel %vm4652, %v4649, %v4292
    %v4659 = vsel %vm4652, %v4650, %v4294
    %v4660 = vsel %vm4652, %v4651, %v4296
    %vm4661 = vcmask 654336
    %v4662 = vsel %vm4661, %v4653, %v4314
    %v4663 = vsel %vm4661, %v4654, %v4316
    %v4664 = vsel %vm4661, %v4655, %v4318
    %v4665 = vsel %vm4661, %v4656, %v4320
    %v4666 = vsel %vm4661, %v4657, %v4322
    %v4667 = vsel %vm4661, %v4658, %v4324
    %v4668 = vsel %vm4661, %v4659, %v4326
    %v4669 = vsel %vm4661, %v4660, %v4328
    %vm4670 = vcmask 785408
    %v4671 = vsel %vm4670, %v4662, %v4346
    %v4672 = vsel %vm4670, %v4663, %v4348
    %v4673 = vsel %vm4670, %v4664, %v4350
    %v4674 = vsel %vm4670, %v4665, %v4352
    %v4675 = vsel %vm4670, %v4666, %v4354
    %v4676 = vsel %vm4670, %v4667, %v4356
    %v4677 = vsel %vm4670, %v4668, %v4358
    %v4678 = vsel %vm4670, %v4669, %v4360
    %vm4679 = vcmask 916480
    %v4680 = vsel %vm4679, %v4671, %v4378
    %v4681 = vsel %vm4679, %v4672, %v4380
    %v4682 = vsel %vm4679, %v4673, %v4382
    %v4683 = vsel %vm4679, %v4674, %v4384
    %v4684 = vsel %vm4679, %v4675, %v4386
    %v4685 = vsel %vm4679, %v4676, %v4388
    %v4686 = vsel %vm4679, %v4677, %v4390
    %v4687 = vsel %vm4679, %v4678, %v4392
    %v4688 = vsel %vm4625, %v2265, %v4410
    %v4689 = vsel %vm4625, %v2537, %v4412
    %v4690 = vsel %vm4625, %v2809, %v4414
    %v4691 = vsel %vm4625, %v3081, %v4416
    %v4692 = vsel %vm4625, %v3353, %v4418
    %v4693 = vsel %vm4625, %v3625, %v4420
    %v4694 = vsel %vm4625, %v3897, %v4422
    %v4695 = vsel %vm4625, %v4169, %v4424
    %v4696 = vsel %vm4634, %v4688, %v4442
    %v4697 = vsel %vm4634, %v4689, %v4444
    %v4698 = vsel %vm4634, %v4690, %v4446
    %v4699 = vsel %vm4634, %v4691, %v4448
    %v4700 = vsel %vm4634, %v4692, %v4450
    %v4701 = vsel %vm4634, %v4693, %v4452
    %v4702 = vsel %vm4634, %v4694, %v4454
    %v4703 = vsel %vm4634, %v4695, %v4456
    %v4704 = vsel %vm4643, %v4696, %v4474
    %v4705 = vsel %vm4643, %v4697, %v4476
    %v4706 = vsel %vm4643, %v4698, %v4478
    %v4707 = vsel %vm4643, %v4699, %v4480
    %v4708 = vsel %vm4643, %v4700, %v4482
    %v4709 = vsel %vm4643, %v4701, %v4484
    %v4710 = vsel %vm4643, %v4702, %v4486
    %v4711 = vsel %vm4643, %v4703, %v4488
    %v4712 = vsel %vm4652, %v4704, %v4506
    %v4713 = vsel %vm4652, %v4705, %v4508
    %v4714 = vsel %vm4652, %v4706, %v4510
    %v4715 = vsel %vm4652, %v4707, %v4512
    %v4716 = vsel %vm4652, %v4708, %v4514
    %v4717 = vsel %vm4652, %v4709, %v4516
    %v4718 = vsel %vm4652, %v4710, %v4518
    %v4719 = vsel %vm4652, %v4711, %v4520
    %v4720 = vsel %vm4661, %v4712, %v4538
    %v4721 = vsel %vm4661, %v4713, %v4540
    %v4722 = vsel %vm4661, %v4714, %v4542
    %v4723 = vsel %vm4661, %v4715, %v4544
    %v4724 = vsel %vm4661, %v4716, %v4546
    %v4725 = vsel %vm4661, %v4717, %v4548
    %v4726 = vsel %vm4661, %v4718, %v4550
    %v4727 = vsel %vm4661, %v4719, %v4552
    %v4728 = vsel %vm4670, %v4720, %v4570
    %v4729 = vsel %vm4670, %v4721, %v4572
    %v4730 = vsel %vm4670, %v4722, %v4574
    %v4731 = vsel %vm4670, %v4723, %v4576
    %v4732 = vsel %vm4670, %v4724, %v4578
    %v4733 = vsel %vm4670, %v4725, %v4580
    %v4734 = vsel %vm4670, %v4726, %v4582
    %v4735 = vsel %vm4670, %v4727, %v4584
    %v4736 = vsel %vm4679, %v4728, %v4602
    %v4737 = vsel %vm4679, %v4729, %v4604
    %v4738 = vsel %vm4679, %v4730, %v4606
    %v4739 = vsel %vm4679, %v4731, %v4608
    %v4740 = vsel %vm4679, %v4732, %v4610
    %v4741 = vsel %vm4679, %v4733, %v4612
    %v4742 = vsel %vm4679, %v4734, %v4614
    %v4743 = vsel %vm4679, %v4735, %v4616
    %4744 = vst [vmem:[#allocation7] sm:$0xff] %v4680
    %4745 = vst [vmem:[#allocation7 + $0x8] sm:$0xff] %v4736
    %4746 = vst [vmem:[#allocation7 + $0x10] sm:$0xff] %v4681
    %4747 = vst [vmem:[#allocation7 + $0x18] sm:$0xff] %v4737
    %4748 = vst [vmem:[#allocation7 + $0x20] sm:$0xff] %v4682
    %4749 = vst [vmem:[#allocation7 + $0x28] sm:$0xff] %v4738
    %4750 = vst [vmem:[#allocation7 + $0x30] sm:$0xff] %v4683
    %4751 = vst [vmem:[#allocation7 + $0x38] sm:$0xff] %v4739
    %4752 = vst [vmem:[#allocation7 + $0x40] sm:$0xff] %v4684
    %4753 = vst [vmem:[#allocation7 + $0x48] sm:$0xff] %v4740
    %4754 = vst [vmem:[#allocation7 + $0x50] sm:$0xff] %v4685
    %4755 = vst [vmem:[#allocation7 + $0x58] sm:$0xff] %v4741
    %4756 = vst [vmem:[#allocation7 + $0x60] sm:$0xff] %v4686
    %4757 = vst [vmem:[#allocation7 + $0x68] sm:$0xff] %v4742
    %4758 = vst [vmem:[#allocation7 + $0x70] sm:$0xff] %v4687
    %4759 = vst [vmem:[#allocation7 + $0x78] sm:$0xff] %v4743
    // Predicated region
    $region18: #{tpu_custom_call.1} parent=1 // pred_check
      _
    $region19: #{tpu_custom_call.1} parent=1 // pred_check_branch
      %4761 = sbr.rel (0) target = $region21
    $region20: #{tpu_custom_call.1} parent=1 // pred_region
      %s4763 = ssub.s32 2048, 2048
      %4764 = vsyncadd [#allocation4], %s4763
      %s4765 = sshll.u32 [#allocation7], 4
      %s4766 = int_to_ptr.vmem [resolvable:$true] %s4765
      %4771 = dma.vmem_to_hbm [thread:$0]  %s4766, 2048, %s2, [#allocation4], 256, 256, 16
    $region21: #{tpu_custom_call.1} parent=1 // pred_fallthru
      _
    // Predicated region
    $region22: #{tpu_custom_call.1} parent=1 // pred_check
      _
    $region23: #{tpu_custom_call.1} parent=1 // pred_check_branch
      %4773 = sbr.rel (0) target = $region25
    $region24: #{tpu_custom_call.1} parent=1 // pred_region
      %4774 = dma.done [#allocation4], 2048
    $region25: #{tpu_custom_call.1} parent=1 // pred_fallthru
      _
    %4775 = vsyncpa [#allocation3], 1
    %4776 = vsyncpa [#allocation6], 1
    %4777 = vsyncpa [#allocation4], 1

</llo_original>
